<compile_context>
chip_gen: v7x
topology: tpu7x:2x2x1
jax: 0.10.0
libtpu: 0.0.40
codegen_flags: <defaults>
</compile_context>

<pallas_src>
import functools
import numpy as np
import jax
import jax.numpy as jnp
from jax import lax
from jax.experimental import pallas as pl
from jax.experimental.pallas import tpu as pltpu

# ---------------- hyperparameters (small, consistent with the module) -------
N_IMG = 16        # n_image_features
VOCAB = 8         # vocab_size
EMB = 16          # embedding_dim
HID = 32          # hidden_size
BOUND = 0         # bound_idx
MAX_LEN = 5       # max_sentence_length
VL_LOSS_W = 0.0   # vl_loss_weight
BOUND_W = 1.0     # bound_weight
BATCH = 2
N_DIST = 3

KIN = 48                      # fused LSTM lhs width: [h(32) | one-hot(8) | 1 | 0-pad(7)]
_INT32_MIN = -(2 ** 31)

VMEM_SPEC = pl.BlockSpec(memory_space=pltpu.MemorySpace.VMEM)


# ---------------- shared LSTM step (PyTorch gate order i,f,g,o) --------------
def _lstm_step(tail, h, c, w_all, zeros_tail, H):
    """One LSTM cell step with a single fused matmul.

    `w_all` is [KIN, 4H] = [W_hh.T ; (E @ W_ih.T) ; (b_ih + b_hh) ; 0-pad], so the
    recurrent product, the one-hot input product and the bias add all come out of
    one MXU push.  `tail` holds the one-hot token at lanes H..H+V-1 and a constant
    1.0 at lane H+V (bias selector); `zeros_tail` widens h to KIN lanes.
    """
    lhs = jnp.concatenate([h, zeros_tail], axis=-1) + tail              # [B, KIN]
    gates = jnp.dot(lhs, w_all, preferred_element_type=jnp.float32)     # [B, 4H]
    sig = jax.nn.sigmoid(gates)     # one full-vreg EUP pass covers i, f, o gates
    tnh = jnp.tanh(gates)           # one full-vreg EUP pass covers g gate
    c_new = sig[:, H:2 * H] * c + sig[:, 0:H] * tnh[:, 2 * H:3 * H]
    h_new = sig[:, 3 * H:4 * H] * jnp.tanh(c_new)
    return h_new, c_new


# ---------------- single fused kernel: sender -> pad -> receiver -> score ----
def fused_kernel(bound_idx, max_len,
                 t_ref, d_ref,
                 s_w_aff, s_b_aff, s_win, s_wp, s_bp,
                 r_win, r_waff, r_baff,
                 msg_ref, stats_ref):
    B = t_ref.shape[0]
    H = s_wp.shape[0]
    V = s_wp.shape[1]
    n_dist = d_ref.shape[0]
    n_pos = max_len + 1

    # ---- hoisted loads / constants (nothing re-loaded or re-broadcast in-loop)
    tgt = t_ref[...]
    w_aff = s_w_aff[...]
    b_aff = s_b_aff[...]
    ws = s_win[...]                                   # [KIN, 4H] sender fused weights
    wp = s_wp[...]                                    # [H, V]
    bp = jnp.broadcast_to(s_bp[...], (B, V))          # score bias, pre-broadcast once
    wr = r_win[...]                                   # [KIN, 4H] receiver fused weights
    waff_r = r_waff[...]
    baff_r = r_baff[...]

    lane_k = lax.broadcasted_iota(jnp.int32, (B, KIN), 1)          # fused-lhs lanes
    lane_m = lax.broadcasted_iota(jnp.int32, (B, 128), 1)          # message/stats lanes
    rev_lane = (V - 1) - lax.broadcasted_iota(jnp.int32, (B, V), 1)
    one_col = (lane_k == V + H).astype(jnp.float32)                # constant-1 bias lane
    zeros_tail = jnp.zeros((B, KIN - H), jnp.float32)
    bound_tail = jnp.where(lane_k == bound_idx + H, 1.0, one_col)  # <bound> one-hot tail

    # ---- Sender: greedy decode (fully unrolled, register/value carries only) ----
    h = jnp.dot(tgt, w_aff, preferred_element_type=jnp.float32) + b_aff
    c = jnp.zeros((B, H), jnp.float32)
    tok = jnp.full((B, 1), bound_idx, jnp.int32)       # message[0] = <bound>
    done = jnp.zeros((B, 1), jnp.bool_)                # has <bound> been emitted yet
    ent = jnp.zeros((B, 1), jnp.float32)
    msg = jnp.full((B, 128), bound_idx, jnp.int32)     # lane-dense padded-message carry

    for i in range(max_len):
        tail = jnp.where(lane_k == tok + H, 1.0, one_col)          # one-hot + bias lane
        h, c = _lstm_step(tail, h, c, ws, zeros_tail, H)
        scores = jnp.dot(h, wp, preferred_element_type=jnp.float32) + bp      # [B, V]

        # Greedy argmax with torch.max first-index tie-break via ONE cross-lane
        # max-reduce: pack an order-preserving integer image of the score in the
        # high bits and (V-1 - lane) in the 3 low bits. Exact ties break to the
        # first index; scores within 7 ulps of the max also resolve to the first.
        bits = pltpu.bitcast(scores, jnp.int32)
        mono = jnp.where(bits < 0, _INT32_MIN - bits, bits)
        key = (mono & -8) | rev_lane
        kmax = jnp.max(key, axis=-1, keepdims=True)
        tok = (V - 1) - (kmax & (V - 1))                                       # [B, 1]

        # Entropy of softmax(scores): off the token-feedback path. The max is
        # recovered from the packed key (H is shift-invariant, so the <=7-ulp
        # slack is irrelevant).  H = log(sum e^z) - sum(e^z * z) / sum(e^z)
        mmax = kmax & -8
        smax = pltpu.bitcast(jnp.where(mmax < 0, _INT32_MIN - mmax, mmax),
                             jnp.float32)
        z = scores - smax
        ez = jnp.exp(z)
        sez = jnp.sum(ez, axis=-1, keepdims=True)
        ent = ent + jnp.log(sez) - jnp.sum(ez * z, axis=-1, keepdims=True) / sez

        # _pad folded into the decode: once <bound> has been emitted, every later
        # position is stored as <bound> (== reference seq_len masking). The RAW
        # token keeps feeding the LSTM, exactly as in the reference.
        pad_tok = jnp.where(done, bound_idx, tok)
        msg = jnp.where(lane_m == (i + 1), pad_tok, msg)
        done = jnp.logical_or(done, tok == bound_idx)

    msg_ref[...] = msg      # [B, 128] unmasked store; caller slices [:, :max_len+1]

    # ---- Receiver: LSTM over the padded message, final hidden -> affine ----
    hr = jnp.zeros((B, H), jnp.float32)
    cr = jnp.zeros((B, H), jnp.float32)
    for t in range(n_pos):
        if t == 0:
            tail = bound_tail                      # message position 0 is <bound>
        else:
            # cheap lane-extract of the padded token (off the hr feedback chain)
            tok_t = jnp.max(jnp.where(lane_m == t, msg, 0), axis=-1, keepdims=True)
            tail = jnp.where(lane_k == tok_t + H, 1.0, one_col)
        hr, cr = _lstm_step(tail, hr, cr, wr, zeros_tail, H)
    r = jnp.dot(hr, waff_r, preferred_element_type=jnp.float32) + baff_r      # [B, N_IMG]

    # ---- Scoring: hinge loss + accuracy (target at index 0, first-index ties) ----
    ts = jnp.sum(tgt * r, axis=-1, keepdims=True)                  # [B, 1]
    loss_b = jnp.zeros((B, 1), jnp.float32)
    max_d = jnp.full((B, 1), -jnp.inf, jnp.float32)
    dall = d_ref[...]                                              # [D, B, N_IMG]
    for j in range(n_dist):
        sj = jnp.sum(dall[j] * r, axis=-1, keepdims=True)
        loss_b = loss_b + jnp.maximum(0.0, 1.0 - ts + sj)
        max_d = jnp.maximum(max_d, sj)
    # exp() is monotone; argmax==0 (ties -> first) <=> target >= all distractors
    acc_b = (ts >= max_d).astype(jnp.float32)

    # pack per-batch scalars into one lane-dense f32 slab:
    # lane 0 = hinge loss, lane 1 = accuracy, lane 2 = entropy summed over steps
    stats = jnp.where(lane_m == 0, loss_b, 0.0)
    stats = jnp.where(lane_m == 1, acc_b, stats)
    stats = jnp.where(lane_m == 2, ent, stats)
    stats_ref[...] = stats


def fused_forward(params, target, distractors):
    B = target.shape[0]
    out_shape = (
        jax.ShapeDtypeStruct((B, 128), jnp.int32),    # padded message (lane-dense)
        jax.ShapeDtypeStruct((B, 128), jnp.float32),  # [loss, acc, entropy, ...] per row
    )
    kernel = functools.partial(fused_kernel, BOUND, MAX_LEN)
    return pl.pallas_call(
        kernel,
        out_shape=out_shape,
        in_specs=[VMEM_SPEC] * 10,
        out_specs=(VMEM_SPEC, VMEM_SPEC),
    )(target, distractors,
      params["s_w_aff"], params["s_b_aff"], params["s_win"], params["s_w_p"],
      params["s_b_p"], params["r_win"], params["r_w_aff"], params["r_b_aff"])


# ---------------- parameter init (deterministic, mimics reset_parameters) ---
def init_params(key):
    k = jax.random.split(key, 8)

    def xavier(key, out_dim, in_dim):
        bound = float(np.sqrt(6.0 / (in_dim + out_dim)))
        return jax.random.uniform(key, (out_dim, in_dim), jnp.float32, -bound, bound)

    def orthogonal(key, rows, cols):
        a = jax.random.normal(key, (rows, cols), jnp.float32)
        q, rr = jnp.linalg.qr(a)
        return q * jnp.sign(jnp.diag(rr))[None, :]

    def lstm_bias():
        b = np.zeros((1, 4 * HID), np.float32)
        b[0, HID:2 * HID] = 1.0          # b_hh forget-gate section = 1
        return jnp.asarray(b)

    def fold_lstm(emb, w_ih_t, w_hh_t, bias):
        # Fused step weights [KIN, 4H]:
        #   rows [0:H)    -> W_hh.T       (lhs lanes 0..H-1 = h)
        #   rows [H:H+V)  -> E @ W_ih.T   (lhs lanes H..H+V-1 = one-hot token)
        #   row  H+V      -> b_ih + b_hh  (lhs lane H+V = constant 1)
        #   rows to KIN   -> 0            (sublane padding to a multiple of 8)
        pad = jnp.zeros((KIN - (HID + VOCAB + 1), 4 * HID), jnp.float32)
        return jnp.concatenate([w_hh_t, jnp.dot(emb, w_ih_t), bias, pad], axis=0)

    p = {}
    # Sender
    s_emb = 0.1 * jax.random.normal(k[0], (VOCAB, EMB), jnp.float32)
    s_w_ih = xavier(k[2], 4 * HID, EMB).T                                        # [EMB,4H]
    s_w_hh = orthogonal(k[3], 4 * HID, HID).T                                    # [HID,4H]
    p["s_w_aff"] = (0.1 * jax.random.normal(k[1], (HID, N_IMG), jnp.float32)).T  # [N_IMG,HID]
    p["s_b_aff"] = jnp.zeros((1, HID), jnp.float32)
    p["s_win"] = fold_lstm(s_emb, s_w_ih, s_w_hh, lstm_bias())                   # [KIN,4H]
    p["s_w_p"] = jnp.zeros((HID, VOCAB), jnp.float32)    # linear_probs init'd to 0
    p["s_b_p"] = jnp.zeros((1, VOCAB), jnp.float32)
    # Receiver
    r_emb = 0.1 * jax.random.normal(k[4], (VOCAB, EMB), jnp.float32)
    r_w_ih = xavier(k[5], 4 * HID, EMB).T
    r_w_hh = orthogonal(k[6], 4 * HID, HID).T
    p["r_win"] = fold_lstm(r_emb, r_w_ih, r_w_hh, lstm_bias())                   # [KIN,4H]
    p["r_w_aff"] = (0.1 * jax.random.normal(k[7], (N_IMG, HID), jnp.float32)).T  # [HID,N_IMG]
    p["r_b_aff"] = jnp.zeros((1, N_IMG), jnp.float32)
    return p


# ---------------- Model.forward glue (single kernel launch) ------------------
def model_forward(params, target, distractors, word_counts):
    # should_train_cnn=False, targets not "different" -> sender/receiver share target
    msg128, stats = fused_forward(params, target, distractors)
    m = msg128[:, :MAX_LEN + 1]                          # padded message [B, T+1]

    # vl_loss_weight == 0 -> word counts not computed, vl_loss = 0
    w_counts = jnp.zeros((), jnp.float32)
    vl_loss = 0.0

    loss = jnp.mean(stats[:, 0]) + VL_LOSS_W * vl_loss
    accuracy = jnp.mean(stats[:, 1])
    entropy = jnp.mean(stats[:, 2]) / MAX_LEN
    return loss, accuracy, m, w_counts, entropy


if __name__ == "__main__":
    key = jax.random.PRNGKey(0)
    pkey, tkey, dkey = jax.random.split(key, 3)
    params = init_params(pkey)

    target = jax.random.normal(tkey, (BATCH, N_IMG), jnp.float32)
    distractors = jax.random.normal(dkey, (N_DIST, BATCH, N_IMG), jnp.float32)
    word_counts = jnp.ones((VOCAB,), jnp.float32)       # unused (vl_loss_weight == 0)
    target_onehot_metadata = None                       # unused (n_rsa_samples == 0)

    fwd = jax.jit(model_forward)
    loss, acc, m, w_counts_out, entropy = fwd(params, target, distractors, word_counts)
    jax.block_until_ready((loss, acc, m, w_counts_out, entropy))

    # host-side metrics (pure glue, like the PyTorch .cpu().numpy() path)
    m_np = np.asarray(m)
    unique_ratio = len(np.unique(m_np, axis=0)) / BATCH
    rsa_sr = rsa_si = rsa_ri = topological_sim = 0      # n_rsa_samples == 0
    lang_ent = 0.0  # TODO(synk): language_entropy() is undefined in the reference source

    outputs = (float(loss), float(acc), m_np, float(w_counts_out), float(entropy),
               unique_ratio, rsa_sr, rsa_si, rsa_ri, topological_sim, lang_ent)
    assert np.isfinite(outputs[0]) and np.isfinite(outputs[4])
    print("KERNEL_OK")
</pallas_src>

<mosaic_0001>
module attributes {stable_mosaic.version = 11 : i64} {
  func.func @fused_kernel(%arg0: memref<2x16xf32, #tpu.memory_space<vmem>>, %arg1: memref<3x2x16xf32, #tpu.memory_space<vmem>>, %arg2: memref<16x32xf32, #tpu.memory_space<vmem>>, %arg3: memref<1x32xf32, #tpu.memory_space<vmem>>, %arg4: memref<48x128xf32, #tpu.memory_space<vmem>>, %arg5: memref<32x8xf32, #tpu.memory_space<vmem>>, %arg6: memref<1x8xf32, #tpu.memory_space<vmem>>, %arg7: memref<48x128xf32, #tpu.memory_space<vmem>>, %arg8: memref<32x16xf32, #tpu.memory_space<vmem>>, %arg9: memref<1x16xf32, #tpu.memory_space<vmem>>, %arg10: memref<2x128xi32, #tpu.memory_space<vmem>>, %arg11: memref<2x128xf32, #tpu.memory_space<vmem>>) attributes {dimension_semantics = [], scalar_prefetch = 0 : i64, scratch_operands = 0 : i64, tpu.core_type = #tpu.core_type<tc>} {
    %c0 = arith.constant 0 : index
    %c0_0 = arith.constant 0 : index
    %0 = vector.load %arg0[%c0, %c0_0] : memref<2x16xf32, #tpu.memory_space<vmem>>, vector<2x16xf32>
    %c0_1 = arith.constant 0 : index
    %c0_2 = arith.constant 0 : index
    %1 = vector.load %arg2[%c0_1, %c0_2] : memref<16x32xf32, #tpu.memory_space<vmem>>, vector<16x32xf32>
    %c0_3 = arith.constant 0 : index
    %c0_4 = arith.constant 0 : index
    %2 = vector.load %arg3[%c0_3, %c0_4] : memref<1x32xf32, #tpu.memory_space<vmem>>, vector<1x32xf32>
    %c0_5 = arith.constant 0 : index
    %c0_6 = arith.constant 0 : index
    %3 = vector.load %arg4[%c0_5, %c0_6] : memref<48x128xf32, #tpu.memory_space<vmem>>, vector<48x128xf32>
    %c0_7 = arith.constant 0 : index
    %c0_8 = arith.constant 0 : index
    %4 = vector.load %arg5[%c0_7, %c0_8] : memref<32x8xf32, #tpu.memory_space<vmem>>, vector<32x8xf32>
    %c0_9 = arith.constant 0 : index
    %c0_10 = arith.constant 0 : index
    %5 = vector.load %arg6[%c0_9, %c0_10] : memref<1x8xf32, #tpu.memory_space<vmem>>, vector<1x8xf32>
    %6 = vector.shape_cast %5 : vector<1x8xf32> to vector<1x8xf32>
    %7 = vector.broadcast %6 : vector<1x8xf32> to vector<2x8xf32>
    %c0_11 = arith.constant 0 : index
    %c0_12 = arith.constant 0 : index
    %8 = vector.load %arg7[%c0_11, %c0_12] : memref<48x128xf32, #tpu.memory_space<vmem>>, vector<48x128xf32>
    %c0_13 = arith.constant 0 : index
    %c0_14 = arith.constant 0 : index
    %9 = vector.load %arg8[%c0_13, %c0_14] : memref<32x16xf32, #tpu.memory_space<vmem>>, vector<32x16xf32>
    %c0_15 = arith.constant 0 : index
    %c0_16 = arith.constant 0 : index
    %10 = vector.load %arg9[%c0_15, %c0_16] : memref<1x16xf32, #tpu.memory_space<vmem>>, vector<1x16xf32>
    %11 = tpu.iota {dimensions = array<i32: 1>} : vector<2x48xi32>
    %12 = tpu.iota {dimensions = array<i32: 1>} : vector<2x128xi32>
    %13 = tpu.iota {dimensions = array<i32: 1>} : vector<2x8xi32>
    %c7_i32 = arith.constant 7 : i32
    %14 = vector.broadcast %c7_i32 : i32 to vector<2x8xi32>
    %15 = arith.subi %14, %13 : vector<2x8xi32>
    %c40_i32 = arith.constant 40 : i32
    %16 = vector.broadcast %c40_i32 : i32 to vector<2x48xi32>
    %17 = arith.cmpi eq, %11, %16 : vector<2x48xi32>
    %18 = arith.extui %17 : vector<2x48xi1> to vector<2x48xi32>
    %19 = arith.sitofp %18 : vector<2x48xi32> to vector<2x48xf32>
    %cst = arith.constant 0.000000e+00 : f32
    %20 = vector.broadcast %cst : f32 to vector<2x16xf32>
    %c32_i32 = arith.constant 32 : i32
    %21 = vector.broadcast %c32_i32 : i32 to vector<2x48xi32>
    %22 = arith.cmpi eq, %11, %21 : vector<2x48xi32>
    %cst_17 = arith.constant 1.000000e+00 : f32
    %23 = vector.broadcast %cst_17 : f32 to vector<2x48xf32>
    %24 = arith.select %22, %23, %19 : vector<2x48xi1>, vector<2x48xf32>
    %cst_18 = arith.constant dense<0.000000e+00> : vector<2x32xf32>
    %25 = tpu.matmul %0, %1, %cst_18 {dimension_numbers = #tpu.dot_dimension_numbers<[1], [0], [0], [1], [0, 0, 1, 1], [], []>} : vector<2x16xf32>, vector<16x32xf32>, vector<2x32xf32> -> vector<2x32xf32>
    %26 = vector.broadcast %2 : vector<1x32xf32> to vector<2x32xf32>
    %27 = arith.addf %25, %26 : vector<2x32xf32>
    %cst_19 = arith.constant 0.000000e+00 : f32
    %28 = vector.broadcast %cst_19 : f32 to vector<2x32xf32>
    %c0_i32 = arith.constant 0 : i32
    %29 = vector.broadcast %c0_i32 : i32 to vector<2x1xi32>
    %false = arith.constant false
    %30 = vector.broadcast %false : i1 to vector<2x1xi1>
    %cst_20 = arith.constant 0.000000e+00 : f32
    %31 = vector.broadcast %cst_20 : f32 to vector<2x1xf32>
    %c0_i32_21 = arith.constant 0 : i32
    %32 = vector.broadcast %c0_i32_21 : i32 to vector<2x128xi32>
    %c32_i32_22 = arith.constant 32 : i32
    %33 = vector.broadcast %c32_i32_22 : i32 to vector<2x1xi32>
    %34 = arith.addi %29, %33 : vector<2x1xi32>
    %35 = vector.broadcast %34 : vector<2x1xi32> to vector<2x48xi32>
    %36 = arith.cmpi eq, %11, %35 : vector<2x48xi32>
    %cst_23 = arith.constant 1.000000e+00 : f32
    %37 = vector.broadcast %cst_23 : f32 to vector<2x48xf32>
    %38 = arith.select %36, %37, %19 : vector<2x48xi1>, vector<2x48xf32>
    %39 = tpu.concatenate %27, %20 in 1 : vector<2x32xf32>, vector<2x16xf32> -> vector<2x48xf32>
    %40 = arith.addf %39, %38 : vector<2x48xf32>
    %cst_24 = arith.constant dense<0.000000e+00> : vector<2x128xf32>
    %41 = tpu.matmul %40, %3, %cst_24 {dimension_numbers = #tpu.dot_dimension_numbers<[1], [0], [0], [1], [0, 0, 1, 1], [], []>} : vector<2x48xf32>, vector<48x128xf32>, vector<2x128xf32> -> vector<2x128xf32>
    %42 = arith.negf %41 : vector<2x128xf32>
    %43 = math.exp %42 : vector<2x128xf32>
    %cst_25 = arith.constant 1.000000e+00 : f32
    %44 = vector.broadcast %cst_25 : f32 to vector<2x128xf32>
    %45 = arith.addf %44, %43 : vector<2x128xf32>
    %46 = arith.divf %44, %45 : vector<2x128xf32>
    %47 = math.tanh %41 : vector<2x128xf32>
    %48 = vector.extract_strided_slice %46 {offsets = [0, 32], sizes = [2, 32], strides = [1, 1]} : vector<2x128xf32> to vector<2x32xf32>
    %49 = arith.mulf %48, %28 : vector<2x32xf32>
    %50 = vector.extract_strided_slice %46 {offsets = [0, 0], sizes = [2, 32], strides = [1, 1]} : vector<2x128xf32> to vector<2x32xf32>
    %51 = vector.extract_strided_slice %47 {offsets = [0, 64], sizes = [2, 32], strides = [1, 1]} : vector<2x128xf32> to vector<2x32xf32>
    %52 = arith.mulf %50, %51 : vector<2x32xf32>
    %53 = arith.addf %49, %52 : vector<2x32xf32>
    %54 = vector.extract_strided_slice %46 {offsets = [0, 96], sizes = [2, 32], strides = [1, 1]} : vector<2x128xf32> to vector<2x32xf32>
    %55 = math.tanh %53 : vector<2x32xf32>
    %56 = arith.mulf %54, %55 : vector<2x32xf32>
    %cst_26 = arith.constant dense<0.000000e+00> : vector<2x8xf32>
    %57 = tpu.matmul %56, %4, %cst_26 {dimension_numbers = #tpu.dot_dimension_numbers<[1], [0], [0], [1], [0, 0, 1, 1], [], []>} : vector<2x32xf32>, vector<32x8xf32>, vector<2x8xf32> -> vector<2x8xf32>
    %58 = arith.addf %57, %7 : vector<2x8xf32>
    %59 = tpu.bitcast %58 : vector<2x8xf32> -> vector<2x8xi32>
    %c0_i32_27 = arith.constant 0 : i32
    %60 = vector.broadcast %c0_i32_27 : i32 to vector<2x8xi32>
    %61 = arith.cmpi slt, %59, %60 : vector<2x8xi32>
    %c-2147483648_i32 = arith.constant -2147483648 : i32
    %62 = vector.broadcast %c-2147483648_i32 : i32 to vector<2x8xi32>
    %63 = arith.subi %62, %59 : vector<2x8xi32>
    %64 = arith.select %61, %63, %59 : vector<2x8xi1>, vector<2x8xi32>
    %c-8_i32 = arith.constant -8 : i32
    %65 = vector.broadcast %c-8_i32 : i32 to vector<2x8xi32>
    %66 = arith.andi %64, %65 : vector<2x8xi32>
    %67 = arith.ori %66, %15 : vector<2x8xi32>
    %cst_28 = arith.constant dense<-2147483648> : vector<2xi32>
    %68 = vector.multi_reduction <maxsi>, %67, %cst_28 [1] : vector<2x8xi32> to vector<2xi32>
    %69 = vector.shape_cast %68 : vector<2xi32> to vector<2x1xi32>
    %c7_i32_29 = arith.constant 7 : i32
    %70 = vector.broadcast %c7_i32_29 : i32 to vector<2x1xi32>
    %71 = arith.andi %69, %70 : vector<2x1xi32>
    %c7_i32_30 = arith.constant 7 : i32
    %72 = vector.broadcast %c7_i32_30 : i32 to vector<2x1xi32>
    %73 = arith.subi %72, %71 : vector<2x1xi32>
    %c-8_i32_31 = arith.constant -8 : i32
    %74 = vector.broadcast %c-8_i32_31 : i32 to vector<2x1xi32>
    %75 = arith.andi %69, %74 : vector<2x1xi32>
    %c0_i32_32 = arith.constant 0 : i32
    %76 = vector.broadcast %c0_i32_32 : i32 to vector<2x1xi32>
    %77 = arith.cmpi slt, %75, %76 : vector<2x1xi32>
    %c-2147483648_i32_33 = arith.constant -2147483648 : i32
    %78 = vector.broadcast %c-2147483648_i32_33 : i32 to vector<2x1xi32>
    %79 = arith.subi %78, %75 : vector<2x1xi32>
    %80 = arith.select %77, %79, %75 : vector<2x1xi1>, vector<2x1xi32>
    %81 = tpu.bitcast %80 : vector<2x1xi32> -> vector<2x1xf32>
    %82 = vector.broadcast %81 : vector<2x1xf32> to vector<2x8xf32>
    %83 = arith.subf %58, %82 : vector<2x8xf32>
    %84 = math.exp %83 : vector<2x8xf32>
    %cst_34 = arith.constant dense<0.000000e+00> : vector<2xf32>
    %85 = vector.multi_reduction <add>, %84, %cst_34 [1] : vector<2x8xf32> to vector<2xf32>
    %86 = vector.shape_cast %85 : vector<2xf32> to vector<2x1xf32>
    %87 = math.log %86 : vector<2x1xf32>
    %88 = arith.addf %31, %87 : vector<2x1xf32>
    %89 = arith.mulf %84, %83 : vector<2x8xf32>
    %cst_35 = arith.constant dense<0.000000e+00> : vector<2xf32>
    %90 = vector.multi_reduction <add>, %89, %cst_35 [1] : vector<2x8xf32> to vector<2xf32>
    %91 = vector.shape_cast %90 : vector<2xf32> to vector<2x1xf32>
    %92 = arith.divf %91, %86 : vector<2x1xf32>
    %93 = arith.subf %88, %92 : vector<2x1xf32>
    %c0_i32_36 = arith.constant 0 : i32
    %94 = vector.broadcast %c0_i32_36 : i32 to vector<2x1xi32>
    %95 = arith.select %30, %94, %73 : vector<2x1xi1>, vector<2x1xi32>
    %c1_i32 = arith.constant 1 : i32
    %96 = vector.broadcast %c1_i32 : i32 to vector<2x128xi32>
    %97 = arith.cmpi eq, %12, %96 : vector<2x128xi32>
    %98 = vector.shape_cast %95 : vector<2x1xi32> to vector<2x1xi32>
    %99 = vector.broadcast %98 : vector<2x1xi32> to vector<2x128xi32>
    %100 = arith.select %97, %99, %32 : vector<2x128xi1>, vector<2x128xi32>
    %c0_i32_37 = arith.constant 0 : i32
    %101 = vector.broadcast %c0_i32_37 : i32 to vector<2x1xi32>
    %102 = arith.cmpi eq, %73, %101 : vector<2x1xi32>
    %103 = arith.ori %30, %102 : vector<2x1xi1>
    %c32_i32_38 = arith.constant 32 : i32
    %104 = vector.broadcast %c32_i32_38 : i32 to vector<2x1xi32>
    %105 = arith.addi %73, %104 : vector<2x1xi32>
    %106 = vector.broadcast %105 : vector<2x1xi32> to vector<2x48xi32>
    %107 = arith.cmpi eq, %11, %106 : vector<2x48xi32>
    %cst_39 = arith.constant 1.000000e+00 : f32
    %108 = vector.broadcast %cst_39 : f32 to vector<2x48xf32>
    %109 = arith.select %107, %108, %19 : vector<2x48xi1>, vector<2x48xf32>
    %110 = tpu.concatenate %56, %20 in 1 : vector<2x32xf32>, vector<2x16xf32> -> vector<2x48xf32>
    %111 = arith.addf %110, %109 : vector<2x48xf32>
    %cst_40 = arith.constant dense<0.000000e+00> : vector<2x128xf32>
    %112 = tpu.matmul %111, %3, %cst_40 {dimension_numbers = #tpu.dot_dimension_numbers<[1], [0], [0], [1], [0, 0, 1, 1], [], []>} : vector<2x48xf32>, vector<48x128xf32>, vector<2x128xf32> -> vector<2x128xf32>
    %113 = arith.negf %112 : vector<2x128xf32>
    %114 = math.exp %113 : vector<2x128xf32>
    %cst_41 = arith.constant 1.000000e+00 : f32
    %115 = vector.broadcast %cst_41 : f32 to vector<2x128xf32>
    %116 = arith.addf %115, %114 : vector<2x128xf32>
    %117 = arith.divf %115, %116 : vector<2x128xf32>
    %118 = math.tanh %112 : vector<2x128xf32>
    %119 = vector.extract_strided_slice %117 {offsets = [0, 32], sizes = [2, 32], strides = [1, 1]} : vector<2x128xf32> to vector<2x32xf32>
    %120 = arith.mulf %119, %53 : vector<2x32xf32>
    %121 = vector.extract_strided_slice %117 {offsets = [0, 0], sizes = [2, 32], strides = [1, 1]} : vector<2x128xf32> to vector<2x32xf32>
    %122 = vector.extract_strided_slice %118 {offsets = [0, 64], sizes = [2, 32], strides = [1, 1]} : vector<2x128xf32> to vector<2x32xf32>
    %123 = arith.mulf %121, %122 : vector<2x32xf32>
    %124 = arith.addf %120, %123 : vector<2x32xf32>
    %125 = vector.extract_strided_slice %117 {offsets = [0, 96], sizes = [2, 32], strides = [1, 1]} : vector<2x128xf32> to vector<2x32xf32>
    %126 = math.tanh %124 : vector<2x32xf32>
    %127 = arith.mulf %125, %126 : vector<2x32xf32>
    %cst_42 = arith.constant dense<0.000000e+00> : vector<2x8xf32>
    %128 = tpu.matmul %127, %4, %cst_42 {dimension_numbers = #tpu.dot_dimension_numbers<[1], [0], [0], [1], [0, 0, 1, 1], [], []>} : vector<2x32xf32>, vector<32x8xf32>, vector<2x8xf32> -> vector<2x8xf32>
    %129 = arith.addf %128, %7 : vector<2x8xf32>
    %130 = tpu.bitcast %129 : vector<2x8xf32> -> vector<2x8xi32>
    %c0_i32_43 = arith.constant 0 : i32
    %131 = vector.broadcast %c0_i32_43 : i32 to vector<2x8xi32>
    %132 = arith.cmpi slt, %130, %131 : vector<2x8xi32>
    %c-2147483648_i32_44 = arith.constant -2147483648 : i32
    %133 = vector.broadcast %c-2147483648_i32_44 : i32 to vector<2x8xi32>
    %134 = arith.subi %133, %130 : vector<2x8xi32>
    %135 = arith.select %132, %134, %130 : vector<2x8xi1>, vector<2x8xi32>
    %c-8_i32_45 = arith.constant -8 : i32
    %136 = vector.broadcast %c-8_i32_45 : i32 to vector<2x8xi32>
    %137 = arith.andi %135, %136 : vector<2x8xi32>
    %138 = arith.ori %137, %15 : vector<2x8xi32>
    %cst_46 = arith.constant dense<-2147483648> : vector<2xi32>
    %139 = vector.multi_reduction <maxsi>, %138, %cst_46 [1] : vector<2x8xi32> to vector<2xi32>
    %140 = vector.shape_cast %139 : vector<2xi32> to vector<2x1xi32>
    %c7_i32_47 = arith.constant 7 : i32
    %141 = vector.broadcast %c7_i32_47 : i32 to vector<2x1xi32>
    %142 = arith.andi %140, %141 : vector<2x1xi32>
    %c7_i32_48 = arith.constant 7 : i32
    %143 = vector.broadcast %c7_i32_48 : i32 to vector<2x1xi32>
    %144 = arith.subi %143, %142 : vector<2x1xi32>
    %c-8_i32_49 = arith.constant -8 : i32
    %145 = vector.broadcast %c-8_i32_49 : i32 to vector<2x1xi32>
    %146 = arith.andi %140, %145 : vector<2x1xi32>
    %c0_i32_50 = arith.constant 0 : i32
    %147 = vector.broadcast %c0_i32_50 : i32 to vector<2x1xi32>
    %148 = arith.cmpi slt, %146, %147 : vector<2x1xi32>
    %c-2147483648_i32_51 = arith.constant -2147483648 : i32
    %149 = vector.broadcast %c-2147483648_i32_51 : i32 to vector<2x1xi32>
    %150 = arith.subi %149, %146 : vector<2x1xi32>
    %151 = arith.select %148, %150, %146 : vector<2x1xi1>, vector<2x1xi32>
    %152 = tpu.bitcast %151 : vector<2x1xi32> -> vector<2x1xf32>
    %153 = vector.broadcast %152 : vector<2x1xf32> to vector<2x8xf32>
    %154 = arith.subf %129, %153 : vector<2x8xf32>
    %155 = math.exp %154 : vector<2x8xf32>
    %cst_52 = arith.constant dense<0.000000e+00> : vector<2xf32>
    %156 = vector.multi_reduction <add>, %155, %cst_52 [1] : vector<2x8xf32> to vector<2xf32>
    %157 = vector.shape_cast %156 : vector<2xf32> to vector<2x1xf32>
    %158 = math.log %157 : vector<2x1xf32>
    %159 = arith.addf %93, %158 : vector<2x1xf32>
    %160 = arith.mulf %155, %154 : vector<2x8xf32>
    %cst_53 = arith.constant dense<0.000000e+00> : vector<2xf32>
    %161 = vector.multi_reduction <add>, %160, %cst_53 [1] : vector<2x8xf32> to vector<2xf32>
    %162 = vector.shape_cast %161 : vector<2xf32> to vector<2x1xf32>
    %163 = arith.divf %162, %157 : vector<2x1xf32>
    %164 = arith.subf %159, %163 : vector<2x1xf32>
    %c0_i32_54 = arith.constant 0 : i32
    %165 = vector.broadcast %c0_i32_54 : i32 to vector<2x1xi32>
    %166 = arith.select %103, %165, %144 : vector<2x1xi1>, vector<2x1xi32>
    %c2_i32 = arith.constant 2 : i32
    %167 = vector.broadcast %c2_i32 : i32 to vector<2x128xi32>
    %168 = arith.cmpi eq, %12, %167 : vector<2x128xi32>
    %169 = vector.shape_cast %166 : vector<2x1xi32> to vector<2x1xi32>
    %170 = vector.broadcast %169 : vector<2x1xi32> to vector<2x128xi32>
    %171 = arith.select %168, %170, %100 : vector<2x128xi1>, vector<2x128xi32>
    %c0_i32_55 = arith.constant 0 : i32
    %172 = vector.broadcast %c0_i32_55 : i32 to vector<2x1xi32>
    %173 = arith.cmpi eq, %144, %172 : vector<2x1xi32>
    %174 = arith.ori %103, %173 : vector<2x1xi1>
    %c32_i32_56 = arith.constant 32 : i32
    %175 = vector.broadcast %c32_i32_56 : i32 to vector<2x1xi32>
    %176 = arith.addi %144, %175 : vector<2x1xi32>
    %177 = vector.broadcast %176 : vector<2x1xi32> to vector<2x48xi32>
    %178 = arith.cmpi eq, %11, %177 : vector<2x48xi32>
    %cst_57 = arith.constant 1.000000e+00 : f32
    %179 = vector.broadcast %cst_57 : f32 to vector<2x48xf32>
    %180 = arith.select %178, %179, %19 : vector<2x48xi1>, vector<2x48xf32>
    %181 = tpu.concatenate %127, %20 in 1 : vector<2x32xf32>, vector<2x16xf32> -> vector<2x48xf32>
    %182 = arith.addf %181, %180 : vector<2x48xf32>
    %cst_58 = arith.constant dense<0.000000e+00> : vector<2x128xf32>
    %183 = tpu.matmul %182, %3, %cst_58 {dimension_numbers = #tpu.dot_dimension_numbers<[1], [0], [0], [1], [0, 0, 1, 1], [], []>} : vector<2x48xf32>, vector<48x128xf32>, vector<2x128xf32> -> vector<2x128xf32>
    %184 = arith.negf %183 : vector<2x128xf32>
    %185 = math.exp %184 : vector<2x128xf32>
    %cst_59 = arith.constant 1.000000e+00 : f32
    %186 = vector.broadcast %cst_59 : f32 to vector<2x128xf32>
    %187 = arith.addf %186, %185 : vector<2x128xf32>
    %188 = arith.divf %186, %187 : vector<2x128xf32>
    %189 = math.tanh %183 : vector<2x128xf32>
    %190 = vector.extract_strided_slice %188 {offsets = [0, 32], sizes = [2, 32], strides = [1, 1]} : vector<2x128xf32> to vector<2x32xf32>
    %191 = arith.mulf %190, %124 : vector<2x32xf32>
    %192 = vector.extract_strided_slice %188 {offsets = [0, 0], sizes = [2, 32], strides = [1, 1]} : vector<2x128xf32> to vector<2x32xf32>
    %193 = vector.extract_strided_slice %189 {offsets = [0, 64], sizes = [2, 32], strides = [1, 1]} : vector<2x128xf32> to vector<2x32xf32>
    %194 = arith.mulf %192, %193 : vector<2x32xf32>
    %195 = arith.addf %191, %194 : vector<2x32xf32>
    %196 = vector.extract_strided_slice %188 {offsets = [0, 96], sizes = [2, 32], strides = [1, 1]} : vector<2x128xf32> to vector<2x32xf32>
    %197 = math.tanh %195 : vector<2x32xf32>
    %198 = arith.mulf %196, %197 : vector<2x32xf32>
    %cst_60 = arith.constant dense<0.000000e+00> : vector<2x8xf32>
    %199 = tpu.matmul %198, %4, %cst_60 {dimension_numbers = #tpu.dot_dimension_numbers<[1], [0], [0], [1], [0, 0, 1, 1], [], []>} : vector<2x32xf32>, vector<32x8xf32>, vector<2x8xf32> -> vector<2x8xf32>
    %200 = arith.addf %199, %7 : vector<2x8xf32>
    %201 = tpu.bitcast %200 : vector<2x8xf32> -> vector<2x8xi32>
    %c0_i32_61 = arith.constant 0 : i32
    %202 = vector.broadcast %c0_i32_61 : i32 to vector<2x8xi32>
    %203 = arith.cmpi slt, %201, %202 : vector<2x8xi32>
    %c-2147483648_i32_62 = arith.constant -2147483648 : i32
    %204 = vector.broadcast %c-2147483648_i32_62 : i32 to vector<2x8xi32>
    %205 = arith.subi %204, %201 : vector<2x8xi32>
    %206 = arith.select %203, %205, %201 : vector<2x8xi1>, vector<2x8xi32>
    %c-8_i32_63 = arith.constant -8 : i32
    %207 = vector.broadcast %c-8_i32_63 : i32 to vector<2x8xi32>
    %208 = arith.andi %206, %207 : vector<2x8xi32>
    %209 = arith.ori %208, %15 : vector<2x8xi32>
    %cst_64 = arith.constant dense<-2147483648> : vector<2xi32>
    %210 = vector.multi_reduction <maxsi>, %209, %cst_64 [1] : vector<2x8xi32> to vector<2xi32>
    %211 = vector.shape_cast %210 : vector<2xi32> to vector<2x1xi32>
    %c7_i32_65 = arith.constant 7 : i32
    %212 = vector.broadcast %c7_i32_65 : i32 to vector<2x1xi32>
    %213 = arith.andi %211, %212 : vector<2x1xi32>
    %c7_i32_66 = arith.constant 7 : i32
    %214 = vector.broadcast %c7_i32_66 : i32 to vector<2x1xi32>
    %215 = arith.subi %214, %213 : vector<2x1xi32>
    %c-8_i32_67 = arith.constant -8 : i32
    %216 = vector.broadcast %c-8_i32_67 : i32 to vector<2x1xi32>
    %217 = arith.andi %211, %216 : vector<2x1xi32>
    %c0_i32_68 = arith.constant 0 : i32
    %218 = vector.broadcast %c0_i32_68 : i32 to vector<2x1xi32>
    %219 = arith.cmpi slt, %217, %218 : vector<2x1xi32>
    %c-2147483648_i32_69 = arith.constant -2147483648 : i32
    %220 = vector.broadcast %c-2147483648_i32_69 : i32 to vector<2x1xi32>
    %221 = arith.subi %220, %217 : vector<2x1xi32>
    %222 = arith.select %219, %221, %217 : vector<2x1xi1>, vector<2x1xi32>
    %223 = tpu.bitcast %222 : vector<2x1xi32> -> vector<2x1xf32>
    %224 = vector.broadcast %223 : vector<2x1xf32> to vector<2x8xf32>
    %225 = arith.subf %200, %224 : vector<2x8xf32>
    %226 = math.exp %225 : vector<2x8xf32>
    %cst_70 = arith.constant dense<0.000000e+00> : vector<2xf32>
    %227 = vector.multi_reduction <add>, %226, %cst_70 [1] : vector<2x8xf32> to vector<2xf32>
    %228 = vector.shape_cast %227 : vector<2xf32> to vector<2x1xf32>
    %229 = math.log %228 : vector<2x1xf32>
    %230 = arith.addf %164, %229 : vector<2x1xf32>
    %231 = arith.mulf %226, %225 : vector<2x8xf32>
    %cst_71 = arith.constant dense<0.000000e+00> : vector<2xf32>
    %232 = vector.multi_reduction <add>, %231, %cst_71 [1] : vector<2x8xf32> to vector<2xf32>
    %233 = vector.shape_cast %232 : vector<2xf32> to vector<2x1xf32>
    %234 = arith.divf %233, %228 : vector<2x1xf32>
    %235 = arith.subf %230, %234 : vector<2x1xf32>
    %c0_i32_72 = arith.constant 0 : i32
    %236 = vector.broadcast %c0_i32_72 : i32 to vector<2x1xi32>
    %237 = arith.select %174, %236, %215 : vector<2x1xi1>, vector<2x1xi32>
    %c3_i32 = arith.constant 3 : i32
    %238 = vector.broadcast %c3_i32 : i32 to vector<2x128xi32>
    %239 = arith.cmpi eq, %12, %238 : vector<2x128xi32>
    %240 = vector.shape_cast %237 : vector<2x1xi32> to vector<2x1xi32>
    %241 = vector.broadcast %240 : vector<2x1xi32> to vector<2x128xi32>
    %242 = arith.select %239, %241, %171 : vector<2x128xi1>, vector<2x128xi32>
    %c0_i32_73 = arith.constant 0 : i32
    %243 = vector.broadcast %c0_i32_73 : i32 to vector<2x1xi32>
    %244 = arith.cmpi eq, %215, %243 : vector<2x1xi32>
    %245 = arith.ori %174, %244 : vector<2x1xi1>
    %c32_i32_74 = arith.constant 32 : i32
    %246 = vector.broadcast %c32_i32_74 : i32 to vector<2x1xi32>
    %247 = arith.addi %215, %246 : vector<2x1xi32>
    %248 = vector.broadcast %247 : vector<2x1xi32> to vector<2x48xi32>
    %249 = arith.cmpi eq, %11, %248 : vector<2x48xi32>
    %cst_75 = arith.constant 1.000000e+00 : f32
    %250 = vector.broadcast %cst_75 : f32 to vector<2x48xf32>
    %251 = arith.select %249, %250, %19 : vector<2x48xi1>, vector<2x48xf32>
    %252 = tpu.concatenate %198, %20 in 1 : vector<2x32xf32>, vector<2x16xf32> -> vector<2x48xf32>
    %253 = arith.addf %252, %251 : vector<2x48xf32>
    %cst_76 = arith.constant dense<0.000000e+00> : vector<2x128xf32>
    %254 = tpu.matmul %253, %3, %cst_76 {dimension_numbers = #tpu.dot_dimension_numbers<[1], [0], [0], [1], [0, 0, 1, 1], [], []>} : vector<2x48xf32>, vector<48x128xf32>, vector<2x128xf32> -> vector<2x128xf32>
    %255 = arith.negf %254 : vector<2x128xf32>
    %256 = math.exp %255 : vector<2x128xf32>
    %cst_77 = arith.constant 1.000000e+00 : f32
    %257 = vector.broadcast %cst_77 : f32 to vector<2x128xf32>
    %258 = arith.addf %257, %256 : vector<2x128xf32>
    %259 = arith.divf %257, %258 : vector<2x128xf32>
    %260 = math.tanh %254 : vector<2x128xf32>
    %261 = vector.extract_strided_slice %259 {offsets = [0, 32], sizes = [2, 32], strides = [1, 1]} : vector<2x128xf32> to vector<2x32xf32>
    %262 = arith.mulf %261, %195 : vector<2x32xf32>
    %263 = vector.extract_strided_slice %259 {offsets = [0, 0], sizes = [2, 32], strides = [1, 1]} : vector<2x128xf32> to vector<2x32xf32>
    %264 = vector.extract_strided_slice %260 {offsets = [0, 64], sizes = [2, 32], strides = [1, 1]} : vector<2x128xf32> to vector<2x32xf32>
    %265 = arith.mulf %263, %264 : vector<2x32xf32>
    %266 = arith.addf %262, %265 : vector<2x32xf32>
    %267 = vector.extract_strided_slice %259 {offsets = [0, 96], sizes = [2, 32], strides = [1, 1]} : vector<2x128xf32> to vector<2x32xf32>
    %268 = math.tanh %266 : vector<2x32xf32>
    %269 = arith.mulf %267, %268 : vector<2x32xf32>
    %cst_78 = arith.constant dense<0.000000e+00> : vector<2x8xf32>
    %270 = tpu.matmul %269, %4, %cst_78 {dimension_numbers = #tpu.dot_dimension_numbers<[1], [0], [0], [1], [0, 0, 1, 1], [], []>} : vector<2x32xf32>, vector<32x8xf32>, vector<2x8xf32> -> vector<2x8xf32>
    %271 = arith.addf %270, %7 : vector<2x8xf32>
    %272 = tpu.bitcast %271 : vector<2x8xf32> -> vector<2x8xi32>
    %c0_i32_79 = arith.constant 0 : i32
    %273 = vector.broadcast %c0_i32_79 : i32 to vector<2x8xi32>
    %274 = arith.cmpi slt, %272, %273 : vector<2x8xi32>
    %c-2147483648_i32_80 = arith.constant -2147483648 : i32
    %275 = vector.broadcast %c-2147483648_i32_80 : i32 to vector<2x8xi32>
    %276 = arith.subi %275, %272 : vector<2x8xi32>
    %277 = arith.select %274, %276, %272 : vector<2x8xi1>, vector<2x8xi32>
    %c-8_i32_81 = arith.constant -8 : i32
    %278 = vector.broadcast %c-8_i32_81 : i32 to vector<2x8xi32>
    %279 = arith.andi %277, %278 : vector<2x8xi32>
    %280 = arith.ori %279, %15 : vector<2x8xi32>
    %cst_82 = arith.constant dense<-2147483648> : vector<2xi32>
    %281 = vector.multi_reduction <maxsi>, %280, %cst_82 [1] : vector<2x8xi32> to vector<2xi32>
    %282 = vector.shape_cast %281 : vector<2xi32> to vector<2x1xi32>
    %c7_i32_83 = arith.constant 7 : i32
    %283 = vector.broadcast %c7_i32_83 : i32 to vector<2x1xi32>
    %284 = arith.andi %282, %283 : vector<2x1xi32>
    %c7_i32_84 = arith.constant 7 : i32
    %285 = vector.broadcast %c7_i32_84 : i32 to vector<2x1xi32>
    %286 = arith.subi %285, %284 : vector<2x1xi32>
    %c-8_i32_85 = arith.constant -8 : i32
    %287 = vector.broadcast %c-8_i32_85 : i32 to vector<2x1xi32>
    %288 = arith.andi %282, %287 : vector<2x1xi32>
    %c0_i32_86 = arith.constant 0 : i32
    %289 = vector.broadcast %c0_i32_86 : i32 to vector<2x1xi32>
    %290 = arith.cmpi slt, %288, %289 : vector<2x1xi32>
    %c-2147483648_i32_87 = arith.constant -2147483648 : i32
    %291 = vector.broadcast %c-2147483648_i32_87 : i32 to vector<2x1xi32>
    %292 = arith.subi %291, %288 : vector<2x1xi32>
    %293 = arith.select %290, %292, %288 : vector<2x1xi1>, vector<2x1xi32>
    %294 = tpu.bitcast %293 : vector<2x1xi32> -> vector<2x1xf32>
    %295 = vector.broadcast %294 : vector<2x1xf32> to vector<2x8xf32>
    %296 = arith.subf %271, %295 : vector<2x8xf32>
    %297 = math.exp %296 : vector<2x8xf32>
    %cst_88 = arith.constant dense<0.000000e+00> : vector<2xf32>
    %298 = vector.multi_reduction <add>, %297, %cst_88 [1] : vector<2x8xf32> to vector<2xf32>
    %299 = vector.shape_cast %298 : vector<2xf32> to vector<2x1xf32>
    %300 = math.log %299 : vector<2x1xf32>
    %301 = arith.addf %235, %300 : vector<2x1xf32>
    %302 = arith.mulf %297, %296 : vector<2x8xf32>
    %cst_89 = arith.constant dense<0.000000e+00> : vector<2xf32>
    %303 = vector.multi_reduction <add>, %302, %cst_89 [1] : vector<2x8xf32> to vector<2xf32>
    %304 = vector.shape_cast %303 : vector<2xf32> to vector<2x1xf32>
    %305 = arith.divf %304, %299 : vector<2x1xf32>
    %306 = arith.subf %301, %305 : vector<2x1xf32>
    %c0_i32_90 = arith.constant 0 : i32
    %307 = vector.broadcast %c0_i32_90 : i32 to vector<2x1xi32>
    %308 = arith.select %245, %307, %286 : vector<2x1xi1>, vector<2x1xi32>
    %c4_i32 = arith.constant 4 : i32
    %309 = vector.broadcast %c4_i32 : i32 to vector<2x128xi32>
    %310 = arith.cmpi eq, %12, %309 : vector<2x128xi32>
    %311 = vector.shape_cast %308 : vector<2x1xi32> to vector<2x1xi32>
    %312 = vector.broadcast %311 : vector<2x1xi32> to vector<2x128xi32>
    %313 = arith.select %310, %312, %242 : vector<2x128xi1>, vector<2x128xi32>
    %c0_i32_91 = arith.constant 0 : i32
    %314 = vector.broadcast %c0_i32_91 : i32 to vector<2x1xi32>
    %315 = arith.cmpi eq, %286, %314 : vector<2x1xi32>
    %316 = arith.ori %245, %315 : vector<2x1xi1>
    %c32_i32_92 = arith.constant 32 : i32
    %317 = vector.broadcast %c32_i32_92 : i32 to vector<2x1xi32>
    %318 = arith.addi %286, %317 : vector<2x1xi32>
    %319 = vector.broadcast %318 : vector<2x1xi32> to vector<2x48xi32>
    %320 = arith.cmpi eq, %11, %319 : vector<2x48xi32>
    %cst_93 = arith.constant 1.000000e+00 : f32
    %321 = vector.broadcast %cst_93 : f32 to vector<2x48xf32>
    %322 = arith.select %320, %321, %19 : vector<2x48xi1>, vector<2x48xf32>
    %323 = tpu.concatenate %269, %20 in 1 : vector<2x32xf32>, vector<2x16xf32> -> vector<2x48xf32>
    %324 = arith.addf %323, %322 : vector<2x48xf32>
    %cst_94 = arith.constant dense<0.000000e+00> : vector<2x128xf32>
    %325 = tpu.matmul %324, %3, %cst_94 {dimension_numbers = #tpu.dot_dimension_numbers<[1], [0], [0], [1], [0, 0, 1, 1], [], []>} : vector<2x48xf32>, vector<48x128xf32>, vector<2x128xf32> -> vector<2x128xf32>
    %326 = arith.negf %325 : vector<2x128xf32>
    %327 = math.exp %326 : vector<2x128xf32>
    %cst_95 = arith.constant 1.000000e+00 : f32
    %328 = vector.broadcast %cst_95 : f32 to vector<2x128xf32>
    %329 = arith.addf %328, %327 : vector<2x128xf32>
    %330 = arith.divf %328, %329 : vector<2x128xf32>
    %331 = math.tanh %325 : vector<2x128xf32>
    %332 = vector.extract_strided_slice %330 {offsets = [0, 32], sizes = [2, 32], strides = [1, 1]} : vector<2x128xf32> to vector<2x32xf32>
    %333 = arith.mulf %332, %266 : vector<2x32xf32>
    %334 = vector.extract_strided_slice %330 {offsets = [0, 0], sizes = [2, 32], strides = [1, 1]} : vector<2x128xf32> to vector<2x32xf32>
    %335 = vector.extract_strided_slice %331 {offsets = [0, 64], sizes = [2, 32], strides = [1, 1]} : vector<2x128xf32> to vector<2x32xf32>
    %336 = arith.mulf %334, %335 : vector<2x32xf32>
    %337 = arith.addf %333, %336 : vector<2x32xf32>
    %338 = vector.extract_strided_slice %330 {offsets = [0, 96], sizes = [2, 32], strides = [1, 1]} : vector<2x128xf32> to vector<2x32xf32>
    %339 = math.tanh %337 : vector<2x32xf32>
    %340 = arith.mulf %338, %339 : vector<2x32xf32>
    %cst_96 = arith.constant dense<0.000000e+00> : vector<2x8xf32>
    %341 = tpu.matmul %340, %4, %cst_96 {dimension_numbers = #tpu.dot_dimension_numbers<[1], [0], [0], [1], [0, 0, 1, 1], [], []>} : vector<2x32xf32>, vector<32x8xf32>, vector<2x8xf32> -> vector<2x8xf32>
    %342 = arith.addf %341, %7 : vector<2x8xf32>
    %343 = tpu.bitcast %342 : vector<2x8xf32> -> vector<2x8xi32>
    %c0_i32_97 = arith.constant 0 : i32
    %344 = vector.broadcast %c0_i32_97 : i32 to vector<2x8xi32>
    %345 = arith.cmpi slt, %343, %344 : vector<2x8xi32>
    %c-2147483648_i32_98 = arith.constant -2147483648 : i32
    %346 = vector.broadcast %c-2147483648_i32_98 : i32 to vector<2x8xi32>
    %347 = arith.subi %346, %343 : vector<2x8xi32>
    %348 = arith.select %345, %347, %343 : vector<2x8xi1>, vector<2x8xi32>
    %c-8_i32_99 = arith.constant -8 : i32
    %349 = vector.broadcast %c-8_i32_99 : i32 to vector<2x8xi32>
    %350 = arith.andi %348, %349 : vector<2x8xi32>
    %351 = arith.ori %350, %15 : vector<2x8xi32>
    %cst_100 = arith.constant dense<-2147483648> : vector<2xi32>
    %352 = vector.multi_reduction <maxsi>, %351, %cst_100 [1] : vector<2x8xi32> to vector<2xi32>
    %353 = vector.shape_cast %352 : vector<2xi32> to vector<2x1xi32>
    %c7_i32_101 = arith.constant 7 : i32
    %354 = vector.broadcast %c7_i32_101 : i32 to vector<2x1xi32>
    %355 = arith.andi %353, %354 : vector<2x1xi32>
    %c7_i32_102 = arith.constant 7 : i32
    %356 = vector.broadcast %c7_i32_102 : i32 to vector<2x1xi32>
    %357 = arith.subi %356, %355 : vector<2x1xi32>
    %c-8_i32_103 = arith.constant -8 : i32
    %358 = vector.broadcast %c-8_i32_103 : i32 to vector<2x1xi32>
    %359 = arith.andi %353, %358 : vector<2x1xi32>
    %c0_i32_104 = arith.constant 0 : i32
    %360 = vector.broadcast %c0_i32_104 : i32 to vector<2x1xi32>
    %361 = arith.cmpi slt, %359, %360 : vector<2x1xi32>
    %c-2147483648_i32_105 = arith.constant -2147483648 : i32
    %362 = vector.broadcast %c-2147483648_i32_105 : i32 to vector<2x1xi32>
    %363 = arith.subi %362, %359 : vector<2x1xi32>
    %364 = arith.select %361, %363, %359 : vector<2x1xi1>, vector<2x1xi32>
    %365 = tpu.bitcast %364 : vector<2x1xi32> -> vector<2x1xf32>
    %366 = vector.broadcast %365 : vector<2x1xf32> to vector<2x8xf32>
    %367 = arith.subf %342, %366 : vector<2x8xf32>
    %368 = math.exp %367 : vector<2x8xf32>
    %cst_106 = arith.constant dense<0.000000e+00> : vector<2xf32>
    %369 = vector.multi_reduction <add>, %368, %cst_106 [1] : vector<2x8xf32> to vector<2xf32>
    %370 = vector.shape_cast %369 : vector<2xf32> to vector<2x1xf32>
    %371 = math.log %370 : vector<2x1xf32>
    %372 = arith.addf %306, %371 : vector<2x1xf32>
    %373 = arith.mulf %368, %367 : vector<2x8xf32>
    %cst_107 = arith.constant dense<0.000000e+00> : vector<2xf32>
    %374 = vector.multi_reduction <add>, %373, %cst_107 [1] : vector<2x8xf32> to vector<2xf32>
    %375 = vector.shape_cast %374 : vector<2xf32> to vector<2x1xf32>
    %376 = arith.divf %375, %370 : vector<2x1xf32>
    %377 = arith.subf %372, %376 : vector<2x1xf32>
    %c0_i32_108 = arith.constant 0 : i32
    %378 = vector.broadcast %c0_i32_108 : i32 to vector<2x1xi32>
    %379 = arith.select %316, %378, %357 : vector<2x1xi1>, vector<2x1xi32>
    %c5_i32 = arith.constant 5 : i32
    %380 = vector.broadcast %c5_i32 : i32 to vector<2x128xi32>
    %381 = arith.cmpi eq, %12, %380 : vector<2x128xi32>
    %382 = vector.shape_cast %379 : vector<2x1xi32> to vector<2x1xi32>
    %383 = vector.broadcast %382 : vector<2x1xi32> to vector<2x128xi32>
    %384 = arith.select %381, %383, %313 : vector<2x128xi1>, vector<2x128xi32>
    %c0_109 = arith.constant 0 : index
    %c0_110 = arith.constant 0 : index
    %385 = vector.load %arg10[%c0_109, %c0_110] : memref<2x128xi32, #tpu.memory_space<vmem>>, vector<2x128xi32>
    tpu.vector_store %arg10[%c0_109, %c0_110], %384 {strides = array<i32>} : memref<2x128xi32, #tpu.memory_space<vmem>>, vector<2x128xi32>,
    %cst_111 = arith.constant 0.000000e+00 : f32
    %386 = vector.broadcast %cst_111 : f32 to vector<2x32xf32>
    %cst_112 = arith.constant 0.000000e+00 : f32
    %387 = vector.broadcast %cst_112 : f32 to vector<2x32xf32>
    %388 = tpu.concatenate %386, %20 in 1 : vector<2x32xf32>, vector<2x16xf32> -> vector<2x48xf32>
    %389 = arith.addf %388, %24 : vector<2x48xf32>
    %cst_113 = arith.constant dense<0.000000e+00> : vector<2x128xf32>
    %390 = tpu.matmul %389, %8, %cst_113 {dimension_numbers = #tpu.dot_dimension_numbers<[1], [0], [0], [1], [0, 0, 1, 1], [], []>} : vector<2x48xf32>, vector<48x128xf32>, vector<2x128xf32> -> vector<2x128xf32>
    %391 = arith.negf %390 : vector<2x128xf32>
    %392 = math.exp %391 : vector<2x128xf32>
    %cst_114 = arith.constant 1.000000e+00 : f32
    %393 = vector.broadcast %cst_114 : f32 to vector<2x128xf32>
    %394 = arith.addf %393, %392 : vector<2x128xf32>
    %395 = arith.divf %393, %394 : vector<2x128xf32>
    %396 = math.tanh %390 : vector<2x128xf32>
    %397 = vector.extract_strided_slice %395 {offsets = [0, 32], sizes = [2, 32], strides = [1, 1]} : vector<2x128xf32> to vector<2x32xf32>
    %398 = arith.mulf %397, %387 : vector<2x32xf32>
    %399 = vector.extract_strided_slice %395 {offsets = [0, 0], sizes = [2, 32], strides = [1, 1]} : vector<2x128xf32> to vector<2x32xf32>
    %400 = vector.extract_strided_slice %396 {offsets = [0, 64], sizes = [2, 32], strides = [1, 1]} : vector<2x128xf32> to vector<2x32xf32>
    %401 = arith.mulf %399, %400 : vector<2x32xf32>
    %402 = arith.addf %398, %401 : vector<2x32xf32>
    %403 = vector.extract_strided_slice %395 {offsets = [0, 96], sizes = [2, 32], strides = [1, 1]} : vector<2x128xf32> to vector<2x32xf32>
    %404 = math.tanh %402 : vector<2x32xf32>
    %405 = arith.mulf %403, %404 : vector<2x32xf32>
    %c1_i32_115 = arith.constant 1 : i32
    %406 = vector.broadcast %c1_i32_115 : i32 to vector<2x128xi32>
    %407 = arith.cmpi eq, %12, %406 : vector<2x128xi32>
    %c0_i32_116 = arith.constant 0 : i32
    %408 = vector.broadcast %c0_i32_116 : i32 to vector<2x128xi32>
    %409 = arith.select %407, %384, %408 : vector<2x128xi1>, vector<2x128xi32>
    %cst_117 = arith.constant dense<-2147483648> : vector<2xi32>
    %410 = vector.multi_reduction <maxsi>, %409, %cst_117 [1] : vector<2x128xi32> to vector<2xi32>
    %411 = vector.shape_cast %410 : vector<2xi32> to vector<2x1xi32>
    %c32_i32_118 = arith.constant 32 : i32
    %412 = vector.broadcast %c32_i32_118 : i32 to vector<2x1xi32>
    %413 = arith.addi %411, %412 : vector<2x1xi32>
    %414 = vector.broadcast %413 : vector<2x1xi32> to vector<2x48xi32>
    %415 = arith.cmpi eq, %11, %414 : vector<2x48xi32>
    %cst_119 = arith.constant 1.000000e+00 : f32
    %416 = vector.broadcast %cst_119 : f32 to vector<2x48xf32>
    %417 = arith.select %415, %416, %19 : vector<2x48xi1>, vector<2x48xf32>
    %418 = tpu.concatenate %405, %20 in 1 : vector<2x32xf32>, vector<2x16xf32> -> vector<2x48xf32>
    %419 = arith.addf %418, %417 : vector<2x48xf32>
    %cst_120 = arith.constant dense<0.000000e+00> : vector<2x128xf32>
    %420 = tpu.matmul %419, %8, %cst_120 {dimension_numbers = #tpu.dot_dimension_numbers<[1], [0], [0], [1], [0, 0, 1, 1], [], []>} : vector<2x48xf32>, vector<48x128xf32>, vector<2x128xf32> -> vector<2x128xf32>
    %421 = arith.negf %420 : vector<2x128xf32>
    %422 = math.exp %421 : vector<2x128xf32>
    %cst_121 = arith.constant 1.000000e+00 : f32
    %423 = vector.broadcast %cst_121 : f32 to vector<2x128xf32>
    %424 = arith.addf %423, %422 : vector<2x128xf32>
    %425 = arith.divf %423, %424 : vector<2x128xf32>
    %426 = math.tanh %420 : vector<2x128xf32>
    %427 = vector.extract_strided_slice %425 {offsets = [0, 32], sizes = [2, 32], strides = [1, 1]} : vector<2x128xf32> to vector<2x32xf32>
    %428 = arith.mulf %427, %402 : vector<2x32xf32>
    %429 = vector.extract_strided_slice %425 {offsets = [0, 0], sizes = [2, 32], strides = [1, 1]} : vector<2x128xf32> to vector<2x32xf32>
    %430 = vector.extract_strided_slice %426 {offsets = [0, 64], sizes = [2, 32], strides = [1, 1]} : vector<2x128xf32> to vector<2x32xf32>
    %431 = arith.mulf %429, %430 : vector<2x32xf32>
    %432 = arith.addf %428, %431 : vector<2x32xf32>
    %433 = vector.extract_strided_slice %425 {offsets = [0, 96], sizes = [2, 32], strides = [1, 1]} : vector<2x128xf32> to vector<2x32xf32>
    %434 = math.tanh %432 : vector<2x32xf32>
    %435 = arith.mulf %433, %434 : vector<2x32xf32>
    %c2_i32_122 = arith.constant 2 : i32
    %436 = vector.broadcast %c2_i32_122 : i32 to vector<2x128xi32>
    %437 = arith.cmpi eq, %12, %436 : vector<2x128xi32>
    %c0_i32_123 = arith.constant 0 : i32
    %438 = vector.broadcast %c0_i32_123 : i32 to vector<2x128xi32>
    %439 = arith.select %437, %384, %438 : vector<2x128xi1>, vector<2x128xi32>
    %cst_124 = arith.constant dense<-2147483648> : vector<2xi32>
    %440 = vector.multi_reduction <maxsi>, %439, %cst_124 [1] : vector<2x128xi32> to vector<2xi32>
    %441 = vector.shape_cast %440 : vector<2xi32> to vector<2x1xi32>
    %c32_i32_125 = arith.constant 32 : i32
    %442 = vector.broadcast %c32_i32_125 : i32 to vector<2x1xi32>
    %443 = arith.addi %441, %442 : vector<2x1xi32>
    %444 = vector.broadcast %443 : vector<2x1xi32> to vector<2x48xi32>
    %445 = arith.cmpi eq, %11, %444 : vector<2x48xi32>
    %cst_126 = arith.constant 1.000000e+00 : f32
    %446 = vector.broadcast %cst_126 : f32 to vector<2x48xf32>
    %447 = arith.select %445, %446, %19 : vector<2x48xi1>, vector<2x48xf32>
    %448 = tpu.concatenate %435, %20 in 1 : vector<2x32xf32>, vector<2x16xf32> -> vector<2x48xf32>
    %449 = arith.addf %448, %447 : vector<2x48xf32>
    %cst_127 = arith.constant dense<0.000000e+00> : vector<2x128xf32>
    %450 = tpu.matmul %449, %8, %cst_127 {dimension_numbers = #tpu.dot_dimension_numbers<[1], [0], [0], [1], [0, 0, 1, 1], [], []>} : vector<2x48xf32>, vector<48x128xf32>, vector<2x128xf32> -> vector<2x128xf32>
    %451 = arith.negf %450 : vector<2x128xf32>
    %452 = math.exp %451 : vector<2x128xf32>
    %cst_128 = arith.constant 1.000000e+00 : f32
    %453 = vector.broadcast %cst_128 : f32 to vector<2x128xf32>
    %454 = arith.addf %453, %452 : vector<2x128xf32>
    %455 = arith.divf %453, %454 : vector<2x128xf32>
    %456 = math.tanh %450 : vector<2x128xf32>
    %457 = vector.extract_strided_slice %455 {offsets = [0, 32], sizes = [2, 32], strides = [1, 1]} : vector<2x128xf32> to vector<2x32xf32>
    %458 = arith.mulf %457, %432 : vector<2x32xf32>
    %459 = vector.extract_strided_slice %455 {offsets = [0, 0], sizes = [2, 32], strides = [1, 1]} : vector<2x128xf32> to vector<2x32xf32>
    %460 = vector.extract_strided_slice %456 {offsets = [0, 64], sizes = [2, 32], strides = [1, 1]} : vector<2x128xf32> to vector<2x32xf32>
    %461 = arith.mulf %459, %460 : vector<2x32xf32>
    %462 = arith.addf %458, %461 : vector<2x32xf32>
    %463 = vector.extract_strided_slice %455 {offsets = [0, 96], sizes = [2, 32], strides = [1, 1]} : vector<2x128xf32> to vector<2x32xf32>
    %464 = math.tanh %462 : vector<2x32xf32>
    %465 = arith.mulf %463, %464 : vector<2x32xf32>
    %c3_i32_129 = arith.constant 3 : i32
    %466 = vector.broadcast %c3_i32_129 : i32 to vector<2x128xi32>
    %467 = arith.cmpi eq, %12, %466 : vector<2x128xi32>
    %c0_i32_130 = arith.constant 0 : i32
    %468 = vector.broadcast %c0_i32_130 : i32 to vector<2x128xi32>
    %469 = arith.select %467, %384, %468 : vector<2x128xi1>, vector<2x128xi32>
    %cst_131 = arith.constant dense<-2147483648> : vector<2xi32>
    %470 = vector.multi_reduction <maxsi>, %469, %cst_131 [1] : vector<2x128xi32> to vector<2xi32>
    %471 = vector.shape_cast %470 : vector<2xi32> to vector<2x1xi32>
    %c32_i32_132 = arith.constant 32 : i32
    %472 = vector.broadcast %c32_i32_132 : i32 to vector<2x1xi32>
    %473 = arith.addi %471, %472 : vector<2x1xi32>
    %474 = vector.broadcast %473 : vector<2x1xi32> to vector<2x48xi32>
    %475 = arith.cmpi eq, %11, %474 : vector<2x48xi32>
    %cst_133 = arith.constant 1.000000e+00 : f32
    %476 = vector.broadcast %cst_133 : f32 to vector<2x48xf32>
    %477 = arith.select %475, %476, %19 : vector<2x48xi1>, vector<2x48xf32>
    %478 = tpu.concatenate %465, %20 in 1 : vector<2x32xf32>, vector<2x16xf32> -> vector<2x48xf32>
    %479 = arith.addf %478, %477 : vector<2x48xf32>
    %cst_134 = arith.constant dense<0.000000e+00> : vector<2x128xf32>
    %480 = tpu.matmul %479, %8, %cst_134 {dimension_numbers = #tpu.dot_dimension_numbers<[1], [0], [0], [1], [0, 0, 1, 1], [], []>} : vector<2x48xf32>, vector<48x128xf32>, vector<2x128xf32> -> vector<2x128xf32>
    %481 = arith.negf %480 : vector<2x128xf32>
    %482 = math.exp %481 : vector<2x128xf32>
    %cst_135 = arith.constant 1.000000e+00 : f32
    %483 = vector.broadcast %cst_135 : f32 to vector<2x128xf32>
    %484 = arith.addf %483, %482 : vector<2x128xf32>
    %485 = arith.divf %483, %484 : vector<2x128xf32>
    %486 = math.tanh %480 : vector<2x128xf32>
    %487 = vector.extract_strided_slice %485 {offsets = [0, 32], sizes = [2, 32], strides = [1, 1]} : vector<2x128xf32> to vector<2x32xf32>
    %488 = arith.mulf %487, %462 : vector<2x32xf32>
    %489 = vector.extract_strided_slice %485 {offsets = [0, 0], sizes = [2, 32], strides = [1, 1]} : vector<2x128xf32> to vector<2x32xf32>
    %490 = vector.extract_strided_slice %486 {offsets = [0, 64], sizes = [2, 32], strides = [1, 1]} : vector<2x128xf32> to vector<2x32xf32>
    %491 = arith.mulf %489, %490 : vector<2x32xf32>
    %492 = arith.addf %488, %491 : vector<2x32xf32>
    %493 = vector.extract_strided_slice %485 {offsets = [0, 96], sizes = [2, 32], strides = [1, 1]} : vector<2x128xf32> to vector<2x32xf32>
    %494 = math.tanh %492 : vector<2x32xf32>
    %495 = arith.mulf %493, %494 : vector<2x32xf32>
    %c4_i32_136 = arith.constant 4 : i32
    %496 = vector.broadcast %c4_i32_136 : i32 to vector<2x128xi32>
    %497 = arith.cmpi eq, %12, %496 : vector<2x128xi32>
    %c0_i32_137 = arith.constant 0 : i32
    %498 = vector.broadcast %c0_i32_137 : i32 to vector<2x128xi32>
    %499 = arith.select %497, %384, %498 : vector<2x128xi1>, vector<2x128xi32>
    %cst_138 = arith.constant dense<-2147483648> : vector<2xi32>
    %500 = vector.multi_reduction <maxsi>, %499, %cst_138 [1] : vector<2x128xi32> to vector<2xi32>
    %501 = vector.shape_cast %500 : vector<2xi32> to vector<2x1xi32>
    %c32_i32_139 = arith.constant 32 : i32
    %502 = vector.broadcast %c32_i32_139 : i32 to vector<2x1xi32>
    %503 = arith.addi %501, %502 : vector<2x1xi32>
    %504 = vector.broadcast %503 : vector<2x1xi32> to vector<2x48xi32>
    %505 = arith.cmpi eq, %11, %504 : vector<2x48xi32>
    %cst_140 = arith.constant 1.000000e+00 : f32
    %506 = vector.broadcast %cst_140 : f32 to vector<2x48xf32>
    %507 = arith.select %505, %506, %19 : vector<2x48xi1>, vector<2x48xf32>
    %508 = tpu.concatenate %495, %20 in 1 : vector<2x32xf32>, vector<2x16xf32> -> vector<2x48xf32>
    %509 = arith.addf %508, %507 : vector<2x48xf32>
    %cst_141 = arith.constant dense<0.000000e+00> : vector<2x128xf32>
    %510 = tpu.matmul %509, %8, %cst_141 {dimension_numbers = #tpu.dot_dimension_numbers<[1], [0], [0], [1], [0, 0, 1, 1], [], []>} : vector<2x48xf32>, vector<48x128xf32>, vector<2x128xf32> -> vector<2x128xf32>
    %511 = arith.negf %510 : vector<2x128xf32>
    %512 = math.exp %511 : vector<2x128xf32>
    %cst_142 = arith.constant 1.000000e+00 : f32
    %513 = vector.broadcast %cst_142 : f32 to vector<2x128xf32>
    %514 = arith.addf %513, %512 : vector<2x128xf32>
    %515 = arith.divf %513, %514 : vector<2x128xf32>
    %516 = math.tanh %510 : vector<2x128xf32>
    %517 = vector.extract_strided_slice %515 {offsets = [0, 32], sizes = [2, 32], strides = [1, 1]} : vector<2x128xf32> to vector<2x32xf32>
    %518 = arith.mulf %517, %492 : vector<2x32xf32>
    %519 = vector.extract_strided_slice %515 {offsets = [0, 0], sizes = [2, 32], strides = [1, 1]} : vector<2x128xf32> to vector<2x32xf32>
    %520 = vector.extract_strided_slice %516 {offsets = [0, 64], sizes = [2, 32], strides = [1, 1]} : vector<2x128xf32> to vector<2x32xf32>
    %521 = arith.mulf %519, %520 : vector<2x32xf32>
    %522 = arith.addf %518, %521 : vector<2x32xf32>
    %523 = vector.extract_strided_slice %515 {offsets = [0, 96], sizes = [2, 32], strides = [1, 1]} : vector<2x128xf32> to vector<2x32xf32>
    %524 = math.tanh %522 : vector<2x32xf32>
    %525 = arith.mulf %523, %524 : vector<2x32xf32>
    %c5_i32_143 = arith.constant 5 : i32
    %526 = vector.broadcast %c5_i32_143 : i32 to vector<2x128xi32>
    %527 = arith.cmpi eq, %12, %526 : vector<2x128xi32>
    %c0_i32_144 = arith.constant 0 : i32
    %528 = vector.broadcast %c0_i32_144 : i32 to vector<2x128xi32>
    %529 = arith.select %527, %384, %528 : vector<2x128xi1>, vector<2x128xi32>
    %cst_145 = arith.constant dense<-2147483648> : vector<2xi32>
    %530 = vector.multi_reduction <maxsi>, %529, %cst_145 [1] : vector<2x128xi32> to vector<2xi32>
    %531 = vector.shape_cast %530 : vector<2xi32> to vector<2x1xi32>
    %c32_i32_146 = arith.constant 32 : i32
    %532 = vector.broadcast %c32_i32_146 : i32 to vector<2x1xi32>
    %533 = arith.addi %531, %532 : vector<2x1xi32>
    %534 = vector.broadcast %533 : vector<2x1xi32> to vector<2x48xi32>
    %535 = arith.cmpi eq, %11, %534 : vector<2x48xi32>
    %cst_147 = arith.constant 1.000000e+00 : f32
    %536 = vector.broadcast %cst_147 : f32 to vector<2x48xf32>
    %537 = arith.select %535, %536, %19 : vector<2x48xi1>, vector<2x48xf32>
    %538 = tpu.concatenate %525, %20 in 1 : vector<2x32xf32>, vector<2x16xf32> -> vector<2x48xf32>
    %539 = arith.addf %538, %537 : vector<2x48xf32>
    %cst_148 = arith.constant dense<0.000000e+00> : vector<2x128xf32>
    %540 = tpu.matmul %539, %8, %cst_148 {dimension_numbers = #tpu.dot_dimension_numbers<[1], [0], [0], [1], [0, 0, 1, 1], [], []>} : vector<2x48xf32>, vector<48x128xf32>, vector<2x128xf32> -> vector<2x128xf32>
    %541 = arith.negf %540 : vector<2x128xf32>
    %542 = math.exp %541 : vector<2x128xf32>
    %cst_149 = arith.constant 1.000000e+00 : f32
    %543 = vector.broadcast %cst_149 : f32 to vector<2x128xf32>
    %544 = arith.addf %543, %542 : vector<2x128xf32>
    %545 = arith.divf %543, %544 : vector<2x128xf32>
    %546 = math.tanh %540 : vector<2x128xf32>
    %547 = vector.extract_strided_slice %545 {offsets = [0, 32], sizes = [2, 32], strides = [1, 1]} : vector<2x128xf32> to vector<2x32xf32>
    %548 = arith.mulf %547, %522 : vector<2x32xf32>
    %549 = vector.extract_strided_slice %545 {offsets = [0, 0], sizes = [2, 32], strides = [1, 1]} : vector<2x128xf32> to vector<2x32xf32>
    %550 = vector.extract_strided_slice %546 {offsets = [0, 64], sizes = [2, 32], strides = [1, 1]} : vector<2x128xf32> to vector<2x32xf32>
    %551 = arith.mulf %549, %550 : vector<2x32xf32>
    %552 = arith.addf %548, %551 : vector<2x32xf32>
    %553 = vector.extract_strided_slice %545 {offsets = [0, 96], sizes = [2, 32], strides = [1, 1]} : vector<2x128xf32> to vector<2x32xf32>
    %554 = math.tanh %552 : vector<2x32xf32>
    %555 = arith.mulf %553, %554 : vector<2x32xf32>
    %cst_150 = arith.constant dense<0.000000e+00> : vector<2x16xf32>
    %556 = tpu.matmul %555, %9, %cst_150 {dimension_numbers = #tpu.dot_dimension_numbers<[1], [0], [0], [1], [0, 0, 1, 1], [], []>} : vector<2x32xf32>, vector<32x16xf32>, vector<2x16xf32> -> vector<2x16xf32>
    %557 = vector.broadcast %10 : vector<1x16xf32> to vector<2x16xf32>
    %558 = arith.addf %556, %557 : vector<2x16xf32>
    %559 = arith.mulf %0, %558 : vector<2x16xf32>
    %cst_151 = arith.constant dense<0.000000e+00> : vector<2xf32>
    %560 = vector.multi_reduction <add>, %559, %cst_151 [1] : vector<2x16xf32> to vector<2xf32>
    %561 = vector.shape_cast %560 : vector<2xf32> to vector<2x1xf32>
    %cst_152 = arith.constant 0.000000e+00 : f32
    %562 = vector.broadcast %cst_152 : f32 to vector<2x1xf32>
    %cst_153 = arith.constant 0xFF800000 : f32
    %563 = vector.broadcast %cst_153 : f32 to vector<2x1xf32>
    %c0_154 = arith.constant 0 : index
    %c0_155 = arith.constant 0 : index
    %c0_156 = arith.constant 0 : index
    %564 = vector.load %arg1[%c0_154, %c0_155, %c0_156] : memref<3x2x16xf32, #tpu.memory_space<vmem>>, vector<3x2x16xf32>
    %565 = vector.extract_strided_slice %564 {offsets = [0, 0, 0], sizes = [1, 2, 16], strides = [1, 1, 1]} : vector<3x2x16xf32> to vector<1x2x16xf32>
    %566 = vector.shape_cast %565 : vector<1x2x16xf32> to vector<2x16xf32>
    %567 = arith.mulf %566, %558 : vector<2x16xf32>
    %cst_157 = arith.constant dense<0.000000e+00> : vector<2xf32>
    %568 = vector.multi_reduction <add>, %567, %cst_157 [1] : vector<2x16xf32> to vector<2xf32>
    %569 = vector.shape_cast %568 : vector<2xf32> to vector<2x1xf32>
    %cst_158 = arith.constant 1.000000e+00 : f32
    %570 = vector.broadcast %cst_158 : f32 to vector<2x1xf32>
    %571 = arith.subf %570, %561 : vector<2x1xf32>
    %572 = arith.addf %571, %569 : vector<2x1xf32>
    %cst_159 = arith.constant 0.000000e+00 : f32
    %573 = vector.broadcast %cst_159 : f32 to vector<2x1xf32>
    %574 = arith.maximumf %573, %572 : vector<2x1xf32>
    %575 = arith.addf %562, %574 : vector<2x1xf32>
    %576 = arith.maximumf %563, %569 : vector<2x1xf32>
    %577 = vector.extract_strided_slice %564 {offsets = [1, 0, 0], sizes = [1, 2, 16], strides = [1, 1, 1]} : vector<3x2x16xf32> to vector<1x2x16xf32>
    %578 = vector.shape_cast %577 : vector<1x2x16xf32> to vector<2x16xf32>
    %579 = arith.mulf %578, %558 : vector<2x16xf32>
    %cst_160 = arith.constant dense<0.000000e+00> : vector<2xf32>
    %580 = vector.multi_reduction <add>, %579, %cst_160 [1] : vector<2x16xf32> to vector<2xf32>
    %581 = vector.shape_cast %580 : vector<2xf32> to vector<2x1xf32>
    %cst_161 = arith.constant 1.000000e+00 : f32
    %582 = vector.broadcast %cst_161 : f32 to vector<2x1xf32>
    %583 = arith.subf %582, %561 : vector<2x1xf32>
    %584 = arith.addf %583, %581 : vector<2x1xf32>
    %cst_162 = arith.constant 0.000000e+00 : f32
    %585 = vector.broadcast %cst_162 : f32 to vector<2x1xf32>
    %586 = arith.maximumf %585, %584 : vector<2x1xf32>
    %587 = arith.addf %575, %586 : vector<2x1xf32>
    %588 = arith.maximumf %576, %581 : vector<2x1xf32>
    %589 = vector.extract_strided_slice %564 {offsets = [2, 0, 0], sizes = [1, 2, 16], strides = [1, 1, 1]} : vector<3x2x16xf32> to vector<1x2x16xf32>
    %590 = vector.shape_cast %589 : vector<1x2x16xf32> to vector<2x16xf32>
    %591 = arith.mulf %590, %558 : vector<2x16xf32>
    %cst_163 = arith.constant dense<0.000000e+00> : vector<2xf32>
    %592 = vector.multi_reduction <add>, %591, %cst_163 [1] : vector<2x16xf32> to vector<2xf32>
    %593 = vector.shape_cast %592 : vector<2xf32> to vector<2x1xf32>
    %cst_164 = arith.constant 1.000000e+00 : f32
    %594 = vector.broadcast %cst_164 : f32 to vector<2x1xf32>
    %595 = arith.subf %594, %561 : vector<2x1xf32>
    %596 = arith.addf %595, %593 : vector<2x1xf32>
    %cst_165 = arith.constant 0.000000e+00 : f32
    %597 = vector.broadcast %cst_165 : f32 to vector<2x1xf32>
    %598 = arith.maximumf %597, %596 : vector<2x1xf32>
    %599 = arith.addf %587, %598 : vector<2x1xf32>
    %600 = arith.maximumf %588, %593 : vector<2x1xf32>
    %601 = arith.cmpf oge, %561, %600 : vector<2x1xf32>
    %602 = arith.extui %601 : vector<2x1xi1> to vector<2x1xi32>
    %603 = arith.sitofp %602 : vector<2x1xi32> to vector<2x1xf32>
    %c0_i32_166 = arith.constant 0 : i32
    %604 = vector.broadcast %c0_i32_166 : i32 to vector<2x128xi32>
    %605 = arith.cmpi eq, %12, %604 : vector<2x128xi32>
    %cst_167 = arith.constant 0.000000e+00 : f32
    %606 = vector.shape_cast %599 : vector<2x1xf32> to vector<2x1xf32>
    %607 = vector.broadcast %606 : vector<2x1xf32> to vector<2x128xf32>
    %608 = vector.broadcast %cst_167 : f32 to vector<2x128xf32>
    %609 = arith.select %605, %607, %608 : vector<2x128xi1>, vector<2x128xf32>
    %c1_i32_168 = arith.constant 1 : i32
    %610 = vector.broadcast %c1_i32_168 : i32 to vector<2x128xi32>
    %611 = arith.cmpi eq, %12, %610 : vector<2x128xi32>
    %612 = vector.shape_cast %603 : vector<2x1xf32> to vector<2x1xf32>
    %613 = vector.broadcast %612 : vector<2x1xf32> to vector<2x128xf32>
    %614 = arith.select %611, %613, %609 : vector<2x128xi1>, vector<2x128xf32>
    %c2_i32_169 = arith.constant 2 : i32
    %615 = vector.broadcast %c2_i32_169 : i32 to vector<2x128xi32>
    %616 = arith.cmpi eq, %12, %615 : vector<2x128xi32>
    %617 = vector.shape_cast %377 : vector<2x1xf32> to vector<2x1xf32>
    %618 = vector.broadcast %617 : vector<2x1xf32> to vector<2x128xf32>
    %619 = arith.select %616, %618, %614 : vector<2x128xi1>, vector<2x128xf32>
    %c0_170 = arith.constant 0 : index
    %c0_171 = arith.constant 0 : index
    %620 = vector.load %arg11[%c0_170, %c0_171] : memref<2x128xf32, #tpu.memory_space<vmem>>, vector<2x128xf32>
    tpu.vector_store %arg11[%c0_170, %c0_171], %619 {strides = array<i32>} : memref<2x128xf32, #tpu.memory_space<vmem>>, vector<2x128xf32>,
    return
  }
}

</mosaic_0001>

<llo_original>
// kernel: model_forward.1
$region0: #{model_forward.1}
  #allocation0 [shape = 'u32[]', space=smem, size = 0x4, offset = 0x4, fixed_abs, tag = 'smem constant byte address 0x4 - core index']
  #allocation1 [shape = 'u32[144,128]{1,0:T(1,128)}', space=vmem, size = 0x12000, scoped, tag = 'internal scratch']
  %s0 = inlined_call_operand.vmem [shape: f32[2,16], index: 0, kind: input, shape index: {}]
  %s1 = inlined_call_operand.hbm [shape: f32[3,2,16], index: 1, kind: input, shape index: {}]
  %s2 = inlined_call_operand.hbm [shape: f32[16,32], index: 2, kind: input, shape index: {}]
  %s3 = inlined_call_operand.hbm [shape: f32[1,32], index: 3, kind: input, shape index: {}]
  %s4 = inlined_call_operand.vmem [shape: f32[48,128], index: 4, kind: input, shape index: {}]
  %s5 = inlined_call_operand.vmem [shape: f32[32,8], index: 5, kind: input, shape index: {}]
  %s6 = inlined_call_operand.hbm [shape: f32[1,8], index: 6, kind: input, shape index: {}]
  %s7 = inlined_call_operand.vmem [shape: f32[48,128], index: 7, kind: input, shape index: {}]
  %s8 = inlined_call_operand.vmem [shape: f32[32,16], index: 8, kind: input, shape index: {}]
  %s9 = inlined_call_operand.hbm [shape: f32[1,16], index: 9, kind: input, shape index: {}]
  %s10 = inlined_call_operand.hbm [shape: s32[2,128], index: 10, kind: output, shape index: {0}]
  %s11 = inlined_call_operand.vmem [shape: f32[2,128], index: 11, kind: output, shape index: {1}]
  %12 = xla_tuple %s10, %s11
  %s13 = sld [smem:[#allocation0]]
  $region78: #{model_forward.1} parent=0
    _
  %s15 = ssub.s32 1, %s13
  %s16 = scalar_select 0, %s15, %s13
  $region1: #{model_forward.1} parent=0
    #allocation2 [shape = 'u8[3072]{0}', space=vmem, size = 0xc00, scoped, tag = 'input window, operand 1, single buffered']
    #allocation3 [shape = 's32[1]{0}', space=sflag, size = 0x4, scoped, tag = 'scoped memory for model_forward.1']
    #allocation4 [shape = 's32[1]{0}', space=sflag, size = 0x4, scoped, tag = 'scoped memory for model_forward.1']
    #allocation5 [shape = 'u8[8192]{0}', space=vmem, size = 0x2000, scoped, tag = 'input window, operand 2, single buffered']
    #allocation6 [shape = 's32[1]{0}', space=sflag, size = 0x4, scoped, tag = 'scoped memory for model_forward.1']
    #allocation7 [shape = 'u8[512]{0}', space=vmem, size = 0x400, scoped, tag = 'input window, operand 3, single buffered']
    #allocation8 [shape = 'u8[512]{0}', space=vmem, size = 0x400, scoped, tag = 'input window, operand 6, single buffered']
    #allocation9 [shape = 's32[1]{0}', space=sflag, size = 0x4, scoped, tag = 'scoped memory for model_forward.1']
    #allocation10 [shape = 'u8[512]{0}', space=vmem, size = 0x400, scoped, tag = 'input window, operand 9, single buffered']
    #allocation11 [shape = 'u8[1024]{0}', space=vmem, size = 0x400, scoped, tag = 'output window, operand 0, single buffered']
    %17 = vsyncpa [#allocation3], 0
    %18 = vsyncpa [#allocation6], 0
    %19 = vsyncpa [#allocation9], 0
    %20 = vsyncpa [#allocation4], 0
    // Predicated region
    $region2: #{model_forward.1} parent=1 // pred_check
      _
    $region3: #{model_forward.1} parent=1 // pred_check_branch
      %22 = sbr.rel (0) target = $region5
    $region4: #{model_forward.1} parent=1 // pred_region
      _
    $region5: #{model_forward.1} parent=1 // pred_fallthru
      _
    // Predicated region
    $region6: #{model_forward.1} parent=1 // pred_check
      _
    $region7: #{model_forward.1} parent=1 // pred_check_branch
      %24 = sbr.rel (0) target = $region9
    $region8: #{model_forward.1} parent=1 // pred_region
      %s26 = ssub.s32 96, 96
      %27 = vsyncadd [#allocation3], %s26
      %s28 = sshll.u32 [#allocation2], 4
      %s29 = int_to_ptr.vmem [resolvable:$true] %s28
      %34 = dma.hbm_to_vmem [thread:$0]  %s1, 96, %s29, [#allocation3], 32, 32, 2
    $region9: #{model_forward.1} parent=1 // pred_fallthru
      _
    // Predicated region
    $region10: #{model_forward.1} parent=1 // pred_check
      _
    $region11: #{model_forward.1} parent=1 // pred_check_branch
      %36 = sbr.rel (0) target = $region13
    $region12: #{model_forward.1} parent=1 // pred_region
      %s38 = ssub.s32 256, 256
      %39 = vsyncadd [#allocation6], %s38
      %s40 = sshll.u32 [#allocation5], 4
      %s41 = int_to_ptr.vmem [resolvable:$true] %s40
      %46 = dma.hbm_to_vmem [thread:$0]  %s2, 256, %s41, [#allocation6], 128, 128, 8
    $region13: #{model_forward.1} parent=1 // pred_fallthru
      _
    // Predicated region
    $region14: #{model_forward.1} parent=1 // pred_check
      _
    $region15: #{model_forward.1} parent=1 // pred_check_branch
      %48 = sbr.rel (0) target = $region17
    $region16: #{model_forward.1} parent=1 // pred_region
      %s50 = ssub.s32 16, 16
      %51 = vsyncadd [#allocation6], %s50
      %s53 = sshll.u32 [#allocation7], 4
      %s54 = int_to_ptr.vmem [resolvable:$true] %s53
      %56 = dma.hbm_to_vmem [thread:$0]  %s3, 16, %s54, [#allocation6]
    $region17: #{model_forward.1} parent=1 // pred_fallthru
      _
    // Predicated region
    $region18: #{model_forward.1} parent=1 // pred_check
      _
    $region19: #{model_forward.1} parent=1 // pred_check_branch
      %58 = sbr.rel (0) target = $region21
    $region20: #{model_forward.1} parent=1 // pred_region
      _
    $region21: #{model_forward.1} parent=1 // pred_fallthru
      _
    // Predicated region
    $region22: #{model_forward.1} parent=1 // pred_check
      _
    $region23: #{model_forward.1} parent=1 // pred_check_branch
      %60 = sbr.rel (0) target = $region25
    $region24: #{model_forward.1} parent=1 // pred_region
      _
    $region25: #{model_forward.1} parent=1 // pred_fallthru
      _
    // Predicated region
    $region26: #{model_forward.1} parent=1 // pred_check
      _
    $region27: #{model_forward.1} parent=1 // pred_check_branch
      %62 = sbr.rel (0) target = $region29
    $region28: #{model_forward.1} parent=1 // pred_region
      %s64 = ssub.s32 16, 16
      %65 = vsyncadd [#allocation9], %s64
      %s67 = sshll.u32 [#allocation8], 4
      %s68 = int_to_ptr.vmem [resolvable:$true] %s67
      %70 = dma.hbm_to_vmem [thread:$0]  %s6, 16, %s68, [#allocation9]
    $region29: #{model_forward.1} parent=1 // pred_fallthru
      _
    // Predicated region
    $region30: #{model_forward.1} parent=1 // pred_check
      _
    $region31: #{model_forward.1} parent=1 // pred_check_branch
      %72 = sbr.rel (0) target = $region33
    $region32: #{model_forward.1} parent=1 // pred_region
      _
    $region33: #{model_forward.1} parent=1 // pred_fallthru
      _
    // Predicated region
    $region34: #{model_forward.1} parent=1 // pred_check
      _
    $region35: #{model_forward.1} parent=1 // pred_check_branch
      %74 = sbr.rel (0) target = $region37
    $region36: #{model_forward.1} parent=1 // pred_region
      _
    $region37: #{model_forward.1} parent=1 // pred_fallthru
      _
    // Predicated region
    $region38: #{model_forward.1} parent=1 // pred_check
      _
    $region39: #{model_forward.1} parent=1 // pred_check_branch
      %76 = sbr.rel (0) target = $region41
    $region40: #{model_forward.1} parent=1 // pred_region
      %s78 = ssub.s32 16, 16
      %79 = vsyncadd [#allocation9], %s78
      %s81 = sshll.u32 [#allocation10], 4
      %s82 = int_to_ptr.vmem [resolvable:$true] %s81
      %84 = dma.hbm_to_vmem [thread:$0]  %s9, 16, %s82, [#allocation9]
    $region41: #{model_forward.1} parent=1 // pred_fallthru
      _
    // Predicated region
    $region42: #{model_forward.1} parent=1 // pred_check
      _
    $region43: #{model_forward.1} parent=1 // pred_check_branch
      %86 = sbr.rel (0) target = $region45
    $region44: #{model_forward.1} parent=1 // pred_region
      %87 = dma.done [#allocation3], 96
    $region45: #{model_forward.1} parent=1 // pred_fallthru
      _
    // Predicated region
    $region46: #{model_forward.1} parent=1 // pred_check
      _
    $region47: #{model_forward.1} parent=1 // pred_check_branch
      %89 = sbr.rel (0) target = $region49
    $region48: #{model_forward.1} parent=1 // pred_region
      %90 = dma.done [#allocation6], 256
    $region49: #{model_forward.1} parent=1 // pred_fallthru
      _
    // Predicated region
    $region50: #{model_forward.1} parent=1 // pred_check
      _
    $region51: #{model_forward.1} parent=1 // pred_check_branch
      %92 = sbr.rel (0) target = $region53
    $region52: #{model_forward.1} parent=1 // pred_region
      %93 = dma.done [#allocation6], 16
    $region53: #{model_forward.1} parent=1 // pred_fallthru
      _
    // Predicated region
    $region54: #{model_forward.1} parent=1 // pred_check
      _
    $region55: #{model_forward.1} parent=1 // pred_check_branch
      %95 = sbr.rel (0) target = $region57
    $region56: #{model_forward.1} parent=1 // pred_region
      %96 = dma.done [#allocation9], 16
    $region57: #{model_forward.1} parent=1 // pred_fallthru
      _
    // Predicated region
    $region58: #{model_forward.1} parent=1 // pred_check
      _
    $region59: #{model_forward.1} parent=1 // pred_check_branch
      %98 = sbr.rel (0) target = $region61
    $region60: #{model_forward.1} parent=1 // pred_region
      %99 = dma.done [#allocation9], 16
    $region61: #{model_forward.1} parent=1 // pred_fallthru
      _
    %v100 = vld [vmem:[%s0] sm:$0x3]
    %v101 = vld [vmem:[#allocation5] sm:$0xff]
    %v102 = vld [vmem:[#allocation5 + $0x8] sm:$0xff]
    %v103 = vld [vmem:[#allocation7] sm:$0x1]
    %v104 = vld [vmem:[%s4] sm:$0xff]
    %v105 = vld [vmem:[%s4 + $0x8] sm:$0xff]
    %v106 = vld [vmem:[%s4 + $0x10] sm:$0xff]
    %v107 = vld [vmem:[%s4 + $0x18] sm:$0xff]
    %v108 = vld [vmem:[%s4 + $0x20] sm:$0xff]
    %v109 = vld [vmem:[%s4 + $0x28] sm:$0xff]
    %v110 = vld [vmem:[%s5] sm:$0xff]
    %v111 = vld [vmem:[%s5 + $0x8] sm:$0xff]
    %v112 = vld [vmem:[%s5 + $0x10] sm:$0xff]
    %v113 = vld [vmem:[%s5 + $0x18] sm:$0xff]
    %v114 = vld [vmem:[#allocation8] sm:$0x1]
    %v116 = vlaneseq
    %v117 = vshrl.u32 %v116, 7
    %v118 = vsub.s32 0, %v117
    %v119 = vrot.slane %v114, %v118
    %v121 = vld [vmem:[%s7] sm:$0xff]
    %v122 = vld [vmem:[%s7 + $0x8] sm:$0xff]
    %v123 = vld [vmem:[%s7 + $0x10] sm:$0xff]
    %v124 = vld [vmem:[%s7 + $0x18] sm:$0xff]
    %v125 = vld [vmem:[%s7 + $0x20] sm:$0xff]
    %v126 = vld [vmem:[%s7 + $0x28] sm:$0xff]
    %v127 = vld [vmem:[%s8] sm:$0xff]
    %v128 = vld [vmem:[%s8 + $0x8] sm:$0xff]
    %v129 = vld [vmem:[%s8 + $0x10] sm:$0xff]
    %v130 = vld [vmem:[%s8 + $0x18] sm:$0xff]
    %v131 = vld [vmem:[#allocation10] sm:$0x1]
    %v132 = vlaneseq
    %v133 = vand.u32 %v132, 127
    %v134 = vsub.s32 7, %v133
    %vm135 = vcmp.eq.s32.totalorder %v133, 40
    %v136 = vsel %vm135, 1, 0
    %v137 = vcvt.s32.f32 %v136
    %vm138 = vcmp.eq.s32.totalorder %v133, 32
    %v139 = vsel %vm138, 1.0, %v137
    %v141 = vlaneseq
    %v142 = vshrl.u32 %v141, 7
    %v143 = vsub.s32 0, %v142
    %v144 = vrot.slane %v103, %v143
    %vm146 = vcmask 130048
    %v148 = vsel %vm146, %v100, 0
    %150 = vmatprep.subr.mxu0 0.0
    %151 = vmatpush1.msra.mxu0 %v101
    %152 = vmatprep.subr.mxu0 0.0
    %153 = vmatpush1.msra.mxu0 %v102
    %154 = vmatprep.subr.mxu0 0.0
    %155 = vmatpush1.msra.mxu0 0.0
    %156 = vmatprep.subr.mxu0 0.0
    %157 = vmatpush1.msra.mxu0 0.0
    %158 = vmatprep.subr.mxu0 0.0
    %159 = vmatpush1.msra.mxu0 0.0
    %160 = vmatprep.subr.mxu0 0.0
    %161 = vmatpush1.msra.mxu0 0.0
    %162 = vmatprep.subr.mxu0 0.0
    %163 = vmatpush1.msra.mxu0 0.0
    %164 = vmatprep.subr.mxu0 0.0
    %165 = vmatpush1.msra.mxu0 0.0
    %166 = vmatprep.subr.mxu0 0.0
    %167 = vmatpush1.msra.mxu0 0.0
    %168 = vmatprep.subr.mxu0 0.0
    %169 = vmatpush1.msra.mxu0 0.0
    %170 = vmatprep.subr.mxu0 0.0
    %171 = vmatpush1.msra.mxu0 0.0
    %172 = vmatprep.subr.mxu0 0.0
    %173 = vmatpush1.msra.mxu0 0.0
    %174 = vmatprep.subr.mxu0 0.0
    %175 = vmatpush1.msra.mxu0 0.0
    %176 = vmatprep.subr.mxu0 0.0
    %177 = vmatpush1.msra.mxu0 0.0
    %178 = vmatprep.subr.mxu0 0.0
    %179 = vmatpush1.msra.mxu0 0.0
    %180 = vmatprep.subr.mxu0 0.0
    %181 = vmatpush1.msra.mxu0 0.0
    %182 = vmatprep.subr.mxu0 0.0
    %183 = vmatpush1.msra.mxu0 0.0
    %184 = vmatprep.subr.mxu0 0.0
    %185 = vmatpush1.msra.mxu0 0.0
    %186 = vmatprep.subr.mxu0 0.0
    %187 = vmatpush1.msra.mxu0 0.0
    %188 = vmatprep.subr.mxu0 0.0
    %189 = vmatpush1.msra.mxu0 0.0
    %190 = vmatprep.subr.mxu0 0.0
    %191 = vmatpush1.msra.mxu0 0.0
    %192 = vmatprep.subr.mxu0 0.0
    %193 = vmatpush1.msra.mxu0 0.0
    %194 = vmatprep.subr.mxu0 0.0
    %195 = vmatpush1.msra.mxu0 0.0
    %196 = vmatprep.subr.mxu0 0.0
    %197 = vmatpush1.msra.mxu0 0.0
    %198 = vmatprep.subr.mxu0 0.0
    %199 = vmatpush1.msra.mxu0 0.0
    %200 = vmatprep.subr.mxu0 0.0
    %201 = vmatpush1.msra.mxu0 0.0
    %202 = vmatprep.subr.mxu0 0.0
    %203 = vmatpush1.msra.mxu0 0.0
    %204 = vmatprep.subr.mxu0 0.0
    %205 = vmatpush1.msra.mxu0 0.0
    %206 = vmatprep.subr.mxu0 0.0
    %207 = vmatpush1.msra.mxu0 0.0
    %208 = vmatprep.subr.mxu0 0.0
    %209 = vmatpush1.msra.mxu0 0.0
    %210 = vmatprep.subr.mxu0 0.0
    %211 = vmatpush1.msra.mxu0 0.0
    %212 = vmatprep.subr.mxu0 0.0
    %213 = vmatpush1.msra.mxu0 0.0
    %214 = vmatprep.mubr.f32.mxu0 0.0
    %215 = vmatmul.mubr.f32.gmra.mrb[0].mxu0 %v148
    %v216 = vpop.f32.mrb[0].mxu0
    %v217 = vadd.f32 %v144, %v216
    %v218 = vpop.f32.mrb[0].mxu0
    %219 = vdwg.mxu0
    %vm220 = vcmask 261120
    %v221 = vsel %vm220, %v217, 0.0
    %v222 = vadd.f32 %v221, %v139
    %vm223 = vcmask 392192
    %v225 = vsel %vm223, %v222, 0
    %227 = vmatprep.subr.mxu0 0.0
    %228 = vmatpush1.msra.mxu0 %v104
    %229 = vmatprep.subr.mxu0 0.0
    %230 = vmatpush1.msra.mxu0 %v105
    %231 = vmatprep.subr.mxu0 0.0
    %232 = vmatpush1.msra.mxu0 %v106
    %233 = vmatprep.subr.mxu0 0.0
    %234 = vmatpush1.msra.mxu0 %v107
    %235 = vmatprep.subr.mxu0 0.0
    %236 = vmatpush1.msra.mxu0 %v108
    %237 = vmatprep.subr.mxu0 0.0
    %238 = vmatpush1.msra.mxu0 %v109
    %239 = vmatprep.subr.mxu0 0.0
    %240 = vmatpush1.msra.mxu0 0.0
    %241 = vmatprep.subr.mxu0 0.0
    %242 = vmatpush1.msra.mxu0 0.0
    %243 = vmatprep.subr.mxu0 0.0
    %244 = vmatpush1.msra.mxu0 0.0
    %245 = vmatprep.subr.mxu0 0.0
    %246 = vmatpush1.msra.mxu0 0.0
    %247 = vmatprep.subr.mxu0 0.0
    %248 = vmatpush1.msra.mxu0 0.0
    %249 = vmatprep.subr.mxu0 0.0
    %250 = vmatpush1.msra.mxu0 0.0
    %251 = vmatprep.subr.mxu0 0.0
    %252 = vmatpush1.msra.mxu0 0.0
    %253 = vmatprep.subr.mxu0 0.0
    %254 = vmatpush1.msra.mxu0 0.0
    %255 = vmatprep.subr.mxu0 0.0
    %256 = vmatpush1.msra.mxu0 0.0
    %257 = vmatprep.subr.mxu0 0.0
    %258 = vmatpush1.msra.mxu0 0.0
    %259 = vmatprep.subr.mxu0 0.0
    %260 = vmatpush1.msra.mxu0 0.0
    %261 = vmatprep.subr.mxu0 0.0
    %262 = vmatpush1.msra.mxu0 0.0
    %263 = vmatprep.subr.mxu0 0.0
    %264 = vmatpush1.msra.mxu0 0.0
    %265 = vmatprep.subr.mxu0 0.0
    %266 = vmatpush1.msra.mxu0 0.0
    %267 = vmatprep.subr.mxu0 0.0
    %268 = vmatpush1.msra.mxu0 0.0
    %269 = vmatprep.subr.mxu0 0.0
    %270 = vmatpush1.msra.mxu0 0.0
    %271 = vmatprep.subr.mxu0 0.0
    %272 = vmatpush1.msra.mxu0 0.0
    %273 = vmatprep.subr.mxu0 0.0
    %274 = vmatpush1.msra.mxu0 0.0
    %275 = vmatprep.subr.mxu0 0.0
    %276 = vmatpush1.msra.mxu0 0.0
    %277 = vmatprep.subr.mxu0 0.0
    %278 = vmatpush1.msra.mxu0 0.0
    %279 = vmatprep.subr.mxu0 0.0
    %280 = vmatpush1.msra.mxu0 0.0
    %281 = vmatprep.subr.mxu0 0.0
    %282 = vmatpush1.msra.mxu0 0.0
    %283 = vmatprep.subr.mxu0 0.0
    %284 = vmatpush1.msra.mxu0 0.0
    %285 = vmatprep.subr.mxu0 0.0
    %286 = vmatpush1.msra.mxu0 0.0
    %287 = vmatprep.subr.mxu0 0.0
    %288 = vmatpush1.msra.mxu0 0.0
    %289 = vmatprep.subr.mxu0 0.0
    %290 = vmatpush1.msra.mxu0 0.0
    %291 = vmatprep.mubr.f32.mxu0 0.0
    %292 = vmatmul.mubr.f32.gmra.mrb[0].mxu0 %v225
    %v293 = vpop.f32.mrb[0].mxu0
    %v294 = vadd.f32 0.0, %v293
    %v295 = vpop.f32.mrb[0].mxu0
    %296 = vdwg.mxu0
    %v297 = vxor.u32 %v294, 2147483648
    %v298 = vmul.f32 %v297, 1.442695
    %v299 = vpow.pop %v298
    %v300 = vadd.f32 %v299, 1.0
    %v301 = vrcp.pop %v300
    %v302 = vmul.f32 1.0, %v301
    %v303 = vtanh.pop %v294
    %v304 = vmul.f32 %v302, 0.0
    %306 = vrot.lane.b32.xlu0 %v303, 64
    %v307 = vpop.permute.xlu0 %306
    %v309 = vmul.f32 %v302, %v307
    %311 = vrot.lane.b32.xlu0 %v309, 32
    %v312 = vpop.permute.xlu0 %311
    %v314 = vadd.f32 %v304, %v312
    %v315 = vtanh.pop %v314
    %317 = vrot.lane.b32.xlu0 %v315, 64
    %v318 = vpop.permute.xlu0 %317
    %v320 = vmul.f32 %v302, %v318
    %322 = vrot.lane.b32.xlu0 %v320, 32
    %v323 = vpop.permute.xlu0 %322
    %v324 = vsel %vm220, %v323, 0
    %326 = vmatprep.subr.mxu0 0.0
    %327 = vmatpush1.msra.mxu0 %v110
    %328 = vmatprep.subr.mxu0 0.0
    %329 = vmatpush1.msra.mxu0 %v111
    %330 = vmatprep.subr.mxu0 0.0
    %331 = vmatpush1.msra.mxu0 %v112
    %332 = vmatprep.subr.mxu0 0.0
    %333 = vmatpush1.msra.mxu0 %v113
    %334 = vmatprep.subr.mxu0 0.0
    %335 = vmatpush1.msra.mxu0 0.0
    %336 = vmatprep.subr.mxu0 0.0
    %337 = vmatpush1.msra.mxu0 0.0
    %338 = vmatprep.subr.mxu0 0.0
    %339 = vmatpush1.msra.mxu0 0.0
    %340 = vmatprep.subr.mxu0 0.0
    %341 = vmatpush1.msra.mxu0 0.0
    %342 = vmatprep.subr.mxu0 0.0
    %343 = vmatpush1.msra.mxu0 0.0
    %344 = vmatprep.subr.mxu0 0.0
    %345 = vmatpush1.msra.mxu0 0.0
    %346 = vmatprep.subr.mxu0 0.0
    %347 = vmatpush1.msra.mxu0 0.0
    %348 = vmatprep.subr.mxu0 0.0
    %349 = vmatpush1.msra.mxu0 0.0
    %350 = vmatprep.subr.mxu0 0.0
    %351 = vmatpush1.msra.mxu0 0.0
    %352 = vmatprep.subr.mxu0 0.0
    %353 = vmatpush1.msra.mxu0 0.0
    %354 = vmatprep.subr.mxu0 0.0
    %355 = vmatpush1.msra.mxu0 0.0
    %356 = vmatprep.subr.mxu0 0.0
    %357 = vmatpush1.msra.mxu0 0.0
    %358 = vmatprep.subr.mxu0 0.0
    %359 = vmatpush1.msra.mxu0 0.0
    %360 = vmatprep.subr.mxu0 0.0
    %361 = vmatpush1.msra.mxu0 0.0
    %362 = vmatprep.subr.mxu0 0.0
    %363 = vmatpush1.msra.mxu0 0.0
    %364 = vmatprep.subr.mxu0 0.0
    %365 = vmatpush1.msra.mxu0 0.0
    %366 = vmatprep.subr.mxu0 0.0
    %367 = vmatpush1.msra.mxu0 0.0
    %368 = vmatprep.subr.mxu0 0.0
    %369 = vmatpush1.msra.mxu0 0.0
    %370 = vmatprep.subr.mxu0 0.0
    %371 = vmatpush1.msra.mxu0 0.0
    %372 = vmatprep.subr.mxu0 0.0
    %373 = vmatpush1.msra.mxu0 0.0
    %374 = vmatprep.subr.mxu0 0.0
    %375 = vmatpush1.msra.mxu0 0.0
    %376 = vmatprep.subr.mxu0 0.0
    %377 = vmatpush1.msra.mxu0 0.0
    %378 = vmatprep.subr.mxu0 0.0
    %379 = vmatpush1.msra.mxu0 0.0
    %380 = vmatprep.subr.mxu0 0.0
    %381 = vmatpush1.msra.mxu0 0.0
    %382 = vmatprep.subr.mxu0 0.0
    %383 = vmatpush1.msra.mxu0 0.0
    %384 = vmatprep.subr.mxu0 0.0
    %385 = vmatpush1.msra.mxu0 0.0
    %386 = vmatprep.subr.mxu0 0.0
    %387 = vmatpush1.msra.mxu0 0.0
    %388 = vmatprep.subr.mxu0 0.0
    %389 = vmatpush1.msra.mxu0 0.0
    %390 = vmatprep.mubr.f32.mxu0 0.0
    %391 = vmatmul.mubr.f32.gmra.mrb[0].mxu0 %v324
    %v392 = vpop.f32.mrb[0].mxu0
    %v393 = vadd.f32 %v119, %v392
    %v394 = vpop.f32.mrb[0].mxu0
    %395 = vdwg.mxu0
    %vm397 = vcmp.lt.s32.totalorder %v393, 0
    %v398 = vsub.s32 2147483648, %v393
    %v399 = vsel %vm397, %v398, %v393
    %v400 = vand.u32 %v399, 4294967288
    %v401 = vor.u32 %v400, %v134
    %vm402 = vcmask 58368
    %v403 = vsel %vm402, %v401, 2147483648
    %v404 = vand.u32 %v403, 65535
    %v405 = vshra.s32 %v403, 16
    %v406 = vcvt.s32.f32 %v404
    %v407 = vcvt.s32.f32 %v405
    %408 = vmax.xlane.f32.xlu0 %v407
    %v409 = vpop.xlane.xlu0 %408
    %vm410 = vcmp.eq.f32.partialorder %v407, %v409
    %v411 = vsel %vm410, %v406, -inf
    %412 = vmax.xlane.f32.xlu0 %v411
    %v413 = vpop.xlane.xlu0 %412
    %v414 = vcvt.f32.s32 %v413
    %v415 = vcvt.f32.s32 %v409
    %v416 = vshll.u32 %v415, 16
    %v417 = vadd.s32 %v416, %v414
    %v418 = vand.u32 %v417, 7
    %v419 = vsub.s32 7, %v418
    %v420 = vand.u32 %v417, 4294967288
    %vm421 = vcmp.lt.s32.totalorder %v420, 0
    %v422 = vsub.s32 2147483648, %v420
    %v423 = vsel %vm421, %v422, %v420
    %v425 = vsub.f32 %v393, %v423
    %v426 = vmul.f32 %v425, 1.442695
    %v427 = vpow.pop %v426
    %v428 = vsel %vm402, %v427, 0.0
    %429 = vadd.xlane.f32.xlu0 %v428
    %v430 = vpop.xlane.xlu0 %429
    %v431 = vlog2.pop %v430
    %v432 = vmul.f32 %v431, 0.6931472
    %v433 = vadd.f32 %v432, 0.0
    %v434 = vmul.f32 %v427, %v425
    %v435 = vsel %vm402, %v434, 0.0
    %436 = vadd.xlane.f32.xlu0 %v435
    %v437 = vpop.xlane.xlu0 %436
    %v438 = vrcp.pop %v430
    %v439 = vmul.f32 %v437, %v438
    %v440 = vsub.f32 %v433, %v439
    %vm441 = vcmp.eq.s32.totalorder %v133, 1
    %v442 = vsel %vm441, %v419, 0
    %vm443 = vcmp.eq.s32.totalorder %v419, 0
    %v444 = vadd.s32 %v419, 32
    %vm445 = vcmp.eq.s32.totalorder %v133, %v444
    %v446 = vsel %vm445, 1.0, %v137
    %v448 = vsel %vm220, %v323, 0.0
    %v449 = vadd.f32 %v448, %v446
    %v451 = vsel %vm223, %v449, 0
    %453 = vmatprep.subr.mxu0 0.0
    %454 = vmatpush1.msra.mxu0 %v104
    %455 = vmatprep.subr.mxu0 0.0
    %456 = vmatpush1.msra.mxu0 %v105
    %457 = vmatprep.subr.mxu0 0.0
    %458 = vmatpush1.msra.mxu0 %v106
    %459 = vmatprep.subr.mxu0 0.0
    %460 = vmatpush1.msra.mxu0 %v107
    %461 = vmatprep.subr.mxu0 0.0
    %462 = vmatpush1.msra.mxu0 %v108
    %463 = vmatprep.subr.mxu0 0.0
    %464 = vmatpush1.msra.mxu0 %v109
    %465 = vmatprep.subr.mxu0 0.0
    %466 = vmatpush1.msra.mxu0 0.0
    %467 = vmatprep.subr.mxu0 0.0
    %468 = vmatpush1.msra.mxu0 0.0
    %469 = vmatprep.subr.mxu0 0.0
    %470 = vmatpush1.msra.mxu0 0.0
    %471 = vmatprep.subr.mxu0 0.0
    %472 = vmatpush1.msra.mxu0 0.0
    %473 = vmatprep.subr.mxu0 0.0
    %474 = vmatpush1.msra.mxu0 0.0
    %475 = vmatprep.subr.mxu0 0.0
    %476 = vmatpush1.msra.mxu0 0.0
    %477 = vmatprep.subr.mxu0 0.0
    %478 = vmatpush1.msra.mxu0 0.0
    %479 = vmatprep.subr.mxu0 0.0
    %480 = vmatpush1.msra.mxu0 0.0
    %481 = vmatprep.subr.mxu0 0.0
    %482 = vmatpush1.msra.mxu0 0.0
    %483 = vmatprep.subr.mxu0 0.0
    %484 = vmatpush1.msra.mxu0 0.0
    %485 = vmatprep.subr.mxu0 0.0
    %486 = vmatpush1.msra.mxu0 0.0
    %487 = vmatprep.subr.mxu0 0.0
    %488 = vmatpush1.msra.mxu0 0.0
    %489 = vmatprep.subr.mxu0 0.0
    %490 = vmatpush1.msra.mxu0 0.0
    %491 = vmatprep.subr.mxu0 0.0
    %492 = vmatpush1.msra.mxu0 0.0
    %493 = vmatprep.subr.mxu0 0.0
    %494 = vmatpush1.msra.mxu0 0.0
    %495 = vmatprep.subr.mxu0 0.0
    %496 = vmatpush1.msra.mxu0 0.0
    %497 = vmatprep.subr.mxu0 0.0
    %498 = vmatpush1.msra.mxu0 0.0
    %499 = vmatprep.subr.mxu0 0.0
    %500 = vmatpush1.msra.mxu0 0.0
    %501 = vmatprep.subr.mxu0 0.0
    %502 = vmatpush1.msra.mxu0 0.0
    %503 = vmatprep.subr.mxu0 0.0
    %504 = vmatpush1.msra.mxu0 0.0
    %505 = vmatprep.subr.mxu0 0.0
    %506 = vmatpush1.msra.mxu0 0.0
    %507 = vmatprep.subr.mxu0 0.0
    %508 = vmatpush1.msra.mxu0 0.0
    %509 = vmatprep.subr.mxu0 0.0
    %510 = vmatpush1.msra.mxu0 0.0
    %511 = vmatprep.subr.mxu0 0.0
    %512 = vmatpush1.msra.mxu0 0.0
    %513 = vmatprep.subr.mxu0 0.0
    %514 = vmatpush1.msra.mxu0 0.0
    %515 = vmatprep.subr.mxu0 0.0
    %516 = vmatpush1.msra.mxu0 0.0
    %517 = vmatprep.mubr.f32.mxu0 0.0
    %518 = vmatmul.mubr.f32.gmra.mrb[0].mxu0 %v451
    %v519 = vpop.f32.mrb[0].mxu0
    %v520 = vadd.f32 0.0, %v519
    %v521 = vpop.f32.mrb[0].mxu0
    %522 = vdwg.mxu0
    %v523 = vxor.u32 %v520, 2147483648
    %v524 = vmul.f32 %v523, 1.442695
    %v525 = vpow.pop %v524
    %v526 = vadd.f32 %v525, 1.0
    %v527 = vrcp.pop %v526
    %v528 = vmul.f32 1.0, %v527
    %v529 = vtanh.pop %v520
    %v530 = vmul.f32 %v528, %v314
    %532 = vrot.lane.b32.xlu0 %v529, 64
    %v533 = vpop.permute.xlu0 %532
    %v535 = vmul.f32 %v528, %v533
    %537 = vrot.lane.b32.xlu0 %v535, 32
    %v538 = vpop.permute.xlu0 %537
    %v540 = vadd.f32 %v530, %v538
    %v541 = vtanh.pop %v540
    %543 = vrot.lane.b32.xlu0 %v541, 64
    %v544 = vpop.permute.xlu0 %543
    %v546 = vmul.f32 %v528, %v544
    %548 = vrot.lane.b32.xlu0 %v546, 32
    %v549 = vpop.permute.xlu0 %548
    %v550 = vsel %vm220, %v549, 0
    %552 = vmatprep.subr.mxu0 0.0
    %553 = vmatpush1.msra.mxu0 %v110
    %554 = vmatprep.subr.mxu0 0.0
    %555 = vmatpush1.msra.mxu0 %v111
    %556 = vmatprep.subr.mxu0 0.0
    %557 = vmatpush1.msra.mxu0 %v112
    %558 = vmatprep.subr.mxu0 0.0
    %559 = vmatpush1.msra.mxu0 %v113
    %560 = vmatprep.subr.mxu0 0.0
    %561 = vmatpush1.msra.mxu0 0.0
    %562 = vmatprep.subr.mxu0 0.0
    %563 = vmatpush1.msra.mxu0 0.0
    %564 = vmatprep.subr.mxu0 0.0
    %565 = vmatpush1.msra.mxu0 0.0
    %566 = vmatprep.subr.mxu0 0.0
    %567 = vmatpush1.msra.mxu0 0.0
    %568 = vmatprep.subr.mxu0 0.0
    %569 = vmatpush1.msra.mxu0 0.0
    %570 = vmatprep.subr.mxu0 0.0
    %571 = vmatpush1.msra.mxu0 0.0
    %572 = vmatprep.subr.mxu0 0.0
    %573 = vmatpush1.msra.mxu0 0.0
    %574 = vmatprep.subr.mxu0 0.0
    %575 = vmatpush1.msra.mxu0 0.0
    %576 = vmatprep.subr.mxu0 0.0
    %577 = vmatpush1.msra.mxu0 0.0
    %578 = vmatprep.subr.mxu0 0.0
    %579 = vmatpush1.msra.mxu0 0.0
    %580 = vmatprep.subr.mxu0 0.0
    %581 = vmatpush1.msra.mxu0 0.0
    %582 = vmatprep.subr.mxu0 0.0
    %583 = vmatpush1.msra.mxu0 0.0
    %584 = vmatprep.subr.mxu0 0.0
    %585 = vmatpush1.msra.mxu0 0.0
    %586 = vmatprep.subr.mxu0 0.0
    %587 = vmatpush1.msra.mxu0 0.0
    %588 = vmatprep.subr.mxu0 0.0
    %589 = vmatpush1.msra.mxu0 0.0
    %590 = vmatprep.subr.mxu0 0.0
    %591 = vmatpush1.msra.mxu0 0.0
    %592 = vmatprep.subr.mxu0 0.0
    %593 = vmatpush1.msra.mxu0 0.0
    %594 = vmatprep.subr.mxu0 0.0
    %595 = vmatpush1.msra.mxu0 0.0
    %596 = vmatprep.subr.mxu0 0.0
    %597 = vmatpush1.msra.mxu0 0.0
    %598 = vmatprep.subr.mxu0 0.0
    %599 = vmatpush1.msra.mxu0 0.0
    %600 = vmatprep.subr.mxu0 0.0
    %601 = vmatpush1.msra.mxu0 0.0
    %602 = vmatprep.subr.mxu0 0.0
    %603 = vmatpush1.msra.mxu0 0.0
    %604 = vmatprep.subr.mxu0 0.0
    %605 = vmatpush1.msra.mxu0 0.0
    %606 = vmatprep.subr.mxu0 0.0
    %607 = vmatpush1.msra.mxu0 0.0
    %608 = vmatprep.subr.mxu0 0.0
    %609 = vmatpush1.msra.mxu0 0.0
    %610 = vmatprep.subr.mxu0 0.0
    %611 = vmatpush1.msra.mxu0 0.0
    %612 = vmatprep.subr.mxu0 0.0
    %613 = vmatpush1.msra.mxu0 0.0
    %614 = vmatprep.subr.mxu0 0.0
    %615 = vmatpush1.msra.mxu0 0.0
    %616 = vmatprep.mubr.f32.mxu0 0.0
    %617 = vmatmul.mubr.f32.gmra.mrb[0].mxu0 %v550
    %v618 = vpop.f32.mrb[0].mxu0
    %v619 = vadd.f32 %v119, %v618
    %v620 = vpop.f32.mrb[0].mxu0
    %621 = vdwg.mxu0
    %vm623 = vcmp.lt.s32.totalorder %v619, 0
    %v624 = vsub.s32 2147483648, %v619
    %v625 = vsel %vm623, %v624, %v619
    %v626 = vand.u32 %v625, 4294967288
    %v627 = vor.u32 %v626, %v134
    %v628 = vsel %vm402, %v627, 2147483648
    %v629 = vand.u32 %v628, 65535
    %v630 = vshra.s32 %v628, 16
    %v631 = vcvt.s32.f32 %v629
    %v632 = vcvt.s32.f32 %v630
    %633 = vmax.xlane.f32.xlu0 %v632
    %v634 = vpop.xlane.xlu0 %633
    %vm635 = vcmp.eq.f32.partialorder %v632, %v634
    %v636 = vsel %vm635, %v631, -inf
    %637 = vmax.xlane.f32.xlu0 %v636
    %v638 = vpop.xlane.xlu0 %637
    %v639 = vcvt.f32.s32 %v638
    %v640 = vcvt.f32.s32 %v634
    %v641 = vshll.u32 %v640, 16
    %v642 = vadd.s32 %v641, %v639
    %v643 = vand.u32 %v642, 7
    %v644 = vsub.s32 7, %v643
    %v645 = vand.u32 %v642, 4294967288
    %vm646 = vcmp.lt.s32.totalorder %v645, 0
    %v647 = vsub.s32 2147483648, %v645
    %v648 = vsel %vm646, %v647, %v645
    %v650 = vsub.f32 %v619, %v648
    %v651 = vmul.f32 %v650, 1.442695
    %v652 = vpow.pop %v651
    %v653 = vsel %vm402, %v652, 0.0
    %654 = vadd.xlane.f32.xlu0 %v653
    %v655 = vpop.xlane.xlu0 %654
    %v656 = vlog2.pop %v655
    %v657 = vmul.f32 %v656, 0.6931472
    %v658 = vadd.f32 %v440, %v657
    %v659 = vmul.f32 %v652, %v650
    %v660 = vsel %vm402, %v659, 0.0
    %661 = vadd.xlane.f32.xlu0 %v660
    %v662 = vpop.xlane.xlu0 %661
    %v663 = vrcp.pop %v655
    %v664 = vmul.f32 %v662, %v663
    %v665 = vsub.f32 %v658, %v664
    %v666 = vsel %vm443, 0, %v644
    %vm667 = vcmp.eq.s32.totalorder %v133, 2
    %v668 = vsel %vm667, %v666, %v442
    %vm669 = vcmp.eq.s32.totalorder %v644, 0
    %vm670 = vmor %vm443, %vm669
    %v671 = vadd.s32 %v644, 32
    %vm672 = vcmp.eq.s32.totalorder %v133, %v671
    %v673 = vsel %vm672, 1.0, %v137
    %v675 = vsel %vm220, %v549, 0.0
    %v676 = vadd.f32 %v675, %v673
    %v678 = vsel %vm223, %v676, 0
    %680 = vmatprep.subr.mxu0 0.0
    %681 = vmatpush1.msra.mxu0 %v104
    %682 = vmatprep.subr.mxu0 0.0
    %683 = vmatpush1.msra.mxu0 %v105
    %684 = vmatprep.subr.mxu0 0.0
    %685 = vmatpush1.msra.mxu0 %v106
    %686 = vmatprep.subr.mxu0 0.0
    %687 = vmatpush1.msra.mxu0 %v107
    %688 = vmatprep.subr.mxu0 0.0
    %689 = vmatpush1.msra.mxu0 %v108
    %690 = vmatprep.subr.mxu0 0.0
    %691 = vmatpush1.msra.mxu0 %v109
    %692 = vmatprep.subr.mxu0 0.0
    %693 = vmatpush1.msra.mxu0 0.0
    %694 = vmatprep.subr.mxu0 0.0
    %695 = vmatpush1.msra.mxu0 0.0
    %696 = vmatprep.subr.mxu0 0.0
    %697 = vmatpush1.msra.mxu0 0.0
    %698 = vmatprep.subr.mxu0 0.0
    %699 = vmatpush1.msra.mxu0 0.0
    %700 = vmatprep.subr.mxu0 0.0
    %701 = vmatpush1.msra.mxu0 0.0
    %702 = vmatprep.subr.mxu0 0.0
    %703 = vmatpush1.msra.mxu0 0.0
    %704 = vmatprep.subr.mxu0 0.0
    %705 = vmatpush1.msra.mxu0 0.0
    %706 = vmatprep.subr.mxu0 0.0
    %707 = vmatpush1.msra.mxu0 0.0
    %708 = vmatprep.subr.mxu0 0.0
    %709 = vmatpush1.msra.mxu0 0.0
    %710 = vmatprep.subr.mxu0 0.0
    %711 = vmatpush1.msra.mxu0 0.0
    %712 = vmatprep.subr.mxu0 0.0
    %713 = vmatpush1.msra.mxu0 0.0
    %714 = vmatprep.subr.mxu0 0.0
    %715 = vmatpush1.msra.mxu0 0.0
    %716 = vmatprep.subr.mxu0 0.0
    %717 = vmatpush1.msra.mxu0 0.0
    %718 = vmatprep.subr.mxu0 0.0
    %719 = vmatpush1.msra.mxu0 0.0
    %720 = vmatprep.subr.mxu0 0.0
    %721 = vmatpush1.msra.mxu0 0.0
    %722 = vmatprep.subr.mxu0 0.0
    %723 = vmatpush1.msra.mxu0 0.0
    %724 = vmatprep.subr.mxu0 0.0
    %725 = vmatpush1.msra.mxu0 0.0
    %726 = vmatprep.subr.mxu0 0.0
    %727 = vmatpush1.msra.mxu0 0.0
    %728 = vmatprep.subr.mxu0 0.0
    %729 = vmatpush1.msra.mxu0 0.0
    %730 = vmatprep.subr.mxu0 0.0
    %731 = vmatpush1.msra.mxu0 0.0
    %732 = vmatprep.subr.mxu0 0.0
    %733 = vmatpush1.msra.mxu0 0.0
    %734 = vmatprep.subr.mxu0 0.0
    %735 = vmatpush1.msra.mxu0 0.0
    %736 = vmatprep.subr.mxu0 0.0
    %737 = vmatpush1.msra.mxu0 0.0
    %738 = vmatprep.subr.mxu0 0.0
    %739 = vmatpush1.msra.mxu0 0.0
    %740 = vmatprep.subr.mxu0 0.0
    %741 = vmatpush1.msra.mxu0 0.0
    %742 = vmatprep.subr.mxu0 0.0
    %743 = vmatpush1.msra.mxu0 0.0
    %744 = vmatprep.mubr.f32.mxu0 0.0
    %745 = vmatmul.mubr.f32.gmra.mrb[0].mxu0 %v678
    %v746 = vpop.f32.mrb[0].mxu0
    %v747 = vadd.f32 0.0, %v746
    %v748 = vpop.f32.mrb[0].mxu0
    %749 = vdwg.mxu0
    %v750 = vxor.u32 %v747, 2147483648
    %v751 = vmul.f32 %v750, 1.442695
    %v752 = vpow.pop %v751
    %v753 = vadd.f32 %v752, 1.0
    %v754 = vrcp.pop %v753
    %v755 = vmul.f32 1.0, %v754
    %v756 = vtanh.pop %v747
    %v757 = vmul.f32 %v755, %v540
    %759 = vrot.lane.b32.xlu0 %v756, 64
    %v760 = vpop.permute.xlu0 %759
    %v762 = vmul.f32 %v755, %v760
    %764 = vrot.lane.b32.xlu0 %v762, 32
    %v765 = vpop.permute.xlu0 %764
    %v767 = vadd.f32 %v757, %v765
    %v768 = vtanh.pop %v767
    %770 = vrot.lane.b32.xlu0 %v768, 64
    %v771 = vpop.permute.xlu0 %770
    %v773 = vmul.f32 %v755, %v771
    %775 = vrot.lane.b32.xlu0 %v773, 32
    %v776 = vpop.permute.xlu0 %775
    %v777 = vsel %vm220, %v776, 0
    %779 = vmatprep.subr.mxu0 0.0
    %780 = vmatpush1.msra.mxu0 %v110
    %781 = vmatprep.subr.mxu0 0.0
    %782 = vmatpush1.msra.mxu0 %v111
    %783 = vmatprep.subr.mxu0 0.0
    %784 = vmatpush1.msra.mxu0 %v112
    %785 = vmatprep.subr.mxu0 0.0
    %786 = vmatpush1.msra.mxu0 %v113
    %787 = vmatprep.subr.mxu0 0.0
    %788 = vmatpush1.msra.mxu0 0.0
    %789 = vmatprep.subr.mxu0 0.0
    %790 = vmatpush1.msra.mxu0 0.0
    %791 = vmatprep.subr.mxu0 0.0
    %792 = vmatpush1.msra.mxu0 0.0
    %793 = vmatprep.subr.mxu0 0.0
    %794 = vmatpush1.msra.mxu0 0.0
    %795 = vmatprep.subr.mxu0 0.0
    %796 = vmatpush1.msra.mxu0 0.0
    %797 = vmatprep.subr.mxu0 0.0
    %798 = vmatpush1.msra.mxu0 0.0
    %799 = vmatprep.subr.mxu0 0.0
    %800 = vmatpush1.msra.mxu0 0.0
    %801 = vmatprep.subr.mxu0 0.0
    %802 = vmatpush1.msra.mxu0 0.0
    %803 = vmatprep.subr.mxu0 0.0
    %804 = vmatpush1.msra.mxu0 0.0
    %805 = vmatprep.subr.mxu0 0.0
    %806 = vmatpush1.msra.mxu0 0.0
    %807 = vmatprep.subr.mxu0 0.0
    %808 = vmatpush1.msra.mxu0 0.0
    %809 = vmatprep.subr.mxu0 0.0
    %810 = vmatpush1.msra.mxu0 0.0
    %811 = vmatprep.subr.mxu0 0.0
    %812 = vmatpush1.msra.mxu0 0.0
    %813 = vmatprep.subr.mxu0 0.0
    %814 = vmatpush1.msra.mxu0 0.0
    %815 = vmatprep.subr.mxu0 0.0
    %816 = vmatpush1.msra.mxu0 0.0
    %817 = vmatprep.subr.mxu0 0.0
    %818 = vmatpush1.msra.mxu0 0.0
    %819 = vmatprep.subr.mxu0 0.0
    %820 = vmatpush1.msra.mxu0 0.0
    %821 = vmatprep.subr.mxu0 0.0
    %822 = vmatpush1.msra.mxu0 0.0
    %823 = vmatprep.subr.mxu0 0.0
    %824 = vmatpush1.msra.mxu0 0.0
    %825 = vmatprep.subr.mxu0 0.0
    %826 = vmatpush1.msra.mxu0 0.0
    %827 = vmatprep.subr.mxu0 0.0
    %828 = vmatpush1.msra.mxu0 0.0
    %829 = vmatprep.subr.mxu0 0.0
    %830 = vmatpush1.msra.mxu0 0.0
    %831 = vmatprep.subr.mxu0 0.0
    %832 = vmatpush1.msra.mxu0 0.0
    %833 = vmatprep.subr.mxu0 0.0
    %834 = vmatpush1.msra.mxu0 0.0
    %835 = vmatprep.subr.mxu0 0.0
    %836 = vmatpush1.msra.mxu0 0.0
    %837 = vmatprep.subr.mxu0 0.0
    %838 = vmatpush1.msra.mxu0 0.0
    %839 = vmatprep.subr.mxu0 0.0
    %840 = vmatpush1.msra.mxu0 0.0
    %841 = vmatprep.subr.mxu0 0.0
    %842 = vmatpush1.msra.mxu0 0.0
    %843 = vmatprep.mubr.f32.mxu0 0.0
    %844 = vmatmul.mubr.f32.gmra.mrb[0].mxu0 %v777
    %v845 = vpop.f32.mrb[0].mxu0
    %v846 = vadd.f32 %v119, %v845
    %v847 = vpop.f32.mrb[0].mxu0
    %848 = vdwg.mxu0
    %vm850 = vcmp.lt.s32.totalorder %v846, 0
    %v851 = vsub.s32 2147483648, %v846
    %v852 = vsel %vm850, %v851, %v846
    %v853 = vand.u32 %v852, 4294967288
    %v854 = vor.u32 %v853, %v134
    %v855 = vsel %vm402, %v854, 2147483648
    %v856 = vand.u32 %v855, 65535
    %v857 = vshra.s32 %v855, 16
    %v858 = vcvt.s32.f32 %v856
    %v859 = vcvt.s32.f32 %v857
    %860 = vmax.xlane.f32.xlu0 %v859
    %v861 = vpop.xlane.xlu0 %860
    %vm862 = vcmp.eq.f32.partialorder %v859, %v861
    %v863 = vsel %vm862, %v858, -inf
    %864 = vmax.xlane.f32.xlu0 %v863
    %v865 = vpop.xlane.xlu0 %864
    %v866 = vcvt.f32.s32 %v865
    %v867 = vcvt.f32.s32 %v861
    %v868 = vshll.u32 %v867, 16
    %v869 = vadd.s32 %v868, %v866
    %v870 = vand.u32 %v869, 7
    %v871 = vsub.s32 7, %v870
    %v872 = vand.u32 %v869, 4294967288
    %vm873 = vcmp.lt.s32.totalorder %v872, 0
    %v874 = vsub.s32 2147483648, %v872
    %v875 = vsel %vm873, %v874, %v872
    %v877 = vsub.f32 %v846, %v875
    %v878 = vmul.f32 %v877, 1.442695
    %v879 = vpow.pop %v878
    %v880 = vsel %vm402, %v879, 0.0
    %881 = vadd.xlane.f32.xlu0 %v880
    %v882 = vpop.xlane.xlu0 %881
    %v883 = vlog2.pop %v882
    %v884 = vmul.f32 %v883, 0.6931472
    %v885 = vadd.f32 %v665, %v884
    %v886 = vmul.f32 %v879, %v877
    %v887 = vsel %vm402, %v886, 0.0
    %888 = vadd.xlane.f32.xlu0 %v887
    %v889 = vpop.xlane.xlu0 %888
    %v890 = vrcp.pop %v882
    %v891 = vmul.f32 %v889, %v890
    %v892 = vsub.f32 %v885, %v891
    %v893 = vsel %vm670, 0, %v871
    %vm894 = vcmp.eq.s32.totalorder %v133, 3
    %v895 = vsel %vm894, %v893, %v668
    %vm896 = vcmp.eq.s32.totalorder %v871, 0
    %vm897 = vmor %vm670, %vm896
    %v898 = vadd.s32 %v871, 32
    %vm899 = vcmp.eq.s32.totalorder %v133, %v898
    %v900 = vsel %vm899, 1.0, %v137
    %v902 = vsel %vm220, %v776, 0.0
    %v903 = vadd.f32 %v902, %v900
    %v905 = vsel %vm223, %v903, 0
    %907 = vmatprep.subr.mxu0 0.0
    %908 = vmatpush1.msra.mxu0 %v104
    %909 = vmatprep.subr.mxu0 0.0
    %910 = vmatpush1.msra.mxu0 %v105
    %911 = vmatprep.subr.mxu0 0.0
    %912 = vmatpush1.msra.mxu0 %v106
    %913 = vmatprep.subr.mxu0 0.0
    %914 = vmatpush1.msra.mxu0 %v107
    %915 = vmatprep.subr.mxu0 0.0
    %916 = vmatpush1.msra.mxu0 %v108
    %917 = vmatprep.subr.mxu0 0.0
    %918 = vmatpush1.msra.mxu0 %v109
    %919 = vmatprep.subr.mxu0 0.0
    %920 = vmatpush1.msra.mxu0 0.0
    %921 = vmatprep.subr.mxu0 0.0
    %922 = vmatpush1.msra.mxu0 0.0
    %923 = vmatprep.subr.mxu0 0.0
    %924 = vmatpush1.msra.mxu0 0.0
    %925 = vmatprep.subr.mxu0 0.0
    %926 = vmatpush1.msra.mxu0 0.0
    %927 = vmatprep.subr.mxu0 0.0
    %928 = vmatpush1.msra.mxu0 0.0
    %929 = vmatprep.subr.mxu0 0.0
    %930 = vmatpush1.msra.mxu0 0.0
    %931 = vmatprep.subr.mxu0 0.0
    %932 = vmatpush1.msra.mxu0 0.0
    %933 = vmatprep.subr.mxu0 0.0
    %934 = vmatpush1.msra.mxu0 0.0
    %935 = vmatprep.subr.mxu0 0.0
    %936 = vmatpush1.msra.mxu0 0.0
    %937 = vmatprep.subr.mxu0 0.0
    %938 = vmatpush1.msra.mxu0 0.0
    %939 = vmatprep.subr.mxu0 0.0
    %940 = vmatpush1.msra.mxu0 0.0
    %941 = vmatprep.subr.mxu0 0.0
    %942 = vmatpush1.msra.mxu0 0.0
    %943 = vmatprep.subr.mxu0 0.0
    %944 = vmatpush1.msra.mxu0 0.0
    %945 = vmatprep.subr.mxu0 0.0
    %946 = vmatpush1.msra.mxu0 0.0
    %947 = vmatprep.subr.mxu0 0.0
    %948 = vmatpush1.msra.mxu0 0.0
    %949 = vmatprep.subr.mxu0 0.0
    %950 = vmatpush1.msra.mxu0 0.0
    %951 = vmatprep.subr.mxu0 0.0
    %952 = vmatpush1.msra.mxu0 0.0
    %953 = vmatprep.subr.mxu0 0.0
    %954 = vmatpush1.msra.mxu0 0.0
    %955 = vmatprep.subr.mxu0 0.0
    %956 = vmatpush1.msra.mxu0 0.0
    %957 = vmatprep.subr.mxu0 0.0
    %958 = vmatpush1.msra.mxu0 0.0
    %959 = vmatprep.subr.mxu0 0.0
    %960 = vmatpush1.msra.mxu0 0.0
    %961 = vmatprep.subr.mxu0 0.0
    %962 = vmatpush1.msra.mxu0 0.0
    %963 = vmatprep.subr.mxu0 0.0
    %964 = vmatpush1.msra.mxu0 0.0
    %965 = vmatprep.subr.mxu0 0.0
    %966 = vmatpush1.msra.mxu0 0.0
    %967 = vmatprep.subr.mxu0 0.0
    %968 = vmatpush1.msra.mxu0 0.0
    %969 = vmatprep.subr.mxu0 0.0
    %970 = vmatpush1.msra.mxu0 0.0
    %971 = vmatprep.mubr.f32.mxu0 0.0
    %972 = vmatmul.mubr.f32.gmra.mrb[0].mxu0 %v905
    %v973 = vpop.f32.mrb[0].mxu0
    %v974 = vadd.f32 0.0, %v973
    %v975 = vpop.f32.mrb[0].mxu0
    %976 = vdwg.mxu0
    %v977 = vxor.u32 %v974, 2147483648
    %v978 = vmul.f32 %v977, 1.442695
    %v979 = vpow.pop %v978
    %v980 = vadd.f32 %v979, 1.0
    %v981 = vrcp.pop %v980
    %v982 = vmul.f32 1.0, %v981
    %v983 = vtanh.pop %v974
    %v984 = vmul.f32 %v982, %v767
    %986 = vrot.lane.b32.xlu0 %v983, 64
    %v987 = vpop.permute.xlu0 %986
    %v989 = vmul.f32 %v982, %v987
    %991 = vrot.lane.b32.xlu0 %v989, 32
    %v992 = vpop.permute.xlu0 %991
    %v994 = vadd.f32 %v984, %v992
    %v995 = vtanh.pop %v994
    %997 = vrot.lane.b32.xlu0 %v995, 64
    %v998 = vpop.permute.xlu0 %997
    %v1000 = vmul.f32 %v982, %v998
    %1002 = vrot.lane.b32.xlu0 %v1000, 32
    %v1003 = vpop.permute.xlu0 %1002
    %v1004 = vsel %vm220, %v1003, 0
    %1006 = vmatprep.subr.mxu0 0.0
    %1007 = vmatpush1.msra.mxu0 %v110
    %1008 = vmatprep.subr.mxu0 0.0
    %1009 = vmatpush1.msra.mxu0 %v111
    %1010 = vmatprep.subr.mxu0 0.0
    %1011 = vmatpush1.msra.mxu0 %v112
    %1012 = vmatprep.subr.mxu0 0.0
    %1013 = vmatpush1.msra.mxu0 %v113
    %1014 = vmatprep.subr.mxu0 0.0
    %1015 = vmatpush1.msra.mxu0 0.0
    %1016 = vmatprep.subr.mxu0 0.0
    %1017 = vmatpush1.msra.mxu0 0.0
    %1018 = vmatprep.subr.mxu0 0.0
    %1019 = vmatpush1.msra.mxu0 0.0
    %1020 = vmatprep.subr.mxu0 0.0
    %1021 = vmatpush1.msra.mxu0 0.0
    %1022 = vmatprep.subr.mxu0 0.0
    %1023 = vmatpush1.msra.mxu0 0.0
    %1024 = vmatprep.subr.mxu0 0.0
    %1025 = vmatpush1.msra.mxu0 0.0
    %1026 = vmatprep.subr.mxu0 0.0
    %1027 = vmatpush1.msra.mxu0 0.0
    %1028 = vmatprep.subr.mxu0 0.0
    %1029 = vmatpush1.msra.mxu0 0.0
    %1030 = vmatprep.subr.mxu0 0.0
    %1031 = vmatpush1.msra.mxu0 0.0
    %1032 = vmatprep.subr.mxu0 0.0
    %1033 = vmatpush1.msra.mxu0 0.0
    %1034 = vmatprep.subr.mxu0 0.0
    %1035 = vmatpush1.msra.mxu0 0.0
    %1036 = vmatprep.subr.mxu0 0.0
    %1037 = vmatpush1.msra.mxu0 0.0
    %1038 = vmatprep.subr.mxu0 0.0
    %1039 = vmatpush1.msra.mxu0 0.0
    %1040 = vmatprep.subr.mxu0 0.0
    %1041 = vmatpush1.msra.mxu0 0.0
    %1042 = vmatprep.subr.mxu0 0.0
    %1043 = vmatpush1.msra.mxu0 0.0
    %1044 = vmatprep.subr.mxu0 0.0
    %1045 = vmatpush1.msra.mxu0 0.0
    %1046 = vmatprep.subr.mxu0 0.0
    %1047 = vmatpush1.msra.mxu0 0.0
    %1048 = vmatprep.subr.mxu0 0.0
    %1049 = vmatpush1.msra.mxu0 0.0
    %1050 = vmatprep.subr.mxu0 0.0
    %1051 = vmatpush1.msra.mxu0 0.0
    %1052 = vmatprep.subr.mxu0 0.0
    %1053 = vmatpush1.msra.mxu0 0.0
    %1054 = vmatprep.subr.mxu0 0.0
    %1055 = vmatpush1.msra.mxu0 0.0
    %1056 = vmatprep.subr.mxu0 0.0
    %1057 = vmatpush1.msra.mxu0 0.0
    %1058 = vmatprep.subr.mxu0 0.0
    %1059 = vmatpush1.msra.mxu0 0.0
    %1060 = vmatprep.subr.mxu0 0.0
    %1061 = vmatpush1.msra.mxu0 0.0
    %1062 = vmatprep.subr.mxu0 0.0
    %1063 = vmatpush1.msra.mxu0 0.0
    %1064 = vmatprep.subr.mxu0 0.0
    %1065 = vmatpush1.msra.mxu0 0.0
    %1066 = vmatprep.subr.mxu0 0.0
    %1067 = vmatpush1.msra.mxu0 0.0
    %1068 = vmatprep.subr.mxu0 0.0
    %1069 = vmatpush1.msra.mxu0 0.0
    %1070 = vmatprep.mubr.f32.mxu0 0.0
    %1071 = vmatmul.mubr.f32.gmra.mrb[0].mxu0 %v1004
    %v1072 = vpop.f32.mrb[0].mxu0
    %v1073 = vadd.f32 %v119, %v1072
    %v1074 = vpop.f32.mrb[0].mxu0
    %1075 = vdwg.mxu0
    %vm1077 = vcmp.lt.s32.totalorder %v1073, 0
    %v1078 = vsub.s32 2147483648, %v1073
    %v1079 = vsel %vm1077, %v1078, %v1073
    %v1080 = vand.u32 %v1079, 4294967288
    %v1081 = vor.u32 %v1080, %v134
    %v1082 = vsel %vm402, %v1081, 2147483648
    %v1083 = vand.u32 %v1082, 65535
    %v1084 = vshra.s32 %v1082, 16
    %v1085 = vcvt.s32.f32 %v1083
    %v1086 = vcvt.s32.f32 %v1084
    %1087 = vmax.xlane.f32.xlu0 %v1086
    %v1088 = vpop.xlane.xlu0 %1087
    %vm1089 = vcmp.eq.f32.partialorder %v1086, %v1088
    %v1090 = vsel %vm1089, %v1085, -inf
    %1091 = vmax.xlane.f32.xlu0 %v1090
    %v1092 = vpop.xlane.xlu0 %1091
    %v1093 = vcvt.f32.s32 %v1092
    %v1094 = vcvt.f32.s32 %v1088
    %v1095 = vshll.u32 %v1094, 16
    %v1096 = vadd.s32 %v1095, %v1093
    %v1097 = vand.u32 %v1096, 7
    %v1098 = vsub.s32 7, %v1097
    %v1099 = vand.u32 %v1096, 4294967288
    %vm1100 = vcmp.lt.s32.totalorder %v1099, 0
    %v1101 = vsub.s32 2147483648, %v1099
    %v1102 = vsel %vm1100, %v1101, %v1099
    %v1104 = vsub.f32 %v1073, %v1102
    %v1105 = vmul.f32 %v1104, 1.442695
    %v1106 = vpow.pop %v1105
    %v1107 = vsel %vm402, %v1106, 0.0
    %1108 = vadd.xlane.f32.xlu0 %v1107
    %v1109 = vpop.xlane.xlu0 %1108
    %v1110 = vlog2.pop %v1109
    %v1111 = vmul.f32 %v1110, 0.6931472
    %v1112 = vadd.f32 %v892, %v1111
    %v1113 = vmul.f32 %v1106, %v1104
    %v1114 = vsel %vm402, %v1113, 0.0
    %1115 = vadd.xlane.f32.xlu0 %v1114
    %v1116 = vpop.xlane.xlu0 %1115
    %v1117 = vrcp.pop %v1109
    %v1118 = vmul.f32 %v1116, %v1117
    %v1119 = vsub.f32 %v1112, %v1118
    %v1120 = vsel %vm897, 0, %v1098
    %vm1121 = vcmp.eq.s32.totalorder %v133, 4
    %v1122 = vsel %vm1121, %v1120, %v895
    %vm1123 = vcmp.eq.s32.totalorder %v1098, 0
    %vm1124 = vmor %vm897, %vm1123
    %v1125 = vadd.s32 %v1098, 32
    %vm1126 = vcmp.eq.s32.totalorder %v133, %v1125
    %v1127 = vsel %vm1126, 1.0, %v137
    %v1129 = vsel %vm220, %v1003, 0.0
    %v1130 = vadd.f32 %v1129, %v1127
    %v1132 = vsel %vm223, %v1130, 0
    %1134 = vmatprep.subr.mxu0 0.0
    %1135 = vmatpush1.msra.mxu0 %v104
    %1136 = vmatprep.subr.mxu0 0.0
    %1137 = vmatpush1.msra.mxu0 %v105
    %1138 = vmatprep.subr.mxu0 0.0
    %1139 = vmatpush1.msra.mxu0 %v106
    %1140 = vmatprep.subr.mxu0 0.0
    %1141 = vmatpush1.msra.mxu0 %v107
    %1142 = vmatprep.subr.mxu0 0.0
    %1143 = vmatpush1.msra.mxu0 %v108
    %1144 = vmatprep.subr.mxu0 0.0
    %1145 = vmatpush1.msra.mxu0 %v109
    %1146 = vmatprep.subr.mxu0 0.0
    %1147 = vmatpush1.msra.mxu0 0.0
    %1148 = vmatprep.subr.mxu0 0.0
    %1149 = vmatpush1.msra.mxu0 0.0
    %1150 = vmatprep.subr.mxu0 0.0
    %1151 = vmatpush1.msra.mxu0 0.0
    %1152 = vmatprep.subr.mxu0 0.0
    %1153 = vmatpush1.msra.mxu0 0.0
    %1154 = vmatprep.subr.mxu0 0.0
    %1155 = vmatpush1.msra.mxu0 0.0
    %1156 = vmatprep.subr.mxu0 0.0
    %1157 = vmatpush1.msra.mxu0 0.0
    %1158 = vmatprep.subr.mxu0 0.0
    %1159 = vmatpush1.msra.mxu0 0.0
    %1160 = vmatprep.subr.mxu0 0.0
    %1161 = vmatpush1.msra.mxu0 0.0
    %1162 = vmatprep.subr.mxu0 0.0
    %1163 = vmatpush1.msra.mxu0 0.0
    %1164 = vmatprep.subr.mxu0 0.0
    %1165 = vmatpush1.msra.mxu0 0.0
    %1166 = vmatprep.subr.mxu0 0.0
    %1167 = vmatpush1.msra.mxu0 0.0
    %1168 = vmatprep.subr.mxu0 0.0
    %1169 = vmatpush1.msra.mxu0 0.0
    %1170 = vmatprep.subr.mxu0 0.0
    %1171 = vmatpush1.msra.mxu0 0.0
    %1172 = vmatprep.subr.mxu0 0.0
    %1173 = vmatpush1.msra.mxu0 0.0
    %1174 = vmatprep.subr.mxu0 0.0
    %1175 = vmatpush1.msra.mxu0 0.0
    %1176 = vmatprep.subr.mxu0 0.0
    %1177 = vmatpush1.msra.mxu0 0.0
    %1178 = vmatprep.subr.mxu0 0.0
    %1179 = vmatpush1.msra.mxu0 0.0
    %1180 = vmatprep.subr.mxu0 0.0
    %1181 = vmatpush1.msra.mxu0 0.0
    %1182 = vmatprep.subr.mxu0 0.0
    %1183 = vmatpush1.msra.mxu0 0.0
    %1184 = vmatprep.subr.mxu0 0.0
    %1185 = vmatpush1.msra.mxu0 0.0
    %1186 = vmatprep.subr.mxu0 0.0
    %1187 = vmatpush1.msra.mxu0 0.0
    %1188 = vmatprep.subr.mxu0 0.0
    %1189 = vmatpush1.msra.mxu0 0.0
    %1190 = vmatprep.subr.mxu0 0.0
    %1191 = vmatpush1.msra.mxu0 0.0
    %1192 = vmatprep.subr.mxu0 0.0
    %1193 = vmatpush1.msra.mxu0 0.0
    %1194 = vmatprep.subr.mxu0 0.0
    %1195 = vmatpush1.msra.mxu0 0.0
    %1196 = vmatprep.subr.mxu0 0.0
    %1197 = vmatpush1.msra.mxu0 0.0
    %1198 = vmatprep.mubr.f32.mxu0 0.0
    %1199 = vmatmul.mubr.f32.gmra.mrb[0].mxu0 %v1132
    %v1200 = vpop.f32.mrb[0].mxu0
    %v1201 = vadd.f32 0.0, %v1200
    %v1202 = vpop.f32.mrb[0].mxu0
    %1203 = vdwg.mxu0
    %v1204 = vxor.u32 %v1201, 2147483648
    %v1205 = vmul.f32 %v1204, 1.442695
    %v1206 = vpow.pop %v1205
    %v1207 = vadd.f32 %v1206, 1.0
    %v1208 = vrcp.pop %v1207
    %v1209 = vmul.f32 1.0, %v1208
    %v1210 = vtanh.pop %v1201
    %v1211 = vmul.f32 %v1209, %v994
    %1213 = vrot.lane.b32.xlu0 %v1210, 64
    %v1214 = vpop.permute.xlu0 %1213
    %v1216 = vmul.f32 %v1209, %v1214
    %1218 = vrot.lane.b32.xlu0 %v1216, 32
    %v1219 = vpop.permute.xlu0 %1218
    %v1221 = vadd.f32 %v1211, %v1219
    %v1222 = vtanh.pop %v1221
    %1224 = vrot.lane.b32.xlu0 %v1222, 64
    %v1225 = vpop.permute.xlu0 %1224
    %v1227 = vmul.f32 %v1209, %v1225
    %1229 = vrot.lane.b32.xlu0 %v1227, 32
    %v1230 = vpop.permute.xlu0 %1229
    %v1231 = vsel %vm220, %v1230, 0
    %1233 = vmatprep.subr.mxu0 0.0
    %1234 = vmatpush1.msra.mxu0 %v110
    %1235 = vmatprep.subr.mxu0 0.0
    %1236 = vmatpush1.msra.mxu0 %v111
    %1237 = vmatprep.subr.mxu0 0.0
    %1238 = vmatpush1.msra.mxu0 %v112
    %1239 = vmatprep.subr.mxu0 0.0
    %1240 = vmatpush1.msra.mxu0 %v113
    %1241 = vmatprep.subr.mxu0 0.0
    %1242 = vmatpush1.msra.mxu0 0.0
    %1243 = vmatprep.subr.mxu0 0.0
    %1244 = vmatpush1.msra.mxu0 0.0
    %1245 = vmatprep.subr.mxu0 0.0
    %1246 = vmatpush1.msra.mxu0 0.0
    %1247 = vmatprep.subr.mxu0 0.0
    %1248 = vmatpush1.msra.mxu0 0.0
    %1249 = vmatprep.subr.mxu0 0.0
    %1250 = vmatpush1.msra.mxu0 0.0
    %1251 = vmatprep.subr.mxu0 0.0
    %1252 = vmatpush1.msra.mxu0 0.0
    %1253 = vmatprep.subr.mxu0 0.0
    %1254 = vmatpush1.msra.mxu0 0.0
    %1255 = vmatprep.subr.mxu0 0.0
    %1256 = vmatpush1.msra.mxu0 0.0
    %1257 = vmatprep.subr.mxu0 0.0
    %1258 = vmatpush1.msra.mxu0 0.0
    %1259 = vmatprep.subr.mxu0 0.0
    %1260 = vmatpush1.msra.mxu0 0.0
    %1261 = vmatprep.subr.mxu0 0.0
    %1262 = vmatpush1.msra.mxu0 0.0
    %1263 = vmatprep.subr.mxu0 0.0
    %1264 = vmatpush1.msra.mxu0 0.0
    %1265 = vmatprep.subr.mxu0 0.0
    %1266 = vmatpush1.msra.mxu0 0.0
    %1267 = vmatprep.subr.mxu0 0.0
    %1268 = vmatpush1.msra.mxu0 0.0
    %1269 = vmatprep.subr.mxu0 0.0
    %1270 = vmatpush1.msra.mxu0 0.0
    %1271 = vmatprep.subr.mxu0 0.0
    %1272 = vmatpush1.msra.mxu0 0.0
    %1273 = vmatprep.subr.mxu0 0.0
    %1274 = vmatpush1.msra.mxu0 0.0
    %1275 = vmatprep.subr.mxu0 0.0
    %1276 = vmatpush1.msra.mxu0 0.0
    %1277 = vmatprep.subr.mxu0 0.0
    %1278 = vmatpush1.msra.mxu0 0.0
    %1279 = vmatprep.subr.mxu0 0.0
    %1280 = vmatpush1.msra.mxu0 0.0
    %1281 = vmatprep.subr.mxu0 0.0
    %1282 = vmatpush1.msra.mxu0 0.0
    %1283 = vmatprep.subr.mxu0 0.0
    %1284 = vmatpush1.msra.mxu0 0.0
    %1285 = vmatprep.subr.mxu0 0.0
    %1286 = vmatpush1.msra.mxu0 0.0
    %1287 = vmatprep.subr.mxu0 0.0
    %1288 = vmatpush1.msra.mxu0 0.0
    %1289 = vmatprep.subr.mxu0 0.0
    %1290 = vmatpush1.msra.mxu0 0.0
    %1291 = vmatprep.subr.mxu0 0.0
    %1292 = vmatpush1.msra.mxu0 0.0
    %1293 = vmatprep.subr.mxu0 0.0
    %1294 = vmatpush1.msra.mxu0 0.0
    %1295 = vmatprep.subr.mxu0 0.0
    %1296 = vmatpush1.msra.mxu0 0.0
    %1297 = vmatprep.mubr.f32.mxu0 0.0
    %1298 = vmatmul.mubr.f32.gmra.mrb[0].mxu0 %v1231
    %v1299 = vpop.f32.mrb[0].mxu0
    %v1300 = vadd.f32 %v119, %v1299
    %v1301 = vpop.f32.mrb[0].mxu0
    %1302 = vdwg.mxu0
    %vm1304 = vcmp.lt.s32.totalorder %v1300, 0
    %v1305 = vsub.s32 2147483648, %v1300
    %v1306 = vsel %vm1304, %v1305, %v1300
    %v1307 = vand.u32 %v1306, 4294967288
    %v1308 = vor.u32 %v1307, %v134
    %v1309 = vsel %vm402, %v1308, 2147483648
    %v1310 = vand.u32 %v1309, 65535
    %v1311 = vshra.s32 %v1309, 16
    %v1312 = vcvt.s32.f32 %v1310
    %v1313 = vcvt.s32.f32 %v1311
    %1314 = vmax.xlane.f32.xlu0 %v1313
    %v1315 = vpop.xlane.xlu0 %1314
    %vm1316 = vcmp.eq.f32.partialorder %v1313, %v1315
    %v1317 = vsel %vm1316, %v1312, -inf
    %1318 = vmax.xlane.f32.xlu0 %v1317
    %v1319 = vpop.xlane.xlu0 %1318
    %v1320 = vcvt.f32.s32 %v1319
    %v1321 = vcvt.f32.s32 %v1315
    %v1322 = vshll.u32 %v1321, 16
    %v1323 = vadd.s32 %v1322, %v1320
    %v1324 = vand.u32 %v1323, 7
    %v1325 = vsub.s32 7, %v1324
    %v1326 = vand.u32 %v1323, 4294967288
    %vm1327 = vcmp.lt.s32.totalorder %v1326, 0
    %v1328 = vsub.s32 2147483648, %v1326
    %v1329 = vsel %vm1327, %v1328, %v1326
    %v1331 = vsub.f32 %v1300, %v1329
    %v1332 = vmul.f32 %v1331, 1.442695
    %v1333 = vpow.pop %v1332
    %v1334 = vsel %vm402, %v1333, 0.0
    %1335 = vadd.xlane.f32.xlu0 %v1334
    %v1336 = vpop.xlane.xlu0 %1335
    %v1337 = vlog2.pop %v1336
    %v1338 = vmul.f32 %v1337, 0.6931472
    %v1339 = vadd.f32 %v1119, %v1338
    %v1340 = vmul.f32 %v1333, %v1331
    %v1341 = vsel %vm402, %v1340, 0.0
    %1342 = vadd.xlane.f32.xlu0 %v1341
    %v1343 = vpop.xlane.xlu0 %1342
    %v1344 = vrcp.pop %v1336
    %v1345 = vmul.f32 %v1343, %v1344
    %v1346 = vsub.f32 %v1339, %v1345
    %v1347 = vsel %vm1124, 0, %v1325
    %vm1348 = vcmp.eq.s32.totalorder %v133, 5
    %v1349 = vsel %vm1348, %v1347, %v1122
    %1350 = vst [vmem:[#allocation11] sm:$0x3] %v1349
    %v1351 = vadd.f32 %v139, 0.0
    %v1353 = vsel %vm223, %v1351, 0
    %1355 = vmatprep.subr.mxu0 0.0
    %1356 = vmatpush1.msra.mxu0 %v121
    %1357 = vmatprep.subr.mxu0 0.0
    %1358 = vmatpush1.msra.mxu0 %v122
    %1359 = vmatprep.subr.mxu0 0.0
    %1360 = vmatpush1.msra.mxu0 %v123
    %1361 = vmatprep.subr.mxu0 0.0
    %1362 = vmatpush1.msra.mxu0 %v124
    %1363 = vmatprep.subr.mxu0 0.0
    %1364 = vmatpush1.msra.mxu0 %v125
    %1365 = vmatprep.subr.mxu0 0.0
    %1366 = vmatpush1.msra.mxu0 %v126
    %1367 = vmatprep.subr.mxu0 0.0
    %1368 = vmatpush1.msra.mxu0 0.0
    %1369 = vmatprep.subr.mxu0 0.0
    %1370 = vmatpush1.msra.mxu0 0.0
    %1371 = vmatprep.subr.mxu0 0.0
    %1372 = vmatpush1.msra.mxu0 0.0
    %1373 = vmatprep.subr.mxu0 0.0
    %1374 = vmatpush1.msra.mxu0 0.0
    %1375 = vmatprep.subr.mxu0 0.0
    %1376 = vmatpush1.msra.mxu0 0.0
    %1377 = vmatprep.subr.mxu0 0.0
    %1378 = vmatpush1.msra.mxu0 0.0
    %1379 = vmatprep.subr.mxu0 0.0
    %1380 = vmatpush1.msra.mxu0 0.0
    %1381 = vmatprep.subr.mxu0 0.0
    %1382 = vmatpush1.msra.mxu0 0.0
    %1383 = vmatprep.subr.mxu0 0.0
    %1384 = vmatpush1.msra.mxu0 0.0
    %1385 = vmatprep.subr.mxu0 0.0
    %1386 = vmatpush1.msra.mxu0 0.0
    %1387 = vmatprep.subr.mxu0 0.0
    %1388 = vmatpush1.msra.mxu0 0.0
    %1389 = vmatprep.subr.mxu0 0.0
    %1390 = vmatpush1.msra.mxu0 0.0
    %1391 = vmatprep.subr.mxu0 0.0
    %1392 = vmatpush1.msra.mxu0 0.0
    %1393 = vmatprep.subr.mxu0 0.0
    %1394 = vmatpush1.msra.mxu0 0.0
    %1395 = vmatprep.subr.mxu0 0.0
    %1396 = vmatpush1.msra.mxu0 0.0
    %1397 = vmatprep.subr.mxu0 0.0
    %1398 = vmatpush1.msra.mxu0 0.0
    %1399 = vmatprep.subr.mxu0 0.0
    %1400 = vmatpush1.msra.mxu0 0.0
    %1401 = vmatprep.subr.mxu0 0.0
    %1402 = vmatpush1.msra.mxu0 0.0
    %1403 = vmatprep.subr.mxu0 0.0
    %1404 = vmatpush1.msra.mxu0 0.0
    %1405 = vmatprep.subr.mxu0 0.0
    %1406 = vmatpush1.msra.mxu0 0.0
    %1407 = vmatprep.subr.mxu0 0.0
    %1408 = vmatpush1.msra.mxu0 0.0
    %1409 = vmatprep.subr.mxu0 0.0
    %1410 = vmatpush1.msra.mxu0 0.0
    %1411 = vmatprep.subr.mxu0 0.0
    %1412 = vmatpush1.msra.mxu0 0.0
    %1413 = vmatprep.subr.mxu0 0.0
    %1414 = vmatpush1.msra.mxu0 0.0
    %1415 = vmatprep.subr.mxu0 0.0
    %1416 = vmatpush1.msra.mxu0 0.0
    %1417 = vmatprep.subr.mxu0 0.0
    %1418 = vmatpush1.msra.mxu0 0.0
    %1419 = vmatprep.mubr.f32.mxu0 0.0
    %1420 = vmatmul.mubr.f32.gmra.mrb[0].mxu0 %v1353
    %v1421 = vpop.f32.mrb[0].mxu0
    %v1422 = vadd.f32 0.0, %v1421
    %v1423 = vpop.f32.mrb[0].mxu0
    %1424 = vdwg.mxu0
    %v1425 = vxor.u32 %v1422, 2147483648
    %v1426 = vmul.f32 %v1425, 1.442695
    %v1427 = vpow.pop %v1426
    %v1428 = vadd.f32 %v1427, 1.0
    %v1429 = vrcp.pop %v1428
    %v1430 = vmul.f32 1.0, %v1429
    %v1431 = vtanh.pop %v1422
    %v1432 = vmul.f32 %v1430, 0.0
    %1434 = vrot.lane.b32.xlu0 %v1431, 64
    %v1435 = vpop.permute.xlu0 %1434
    %v1437 = vmul.f32 %v1430, %v1435
    %1439 = vrot.lane.b32.xlu0 %v1437, 32
    %v1440 = vpop.permute.xlu0 %1439
    %v1442 = vadd.f32 %v1432, %v1440
    %v1443 = vtanh.pop %v1442
    %1445 = vrot.lane.b32.xlu0 %v1443, 64
    %v1446 = vpop.permute.xlu0 %1445
    %v1448 = vmul.f32 %v1430, %v1446
    %v1449 = vsel %vm441, %v1349, 0
    %vm1450 = vcmask 1041408
    %v1451 = vsel %vm1450, %v1449, 2147483648
    %v1452 = vand.u32 %v1451, 65535
    %v1453 = vshra.s32 %v1451, 16
    %v1454 = vcvt.s32.f32 %v1452
    %v1455 = vcvt.s32.f32 %v1453
    %1456 = vmax.xlane.f32.xlu0 %v1455
    %v1457 = vpop.xlane.xlu0 %1456
    %vm1458 = vcmp.eq.f32.partialorder %v1455, %v1457
    %v1459 = vsel %vm1458, %v1454, -inf
    %1460 = vmax.xlane.f32.xlu0 %v1459
    %v1461 = vpop.xlane.xlu0 %1460
    %v1462 = vcvt.f32.s32 %v1461
    %v1463 = vcvt.f32.s32 %v1457
    %v1464 = vshll.u32 %v1463, 16
    %v1465 = vadd.s32 %v1464, %v1462
    %v1466 = vadd.s32 %v1465, 32
    %vm1467 = vcmp.eq.s32.totalorder %v133, %v1466
    %v1468 = vsel %vm1467, 1.0, %v137
    %1470 = vrot.lane.b32.xlu0 %v1448, 32
    %v1471 = vpop.permute.xlu0 %1470
    %v1473 = vsel %vm220, %v1471, 0.0
    %v1474 = vadd.f32 %v1473, %v1468
    %v1476 = vsel %vm223, %v1474, 0
    %1478 = vmatprep.subr.mxu0 0.0
    %1479 = vmatpush1.msra.mxu0 %v121
    %1480 = vmatprep.subr.mxu0 0.0
    %1481 = vmatpush1.msra.mxu0 %v122
    %1482 = vmatprep.subr.mxu0 0.0
    %1483 = vmatpush1.msra.mxu0 %v123
    %1484 = vmatprep.subr.mxu0 0.0
    %1485 = vmatpush1.msra.mxu0 %v124
    %1486 = vmatprep.subr.mxu0 0.0
    %1487 = vmatpush1.msra.mxu0 %v125
    %1488 = vmatprep.subr.mxu0 0.0
    %1489 = vmatpush1.msra.mxu0 %v126
    %1490 = vmatprep.subr.mxu0 0.0
    %1491 = vmatpush1.msra.mxu0 0.0
    %1492 = vmatprep.subr.mxu0 0.0
    %1493 = vmatpush1.msra.mxu0 0.0
    %1494 = vmatprep.subr.mxu0 0.0
    %1495 = vmatpush1.msra.mxu0 0.0
    %1496 = vmatprep.subr.mxu0 0.0
    %1497 = vmatpush1.msra.mxu0 0.0
    %1498 = vmatprep.subr.mxu0 0.0
    %1499 = vmatpush1.msra.mxu0 0.0
    %1500 = vmatprep.subr.mxu0 0.0
    %1501 = vmatpush1.msra.mxu0 0.0
    %1502 = vmatprep.subr.mxu0 0.0
    %1503 = vmatpush1.msra.mxu0 0.0
    %1504 = vmatprep.subr.mxu0 0.0
    %1505 = vmatpush1.msra.mxu0 0.0
    %1506 = vmatprep.subr.mxu0 0.0
    %1507 = vmatpush1.msra.mxu0 0.0
    %1508 = vmatprep.subr.mxu0 0.0
    %1509 = vmatpush1.msra.mxu0 0.0
    %1510 = vmatprep.subr.mxu0 0.0
    %1511 = vmatpush1.msra.mxu0 0.0
    %1512 = vmatprep.subr.mxu0 0.0
    %1513 = vmatpush1.msra.mxu0 0.0
    %1514 = vmatprep.subr.mxu0 0.0
    %1515 = vmatpush1.msra.mxu0 0.0
    %1516 = vmatprep.subr.mxu0 0.0
    %1517 = vmatpush1.msra.mxu0 0.0
    %1518 = vmatprep.subr.mxu0 0.0
    %1519 = vmatpush1.msra.mxu0 0.0
    %1520 = vmatprep.subr.mxu0 0.0
    %1521 = vmatpush1.msra.mxu0 0.0
    %1522 = vmatprep.subr.mxu0 0.0
    %1523 = vmatpush1.msra.mxu0 0.0
    %1524 = vmatprep.subr.mxu0 0.0
    %1525 = vmatpush1.msra.mxu0 0.0
    %1526 = vmatprep.subr.mxu0 0.0
    %1527 = vmatpush1.msra.mxu0 0.0
    %1528 = vmatprep.subr.mxu0 0.0
    %1529 = vmatpush1.msra.mxu0 0.0
    %1530 = vmatprep.subr.mxu0 0.0
    %1531 = vmatpush1.msra.mxu0 0.0
    %1532 = vmatprep.subr.mxu0 0.0
    %1533 = vmatpush1.msra.mxu0 0.0
    %1534 = vmatprep.subr.mxu0 0.0
    %1535 = vmatpush1.msra.mxu0 0.0
    %1536 = vmatprep.subr.mxu0 0.0
    %1537 = vmatpush1.msra.mxu0 0.0
    %1538 = vmatprep.subr.mxu0 0.0
    %1539 = vmatpush1.msra.mxu0 0.0
    %1540 = vmatprep.subr.mxu0 0.0
    %1541 = vmatpush1.msra.mxu0 0.0
    %1542 = vmatprep.mubr.f32.mxu0 0.0
    %1543 = vmatmul.mubr.f32.gmra.mrb[0].mxu0 %v1476
    %v1544 = vpop.f32.mrb[0].mxu0
    %v1545 = vadd.f32 0.0, %v1544
    %v1546 = vpop.f32.mrb[0].mxu0
    %1547 = vdwg.mxu0
    %v1548 = vxor.u32 %v1545, 2147483648
    %v1549 = vmul.f32 %v1548, 1.442695
    %v1550 = vpow.pop %v1549
    %v1551 = vadd.f32 %v1550, 1.0
    %v1552 = vrcp.pop %v1551
    %v1553 = vmul.f32 1.0, %v1552
    %v1554 = vtanh.pop %v1545
    %v1555 = vmul.f32 %v1553, %v1442
    %1557 = vrot.lane.b32.xlu0 %v1554, 64
    %v1558 = vpop.permute.xlu0 %1557
    %v1560 = vmul.f32 %v1553, %v1558
    %1562 = vrot.lane.b32.xlu0 %v1560, 32
    %v1563 = vpop.permute.xlu0 %1562
    %v1565 = vadd.f32 %v1555, %v1563
    %v1566 = vtanh.pop %v1565
    %1568 = vrot.lane.b32.xlu0 %v1566, 64
    %v1569 = vpop.permute.xlu0 %1568
    %v1571 = vmul.f32 %v1553, %v1569
    %v1572 = vsel %vm667, %v1349, 0
    %v1573 = vsel %vm1450, %v1572, 2147483648
    %v1574 = vand.u32 %v1573, 65535
    %v1575 = vshra.s32 %v1573, 16
    %v1576 = vcvt.s32.f32 %v1574
    %v1577 = vcvt.s32.f32 %v1575
    %1578 = vmax.xlane.f32.xlu0 %v1577
    %v1579 = vpop.xlane.xlu0 %1578
    %vm1580 = vcmp.eq.f32.partialorder %v1577, %v1579
    %v1581 = vsel %vm1580, %v1576, -inf
    %1582 = vmax.xlane.f32.xlu0 %v1581
    %v1583 = vpop.xlane.xlu0 %1582
    %v1584 = vcvt.f32.s32 %v1583
    %v1585 = vcvt.f32.s32 %v1579
    %v1586 = vshll.u32 %v1585, 16
    %v1587 = vadd.s32 %v1586, %v1584
    %v1588 = vadd.s32 %v1587, 32
    %vm1589 = vcmp.eq.s32.totalorder %v133, %v1588
    %v1590 = vsel %vm1589, 1.0, %v137
    %1592 = vrot.lane.b32.xlu0 %v1571, 32
    %v1593 = vpop.permute.xlu0 %1592
    %v1595 = vsel %vm220, %v1593, 0.0
    %v1596 = vadd.f32 %v1595, %v1590
    %v1598 = vsel %vm223, %v1596, 0
    %1600 = vmatprep.subr.mxu0 0.0
    %1601 = vmatpush1.msra.mxu0 %v121
    %1602 = vmatprep.subr.mxu0 0.0
    %1603 = vmatpush1.msra.mxu0 %v122
    %1604 = vmatprep.subr.mxu0 0.0
    %1605 = vmatpush1.msra.mxu0 %v123
    %1606 = vmatprep.subr.mxu0 0.0
    %1607 = vmatpush1.msra.mxu0 %v124
    %1608 = vmatprep.subr.mxu0 0.0
    %1609 = vmatpush1.msra.mxu0 %v125
    %1610 = vmatprep.subr.mxu0 0.0
    %1611 = vmatpush1.msra.mxu0 %v126
    %1612 = vmatprep.subr.mxu0 0.0
    %1613 = vmatpush1.msra.mxu0 0.0
    %1614 = vmatprep.subr.mxu0 0.0
    %1615 = vmatpush1.msra.mxu0 0.0
    %1616 = vmatprep.subr.mxu0 0.0
    %1617 = vmatpush1.msra.mxu0 0.0
    %1618 = vmatprep.subr.mxu0 0.0
    %1619 = vmatpush1.msra.mxu0 0.0
    %1620 = vmatprep.subr.mxu0 0.0
    %1621 = vmatpush1.msra.mxu0 0.0
    %1622 = vmatprep.subr.mxu0 0.0
    %1623 = vmatpush1.msra.mxu0 0.0
    %1624 = vmatprep.subr.mxu0 0.0
    %1625 = vmatpush1.msra.mxu0 0.0
    %1626 = vmatprep.subr.mxu0 0.0
    %1627 = vmatpush1.msra.mxu0 0.0
    %1628 = vmatprep.subr.mxu0 0.0
    %1629 = vmatpush1.msra.mxu0 0.0
    %1630 = vmatprep.subr.mxu0 0.0
    %1631 = vmatpush1.msra.mxu0 0.0
    %1632 = vmatprep.subr.mxu0 0.0
    %1633 = vmatpush1.msra.mxu0 0.0
    %1634 = vmatprep.subr.mxu0 0.0
    %1635 = vmatpush1.msra.mxu0 0.0
    %1636 = vmatprep.subr.mxu0 0.0
    %1637 = vmatpush1.msra.mxu0 0.0
    %1638 = vmatprep.subr.mxu0 0.0
    %1639 = vmatpush1.msra.mxu0 0.0
    %1640 = vmatprep.subr.mxu0 0.0
    %1641 = vmatpush1.msra.mxu0 0.0
    %1642 = vmatprep.subr.mxu0 0.0
    %1643 = vmatpush1.msra.mxu0 0.0
    %1644 = vmatprep.subr.mxu0 0.0
    %1645 = vmatpush1.msra.mxu0 0.0
    %1646 = vmatprep.subr.mxu0 0.0
    %1647 = vmatpush1.msra.mxu0 0.0
    %1648 = vmatprep.subr.mxu0 0.0
    %1649 = vmatpush1.msra.mxu0 0.0
    %1650 = vmatprep.subr.mxu0 0.0
    %1651 = vmatpush1.msra.mxu0 0.0
    %1652 = vmatprep.subr.mxu0 0.0
    %1653 = vmatpush1.msra.mxu0 0.0
    %1654 = vmatprep.subr.mxu0 0.0
    %1655 = vmatpush1.msra.mxu0 0.0
    %1656 = vmatprep.subr.mxu0 0.0
    %1657 = vmatpush1.msra.mxu0 0.0
    %1658 = vmatprep.subr.mxu0 0.0
    %1659 = vmatpush1.msra.mxu0 0.0
    %1660 = vmatprep.subr.mxu0 0.0
    %1661 = vmatpush1.msra.mxu0 0.0
    %1662 = vmatprep.subr.mxu0 0.0
    %1663 = vmatpush1.msra.mxu0 0.0
    %1664 = vmatprep.mubr.f32.mxu0 0.0
    %1665 = vmatmul.mubr.f32.gmra.mrb[0].mxu0 %v1598
    %v1666 = vpop.f32.mrb[0].mxu0
    %v1667 = vadd.f32 0.0, %v1666
    %v1668 = vpop.f32.mrb[0].mxu0
    %1669 = vdwg.mxu0
    %v1670 = vxor.u32 %v1667, 2147483648
    %v1671 = vmul.f32 %v1670, 1.442695
    %v1672 = vpow.pop %v1671
    %v1673 = vadd.f32 %v1672, 1.0
    %v1674 = vrcp.pop %v1673
    %v1675 = vmul.f32 1.0, %v1674
    %v1676 = vtanh.pop %v1667
    %v1677 = vmul.f32 %v1675, %v1565
    %1679 = vrot.lane.b32.xlu0 %v1676, 64
    %v1680 = vpop.permute.xlu0 %1679
    %v1682 = vmul.f32 %v1675, %v1680
    %1684 = vrot.lane.b32.xlu0 %v1682, 32
    %v1685 = vpop.permute.xlu0 %1684
    %v1687 = vadd.f32 %v1677, %v1685
    %v1688 = vtanh.pop %v1687
    %1690 = vrot.lane.b32.xlu0 %v1688, 64
    %v1691 = vpop.permute.xlu0 %1690
    %v1693 = vmul.f32 %v1675, %v1691
    %v1694 = vsel %vm894, %v1349, 0
    %v1695 = vsel %vm1450, %v1694, 2147483648
    %v1696 = vand.u32 %v1695, 65535
    %v1697 = vshra.s32 %v1695, 16
    %v1698 = vcvt.s32.f32 %v1696
    %v1699 = vcvt.s32.f32 %v1697
    %1700 = vmax.xlane.f32.xlu0 %v1699
    %v1701 = vpop.xlane.xlu0 %1700
    %vm1702 = vcmp.eq.f32.partialorder %v1699, %v1701
    %v1703 = vsel %vm1702, %v1698, -inf
    %1704 = vmax.xlane.f32.xlu0 %v1703
    %v1705 = vpop.xlane.xlu0 %1704
    %v1706 = vcvt.f32.s32 %v1705
    %v1707 = vcvt.f32.s32 %v1701
    %v1708 = vshll.u32 %v1707, 16
    %v1709 = vadd.s32 %v1708, %v1706
    %v1710 = vadd.s32 %v1709, 32
    %vm1711 = vcmp.eq.s32.totalorder %v133, %v1710
    %v1712 = vsel %vm1711, 1.0, %v137
    %1714 = vrot.lane.b32.xlu0 %v1693, 32
    %v1715 = vpop.permute.xlu0 %1714
    %v1717 = vsel %vm220, %v1715, 0.0
    %v1718 = vadd.f32 %v1717, %v1712
    %v1720 = vsel %vm223, %v1718, 0
    %1722 = vmatprep.subr.mxu0 0.0
    %1723 = vmatpush1.msra.mxu0 %v121
    %1724 = vmatprep.subr.mxu0 0.0
    %1725 = vmatpush1.msra.mxu0 %v122
    %1726 = vmatprep.subr.mxu0 0.0
    %1727 = vmatpush1.msra.mxu0 %v123
    %1728 = vmatprep.subr.mxu0 0.0
    %1729 = vmatpush1.msra.mxu0 %v124
    %1730 = vmatprep.subr.mxu0 0.0
    %1731 = vmatpush1.msra.mxu0 %v125
    %1732 = vmatprep.subr.mxu0 0.0
    %1733 = vmatpush1.msra.mxu0 %v126
    %1734 = vmatprep.subr.mxu0 0.0
    %1735 = vmatpush1.msra.mxu0 0.0
    %1736 = vmatprep.subr.mxu0 0.0
    %1737 = vmatpush1.msra.mxu0 0.0
    %1738 = vmatprep.subr.mxu0 0.0
    %1739 = vmatpush1.msra.mxu0 0.0
    %1740 = vmatprep.subr.mxu0 0.0
    %1741 = vmatpush1.msra.mxu0 0.0
    %1742 = vmatprep.subr.mxu0 0.0
    %1743 = vmatpush1.msra.mxu0 0.0
    %1744 = vmatprep.subr.mxu0 0.0
    %1745 = vmatpush1.msra.mxu0 0.0
    %1746 = vmatprep.subr.mxu0 0.0
    %1747 = vmatpush1.msra.mxu0 0.0
    %1748 = vmatprep.subr.mxu0 0.0
    %1749 = vmatpush1.msra.mxu0 0.0
    %1750 = vmatprep.subr.mxu0 0.0
    %1751 = vmatpush1.msra.mxu0 0.0
    %1752 = vmatprep.subr.mxu0 0.0
    %1753 = vmatpush1.msra.mxu0 0.0
    %1754 = vmatprep.subr.mxu0 0.0
    %1755 = vmatpush1.msra.mxu0 0.0
    %1756 = vmatprep.subr.mxu0 0.0
    %1757 = vmatpush1.msra.mxu0 0.0
    %1758 = vmatprep.subr.mxu0 0.0
    %1759 = vmatpush1.msra.mxu0 0.0
    %1760 = vmatprep.subr.mxu0 0.0
    %1761 = vmatpush1.msra.mxu0 0.0
    %1762 = vmatprep.subr.mxu0 0.0
    %1763 = vmatpush1.msra.mxu0 0.0
    %1764 = vmatprep.subr.mxu0 0.0
    %1765 = vmatpush1.msra.mxu0 0.0
    %1766 = vmatprep.subr.mxu0 0.0
    %1767 = vmatpush1.msra.mxu0 0.0
    %1768 = vmatprep.subr.mxu0 0.0
    %1769 = vmatpush1.msra.mxu0 0.0
    %1770 = vmatprep.subr.mxu0 0.0
    %1771 = vmatpush1.msra.mxu0 0.0
    %1772 = vmatprep.subr.mxu0 0.0
    %1773 = vmatpush1.msra.mxu0 0.0
    %1774 = vmatprep.subr.mxu0 0.0
    %1775 = vmatpush1.msra.mxu0 0.0
    %1776 = vmatprep.subr.mxu0 0.0
    %1777 = vmatpush1.msra.mxu0 0.0
    %1778 = vmatprep.subr.mxu0 0.0
    %1779 = vmatpush1.msra.mxu0 0.0
    %1780 = vmatprep.subr.mxu0 0.0
    %1781 = vmatpush1.msra.mxu0 0.0
    %1782 = vmatprep.subr.mxu0 0.0
    %1783 = vmatpush1.msra.mxu0 0.0
    %1784 = vmatprep.subr.mxu0 0.0
    %1785 = vmatpush1.msra.mxu0 0.0
    %1786 = vmatprep.mubr.f32.mxu0 0.0
    %1787 = vmatmul.mubr.f32.gmra.mrb[0].mxu0 %v1720
    %v1788 = vpop.f32.mrb[0].mxu0
    %v1789 = vadd.f32 0.0, %v1788
    %v1790 = vpop.f32.mrb[0].mxu0
    %1791 = vdwg.mxu0
    %v1792 = vxor.u32 %v1789, 2147483648
    %v1793 = vmul.f32 %v1792, 1.442695
    %v1794 = vpow.pop %v1793
    %v1795 = vadd.f32 %v1794, 1.0
    %v1796 = vrcp.pop %v1795
    %v1797 = vmul.f32 1.0, %v1796
    %v1798 = vtanh.pop %v1789
    %v1799 = vmul.f32 %v1797, %v1687
    %1801 = vrot.lane.b32.xlu0 %v1798, 64
    %v1802 = vpop.permute.xlu0 %1801
    %v1804 = vmul.f32 %v1797, %v1802
    %1806 = vrot.lane.b32.xlu0 %v1804, 32
    %v1807 = vpop.permute.xlu0 %1806
    %v1809 = vadd.f32 %v1799, %v1807
    %v1810 = vtanh.pop %v1809
    %1812 = vrot.lane.b32.xlu0 %v1810, 64
    %v1813 = vpop.permute.xlu0 %1812
    %v1815 = vmul.f32 %v1797, %v1813
    %v1816 = vsel %vm1121, %v1349, 0
    %v1817 = vsel %vm1450, %v1816, 2147483648
    %v1818 = vand.u32 %v1817, 65535
    %v1819 = vshra.s32 %v1817, 16
    %v1820 = vcvt.s32.f32 %v1818
    %v1821 = vcvt.s32.f32 %v1819
    %1822 = vmax.xlane.f32.xlu0 %v1821
    %v1823 = vpop.xlane.xlu0 %1822
    %vm1824 = vcmp.eq.f32.partialorder %v1821, %v1823
    %v1825 = vsel %vm1824, %v1820, -inf
    %1826 = vmax.xlane.f32.xlu0 %v1825
    %v1827 = vpop.xlane.xlu0 %1826
    %v1828 = vcvt.f32.s32 %v1827
    %v1829 = vcvt.f32.s32 %v1823
    %v1830 = vshll.u32 %v1829, 16
    %v1831 = vadd.s32 %v1830, %v1828
    %v1832 = vadd.s32 %v1831, 32
    %vm1833 = vcmp.eq.s32.totalorder %v133, %v1832
    %v1834 = vsel %vm1833, 1.0, %v137
    %1836 = vrot.lane.b32.xlu0 %v1815, 32
    %v1837 = vpop.permute.xlu0 %1836
    %v1839 = vsel %vm220, %v1837, 0.0
    %v1840 = vadd.f32 %v1839, %v1834
    %v1842 = vsel %vm223, %v1840, 0
    %1844 = vmatprep.subr.mxu0 0.0
    %1845 = vmatpush1.msra.mxu0 %v121
    %1846 = vmatprep.subr.mxu0 0.0
    %1847 = vmatpush1.msra.mxu0 %v122
    %1848 = vmatprep.subr.mxu0 0.0
    %1849 = vmatpush1.msra.mxu0 %v123
    %1850 = vmatprep.subr.mxu0 0.0
    %1851 = vmatpush1.msra.mxu0 %v124
    %1852 = vmatprep.subr.mxu0 0.0
    %1853 = vmatpush1.msra.mxu0 %v125
    %1854 = vmatprep.subr.mxu0 0.0
    %1855 = vmatpush1.msra.mxu0 %v126
    %1856 = vmatprep.subr.mxu0 0.0
    %1857 = vmatpush1.msra.mxu0 0.0
    %1858 = vmatprep.subr.mxu0 0.0
    %1859 = vmatpush1.msra.mxu0 0.0
    %1860 = vmatprep.subr.mxu0 0.0
    %1861 = vmatpush1.msra.mxu0 0.0
    %1862 = vmatprep.subr.mxu0 0.0
    %1863 = vmatpush1.msra.mxu0 0.0
    %1864 = vmatprep.subr.mxu0 0.0
    %1865 = vmatpush1.msra.mxu0 0.0
    %1866 = vmatprep.subr.mxu0 0.0
    %1867 = vmatpush1.msra.mxu0 0.0
    %1868 = vmatprep.subr.mxu0 0.0
    %1869 = vmatpush1.msra.mxu0 0.0
    %1870 = vmatprep.subr.mxu0 0.0
    %1871 = vmatpush1.msra.mxu0 0.0
    %1872 = vmatprep.subr.mxu0 0.0
    %1873 = vmatpush1.msra.mxu0 0.0
    %1874 = vmatprep.subr.mxu0 0.0
    %1875 = vmatpush1.msra.mxu0 0.0
    %1876 = vmatprep.subr.mxu0 0.0
    %1877 = vmatpush1.msra.mxu0 0.0
    %1878 = vmatprep.subr.mxu0 0.0
    %1879 = vmatpush1.msra.mxu0 0.0
    %1880 = vmatprep.subr.mxu0 0.0
    %1881 = vmatpush1.msra.mxu0 0.0
    %1882 = vmatprep.subr.mxu0 0.0
    %1883 = vmatpush1.msra.mxu0 0.0
    %1884 = vmatprep.subr.mxu0 0.0
    %1885 = vmatpush1.msra.mxu0 0.0
    %1886 = vmatprep.subr.mxu0 0.0
    %1887 = vmatpush1.msra.mxu0 0.0
    %1888 = vmatprep.subr.mxu0 0.0
    %1889 = vmatpush1.msra.mxu0 0.0
    %1890 = vmatprep.subr.mxu0 0.0
    %1891 = vmatpush1.msra.mxu0 0.0
    %1892 = vmatprep.subr.mxu0 0.0
    %1893 = vmatpush1.msra.mxu0 0.0
    %1894 = vmatprep.subr.mxu0 0.0
    %1895 = vmatpush1.msra.mxu0 0.0
    %1896 = vmatprep.subr.mxu0 0.0
    %1897 = vmatpush1.msra.mxu0 0.0
    %1898 = vmatprep.subr.mxu0 0.0
    %1899 = vmatpush1.msra.mxu0 0.0
    %1900 = vmatprep.subr.mxu0 0.0
    %1901 = vmatpush1.msra.mxu0 0.0
    %1902 = vmatprep.subr.mxu0 0.0
    %1903 = vmatpush1.msra.mxu0 0.0
    %1904 = vmatprep.subr.mxu0 0.0
    %1905 = vmatpush1.msra.mxu0 0.0
    %1906 = vmatprep.subr.mxu0 0.0
    %1907 = vmatpush1.msra.mxu0 0.0
    %1908 = vmatprep.mubr.f32.mxu0 0.0
    %1909 = vmatmul.mubr.f32.gmra.mrb[0].mxu0 %v1842
    %v1910 = vpop.f32.mrb[0].mxu0
    %v1911 = vadd.f32 0.0, %v1910
    %v1912 = vpop.f32.mrb[0].mxu0
    %1913 = vdwg.mxu0
    %v1914 = vxor.u32 %v1911, 2147483648
    %v1915 = vmul.f32 %v1914, 1.442695
    %v1916 = vpow.pop %v1915
    %v1917 = vadd.f32 %v1916, 1.0
    %v1918 = vrcp.pop %v1917
    %v1919 = vmul.f32 1.0, %v1918
    %v1920 = vtanh.pop %v1911
    %v1921 = vmul.f32 %v1919, %v1809
    %1923 = vrot.lane.b32.xlu0 %v1920, 64
    %v1924 = vpop.permute.xlu0 %1923
    %v1926 = vmul.f32 %v1919, %v1924
    %1928 = vrot.lane.b32.xlu0 %v1926, 32
    %v1929 = vpop.permute.xlu0 %1928
    %v1931 = vadd.f32 %v1921, %v1929
    %v1932 = vtanh.pop %v1931
    %1934 = vrot.lane.b32.xlu0 %v1932, 64
    %v1935 = vpop.permute.xlu0 %1934
    %v1937 = vmul.f32 %v1919, %v1935
    %v1938 = vsel %vm1348, %v1347, 0
    %v1939 = vsel %vm1450, %v1938, 2147483648
    %v1940 = vand.u32 %v1939, 65535
    %v1941 = vshra.s32 %v1939, 16
    %v1942 = vcvt.s32.f32 %v1940
    %v1943 = vcvt.s32.f32 %v1941
    %1944 = vmax.xlane.f32.xlu0 %v1943
    %v1945 = vpop.xlane.xlu0 %1944
    %vm1946 = vcmp.eq.f32.partialorder %v1943, %v1945
    %v1947 = vsel %vm1946, %v1942, -inf
    %1948 = vmax.xlane.f32.xlu0 %v1947
    %v1949 = vpop.xlane.xlu0 %1948
    %v1950 = vcvt.f32.s32 %v1949
    %v1951 = vcvt.f32.s32 %v1945
    %v1952 = vshll.u32 %v1951, 16
    %v1953 = vadd.s32 %v1952, %v1950
    %v1954 = vadd.s32 %v1953, 32
    %vm1955 = vcmp.eq.s32.totalorder %v133, %v1954
    %v1956 = vsel %vm1955, 1.0, %v137
    %1958 = vrot.lane.b32.xlu0 %v1937, 32
    %v1959 = vpop.permute.xlu0 %1958
    %v1961 = vsel %vm220, %v1959, 0.0
    %v1962 = vadd.f32 %v1961, %v1956
    %v1964 = vsel %vm223, %v1962, 0
    %1966 = vmatprep.subr.mxu0 0.0
    %1967 = vmatpush1.msra.mxu0 %v121
    %1968 = vmatprep.subr.mxu0 0.0
    %1969 = vmatpush1.msra.mxu0 %v122
    %1970 = vmatprep.subr.mxu0 0.0
    %1971 = vmatpush1.msra.mxu0 %v123
    %1972 = vmatprep.subr.mxu0 0.0
    %1973 = vmatpush1.msra.mxu0 %v124
    %1974 = vmatprep.subr.mxu0 0.0
    %1975 = vmatpush1.msra.mxu0 %v125
    %1976 = vmatprep.subr.mxu0 0.0
    %1977 = vmatpush1.msra.mxu0 %v126
    %1978 = vmatprep.subr.mxu0 0.0
    %1979 = vmatpush1.msra.mxu0 0.0
    %1980 = vmatprep.subr.mxu0 0.0
    %1981 = vmatpush1.msra.mxu0 0.0
    %1982 = vmatprep.subr.mxu0 0.0
    %1983 = vmatpush1.msra.mxu0 0.0
    %1984 = vmatprep.subr.mxu0 0.0
    %1985 = vmatpush1.msra.mxu0 0.0
    %1986 = vmatprep.subr.mxu0 0.0
    %1987 = vmatpush1.msra.mxu0 0.0
    %1988 = vmatprep.subr.mxu0 0.0
    %1989 = vmatpush1.msra.mxu0 0.0
    %1990 = vmatprep.subr.mxu0 0.0
    %1991 = vmatpush1.msra.mxu0 0.0
    %1992 = vmatprep.subr.mxu0 0.0
    %1993 = vmatpush1.msra.mxu0 0.0
    %1994 = vmatprep.subr.mxu0 0.0
    %1995 = vmatpush1.msra.mxu0 0.0
    %1996 = vmatprep.subr.mxu0 0.0
    %1997 = vmatpush1.msra.mxu0 0.0
    %1998 = vmatprep.subr.mxu0 0.0
    %1999 = vmatpush1.msra.mxu0 0.0
    %2000 = vmatprep.subr.mxu0 0.0
    %2001 = vmatpush1.msra.mxu0 0.0
    %2002 = vmatprep.subr.mxu0 0.0
    %2003 = vmatpush1.msra.mxu0 0.0
    %2004 = vmatprep.subr.mxu0 0.0
    %2005 = vmatpush1.msra.mxu0 0.0
    %2006 = vmatprep.subr.mxu0 0.0
    %2007 = vmatpush1.msra.mxu0 0.0
    %2008 = vmatprep.subr.mxu0 0.0
    %2009 = vmatpush1.msra.mxu0 0.0
    %2010 = vmatprep.subr.mxu0 0.0
    %2011 = vmatpush1.msra.mxu0 0.0
    %2012 = vmatprep.subr.mxu0 0.0
    %2013 = vmatpush1.msra.mxu0 0.0
    %2014 = vmatprep.subr.mxu0 0.0
    %2015 = vmatpush1.msra.mxu0 0.0
    %2016 = vmatprep.subr.mxu0 0.0
    %2017 = vmatpush1.msra.mxu0 0.0
    %2018 = vmatprep.subr.mxu0 0.0
    %2019 = vmatpush1.msra.mxu0 0.0
    %2020 = vmatprep.subr.mxu0 0.0
    %2021 = vmatpush1.msra.mxu0 0.0
    %2022 = vmatprep.subr.mxu0 0.0
    %2023 = vmatpush1.msra.mxu0 0.0
    %2024 = vmatprep.subr.mxu0 0.0
    %2025 = vmatpush1.msra.mxu0 0.0
    %2026 = vmatprep.subr.mxu0 0.0
    %2027 = vmatpush1.msra.mxu0 0.0
    %2028 = vmatprep.subr.mxu0 0.0
    %2029 = vmatpush1.msra.mxu0 0.0
    %2030 = vmatprep.mubr.f32.mxu0 0.0
    %2031 = vmatmul.mubr.f32.gmra.mrb[0].mxu0 %v1964
    %v2032 = vpop.f32.mrb[0].mxu0
    %v2033 = vadd.f32 0.0, %v2032
    %v2034 = vpop.f32.mrb[0].mxu0
    %2035 = vdwg.mxu0
    %v2036 = vxor.u32 %v2033, 2147483648
    %v2037 = vmul.f32 %v2036, 1.442695
    %v2038 = vpow.pop %v2037
    %v2039 = vadd.f32 %v2038, 1.0
    %v2040 = vrcp.pop %v2039
    %v2041 = vmul.f32 1.0, %v2040
    %v2042 = vtanh.pop %v2033
    %v2043 = vmul.f32 %v2041, %v1931
    %2045 = vrot.lane.b32.xlu0 %v2042, 64
    %v2046 = vpop.permute.xlu0 %2045
    %v2048 = vmul.f32 %v2041, %v2046
    %2050 = vrot.lane.b32.xlu0 %v2048, 32
    %v2051 = vpop.permute.xlu0 %2050
    %v2053 = vadd.f32 %v2043, %v2051
    %v2054 = vtanh.pop %v2053
    %2056 = vrot.lane.b32.xlu0 %v2054, 64
    %v2057 = vpop.permute.xlu0 %2056
    %v2059 = vmul.f32 %v2041, %v2057
    %v2061 = vlaneseq
    %v2062 = vshrl.u32 %v2061, 7
    %v2063 = vsub.s32 0, %v2062
    %v2064 = vrot.slane %v131, %v2063
    %2067 = vrot.lane.b32.xlu0 %v2059, 32
    %v2068 = vpop.permute.xlu0 %2067
    %v2069 = vsel %vm220, %v2068, 0
    %2071 = vmatprep.subr.mxu0 0.0
    %2072 = vmatpush1.msra.mxu0 %v127
    %2073 = vmatprep.subr.mxu0 0.0
    %2074 = vmatpush1.msra.mxu0 %v128
    %2075 = vmatprep.subr.mxu0 0.0
    %2076 = vmatpush1.msra.mxu0 %v129
    %2077 = vmatprep.subr.mxu0 0.0
    %2078 = vmatpush1.msra.mxu0 %v130
    %2079 = vmatprep.subr.mxu0 0.0
    %2080 = vmatpush1.msra.mxu0 0.0
    %2081 = vmatprep.subr.mxu0 0.0
    %2082 = vmatpush1.msra.mxu0 0.0
    %2083 = vmatprep.subr.mxu0 0.0
    %2084 = vmatpush1.msra.mxu0 0.0
    %2085 = vmatprep.subr.mxu0 0.0
    %2086 = vmatpush1.msra.mxu0 0.0
    %2087 = vmatprep.subr.mxu0 0.0
    %2088 = vmatpush1.msra.mxu0 0.0
    %2089 = vmatprep.subr.mxu0 0.0
    %2090 = vmatpush1.msra.mxu0 0.0
    %2091 = vmatprep.subr.mxu0 0.0
    %2092 = vmatpush1.msra.mxu0 0.0
    %2093 = vmatprep.subr.mxu0 0.0
    %2094 = vmatpush1.msra.mxu0 0.0
    %2095 = vmatprep.subr.mxu0 0.0
    %2096 = vmatpush1.msra.mxu0 0.0
    %2097 = vmatprep.subr.mxu0 0.0
    %2098 = vmatpush1.msra.mxu0 0.0
    %2099 = vmatprep.subr.mxu0 0.0
    %2100 = vmatpush1.msra.mxu0 0.0
    %2101 = vmatprep.subr.mxu0 0.0
    %2102 = vmatpush1.msra.mxu0 0.0
    %2103 = vmatprep.subr.mxu0 0.0
    %2104 = vmatpush1.msra.mxu0 0.0
    %2105 = vmatprep.subr.mxu0 0.0
    %2106 = vmatpush1.msra.mxu0 0.0
    %2107 = vmatprep.subr.mxu0 0.0
    %2108 = vmatpush1.msra.mxu0 0.0
    %2109 = vmatprep.subr.mxu0 0.0
    %2110 = vmatpush1.msra.mxu0 0.0
    %2111 = vmatprep.subr.mxu0 0.0
    %2112 = vmatpush1.msra.mxu0 0.0
    %2113 = vmatprep.subr.mxu0 0.0
    %2114 = vmatpush1.msra.mxu0 0.0
    %2115 = vmatprep.subr.mxu0 0.0
    %2116 = vmatpush1.msra.mxu0 0.0
    %2117 = vmatprep.subr.mxu0 0.0
    %2118 = vmatpush1.msra.mxu0 0.0
    %2119 = vmatprep.subr.mxu0 0.0
    %2120 = vmatpush1.msra.mxu0 0.0
    %2121 = vmatprep.subr.mxu0 0.0
    %2122 = vmatpush1.msra.mxu0 0.0
    %2123 = vmatprep.subr.mxu0 0.0
    %2124 = vmatpush1.msra.mxu0 0.0
    %2125 = vmatprep.subr.mxu0 0.0
    %2126 = vmatpush1.msra.mxu0 0.0
    %2127 = vmatprep.subr.mxu0 0.0
    %2128 = vmatpush1.msra.mxu0 0.0
    %2129 = vmatprep.subr.mxu0 0.0
    %2130 = vmatpush1.msra.mxu0 0.0
    %2131 = vmatprep.subr.mxu0 0.0
    %2132 = vmatpush1.msra.mxu0 0.0
    %2133 = vmatprep.subr.mxu0 0.0
    %2134 = vmatpush1.msra.mxu0 0.0
    %2135 = vmatprep.mubr.f32.mxu0 0.0
    %2136 = vmatmul.mubr.f32.gmra.mrb[0].mxu0 %v2069
    %v2137 = vpop.f32.mrb[0].mxu0
    %v2138 = vadd.f32 %v2064, %v2137
    %v2139 = vpop.f32.mrb[0].mxu0
    %2140 = vdwg.mxu0
    %v2141 = vmul.f32 %v100, %v2138
    %vm2142 = vcmask 123904
    %v2143 = vsel %vm2142, %v2141, 0.0
    %2144 = vadd.xlane.f32.xlu0 %v2143
    %v2145 = vpop.xlane.xlu0 %2144
    %v2146 = vld [vmem:[#allocation2] sm:$0x3]
    %v2147 = vld [vmem:[#allocation2 + $0x2] sm:$0x3]
    %v2148 = vld [vmem:[#allocation2 + $0x4] sm:$0x3]
    %v2149 = vmul.f32 %v2146, %v2138
    %v2150 = vsel %vm2142, %v2149, 0.0
    %2151 = vadd.xlane.f32.xlu0 %v2150
    %v2152 = vpop.xlane.xlu0 %2151
    %v2153 = vsub.f32 1.0, %v2145
    %v2154 = vadd.f32 %v2153, %v2152
    %v2155 = vmax.f32 %v2154, 0.0
    %v2156 = vadd.f32 %v2155, 0.0
    %v2157 = vmul.f32 %v2147, %v2138
    %v2158 = vsel %vm2142, %v2157, 0.0
    %2159 = vadd.xlane.f32.xlu0 %v2158
    %v2160 = vpop.xlane.xlu0 %2159
    %v2161 = vadd.f32 %v2153, %v2160
    %v2162 = vmax.f32 %v2161, 0.0
    %v2163 = vadd.f32 %v2156, %v2162
    %v2164 = vmax.f32 %v2152, %v2160
    %v2165 = vmul.f32 %v2148, %v2138
    %v2166 = vsel %vm2142, %v2165, 0.0
    %2167 = vadd.xlane.f32.xlu0 %v2166
    %v2168 = vpop.xlane.xlu0 %2167
    %v2169 = vadd.f32 %v2153, %v2168
    %v2170 = vmax.f32 %v2169, 0.0
    %v2171 = vadd.f32 %v2163, %v2170
    %v2172 = vmax.f32 %v2164, %v2168
    %vm2173 = vcmp.ge.f32.partialorder %v2145, %v2172
    %v2174 = vsel %vm2173, 1, 0
    %v2175 = vcvt.s32.f32 %v2174
    %vm2176 = vcmp.eq.s32.totalorder %v133, 0
    %v2177 = vsel %vm2176, %v2171, 0.0
    %v2178 = vsel %vm441, %v2175, %v2177
    %v2179 = vsel %vm667, %v1346, %v2178
    %2180 = vst [vmem:[%s11] sm:$0x3] %v2179
    // Predicated region
    $region62: #{model_forward.1} parent=1 // pred_check
      _
    $region63: #{model_forward.1} parent=1 // pred_check_branch
      %2182 = sbr.rel (0) target = $region65
    $region64: #{model_forward.1} parent=1 // pred_region
      %s2184 = ssub.s32 32, 32
      %2185 = vsyncadd [#allocation4], %s2184
      %s2187 = sshll.u32 [#allocation11], 4
      %s2188 = int_to_ptr.vmem [resolvable:$true] %s2187
      %2190 = dma.vmem_to_hbm [thread:$0]  %s2188, 32, %s10, [#allocation4]
    $region65: #{model_forward.1} parent=1 // pred_fallthru
      _
    // Predicated region
    $region66: #{model_forward.1} parent=1 // pred_check
      _
    $region67: #{model_forward.1} parent=1 // pred_check_branch
      %2192 = sbr.rel (0) target = $region69
    $region68: #{model_forward.1} parent=1 // pred_region
      _
    $region69: #{model_forward.1} parent=1 // pred_fallthru
      _
    // Predicated region
    $region70: #{model_forward.1} parent=1 // pred_check
      _
    $region71: #{model_forward.1} parent=1 // pred_check_branch
      %2194 = sbr.rel (0) target = $region73
    $region72: #{model_forward.1} parent=1 // pred_region
      %2195 = dma.done [#allocation4], 32
    $region73: #{model_forward.1} parent=1 // pred_fallthru
      _
    // Predicated region
    $region74: #{model_forward.1} parent=1 // pred_check
      _
    $region75: #{model_forward.1} parent=1 // pred_check_branch
      %2197 = sbr.rel (0) target = $region77
    $region76: #{model_forward.1} parent=1 // pred_region
      _
    $region77: #{model_forward.1} parent=1 // pred_fallthru
      _
    %2198 = vsyncpa [#allocation3], 1
    %2199 = vsyncpa [#allocation6], 1
    %2200 = vsyncpa [#allocation9], 1
    %2201 = vsyncpa [#allocation4], 1

</llo_original>
